<compile_context>
chip_gen: v7x
topology: tpu7x:2x2x1
jax: 0.10.0
libtpu: 0.0.40
codegen_flags: <defaults>
</compile_context>

<pallas_src>
import jax
import jax.numpy as jnp
from jax.experimental import pallas as pl
from jax.experimental.pallas import tpu as pltpu


# Layer geometry for 16x16 inputs: (H=W, Cin, Cout); each conv is followed by
# a 2x2 max-pool.  Note W*Cout == 512 and (W//2)*Cout == 256 for every layer.
_LAYERS = ((16, 3, 32), (8, 32, 64), (4, 64, 128))
_NUM_CLASSES = 2


# ------------------------------ fused kernel ------------------------------- #

def fused_cnn_kernel(x_ref, w1_ref, b1_ref, w2_ref, b2_ref, w3_ref, b3_ref,
                     fcw_ref, fcb_ref, o_ref, pbuf2, pbuf3, tmp):
    """One image per grid step: (conv+BN+ReLU+pool) x3 -> GAP -> FC, all in VMEM."""
    f32 = jnp.float32

    def conv_bn_relu_pool(load_tap, w_ref, b_ref, H, Cout):
        # Conv3x3 (SAME) as 3 row-tap matmuls with width-Toeplitz expanded,
        # BN-scale-folded bf16 weights; f32 accumulation on the MXU.
        acc = jnp.dot(load_tap(0).astype(jnp.bfloat16), w_ref[0],
                      preferred_element_type=f32)
        for ky in (1, 2):
            acc = acc + jnp.dot(load_tap(ky).astype(jnp.bfloat16), w_ref[ky],
                                preferred_element_type=f32)
        y = jnp.maximum(acc + b_ref[...], 0.0)        # (H, H*Cout); lanes (dj, jo, c)
        half = (H // 2) * Cout                        # == 256 for every layer
        yd = jnp.maximum(y[:, :half], y[:, half:])    # horizontal 2-pool (lane halves)
        tmp[0:H, :] = yd
        # vertical 2-pool: max over adjacent row pairs -> H//2 rows of (1, 256)
        return [jnp.maximum(tmp[2 * i:2 * i + 1, :], tmp[2 * i + 1:2 * i + 2, :])
                for i in range(H // 2)]

    # Scratch is uninitialized; the halo rows of the inter-layer buffers must be 0.
    pbuf2[...] = jnp.zeros(pbuf2.shape, f32)
    pbuf3[...] = jnp.zeros(pbuf3.shape, f32)

    # layer 1: 16x16x3 -> 8x8x32   (input block is already row-padded, lanes (j, c))
    rows = conv_bn_relu_pool(lambda ky: x_ref[0, ky:ky + 16, :],
                             w1_ref, b1_ref, 16, 32)
    for i, r in enumerate(rows):
        pbuf2[1 + i:2 + i, :] = r

    # layer 2: 8x8x32 -> 4x4x64
    rows = conv_bn_relu_pool(lambda ky: pbuf2[ky:ky + 8, :],
                             w2_ref, b2_ref, 8, 64)
    for i, r in enumerate(rows):
        pbuf3[1 + i:2 + i, :] = r

    # layer 3: 4x4x64 -> 2x2x128
    rows = conv_bn_relu_pool(lambda ky: pbuf3[ky:ky + 4, :],
                             w3_ref, b3_ref, 4, 128)

    # GAP over the 2x2 spatial positions (each row holds 2 positions of 128 ch),
    # then the linear classifier.  Only the logits leave VMEM.
    g = (rows[0][:, :128] + rows[0][:, 128:] +
         rows[1][:, :128] + rows[1][:, 128:]) * 0.25            # (1, 128)
    o_ref[0] = jnp.dot(g, fcw_ref[...],
                       preferred_element_type=f32) + fcb_ref[...]


# -------------------------------- wrapper ----------------------------------- #

def simple_cnn_color(x_nchw, params):
    """Forward pass matching the PyTorch module (eval-mode BatchNorm)."""
    N = x_nchw.shape[0]
    ncls = params["fc_w"].shape[-1]
    # NCHW -> NHWC -> rows flattened to (j, c) lanes, one zero halo row top/bottom.
    x = jnp.transpose(x_nchw, (0, 2, 3, 1)).astype(jnp.float32)      # (N,16,16,3)
    xp = jnp.pad(x.reshape(N, 16, 48), ((0, 0), (1, 1), (0, 0)))     # (N,18,48)

    w1, b1 = params["w1"], params["b1"]
    w2, b2 = params["w2"], params["b2"]
    w3, b3 = params["w3"], params["b3"]
    fc_w, fc_b = params["fc_w"], params["fc_b"]

    out = pl.pallas_call(
        fused_cnn_kernel,
        out_shape=jax.ShapeDtypeStruct((N, 1, ncls), jnp.float32),
        grid=(N,),
        in_specs=[
            pl.BlockSpec((1,) + xp.shape[1:], lambda n: (n, 0, 0)),
            pl.BlockSpec(w1.shape, lambda n: (0, 0, 0)),
            pl.BlockSpec(b1.shape, lambda n: (0, 0)),
            pl.BlockSpec(w2.shape, lambda n: (0, 0, 0)),
            pl.BlockSpec(b2.shape, lambda n: (0, 0)),
            pl.BlockSpec(w3.shape, lambda n: (0, 0, 0)),
            pl.BlockSpec(b3.shape, lambda n: (0, 0)),
            pl.BlockSpec(fc_w.shape, lambda n: (0, 0)),
            pl.BlockSpec(fc_b.shape, lambda n: (0, 0)),
        ],
        out_specs=pl.BlockSpec((1, 1, ncls), lambda n: (n, 0, 0)),
        scratch_shapes=[
            pltpu.VMEM((10, 256), jnp.float32),   # padded 8x8x32 activation
            pltpu.VMEM((6, 256), jnp.float32),    # padded 4x4x64 activation
            pltpu.VMEM((16, 256), jnp.float32),   # pooled-row staging buffer
        ],
        compiler_params=pltpu.CompilerParams(dimension_semantics=("parallel",)),
    )(xp, w1, b1, w2, b2, w3, b3, fc_w, fc_b)
    return out.reshape(N, ncls)


# ------------------------ parameter prep / reference ------------------------ #

def _expand_conv_weights(w_hwio, scale, W):
    """Fold the BN scale into w and build, per vertical tap ky, a dense matrix
    mapping one input row (lanes (j_in, c_in)) to one conv-output row with
    lanes ordered (dj, j_out//2, c_out) (pool-friendly).  SAME padding along
    the width is encoded as zero weight entries."""
    _, _, Cin, Cout = w_hwio.shape
    wf = w_hwio * scale[None, None, None, :]
    jin = jnp.arange(W)[:, None]
    jout = jnp.arange(W)[None, :]
    kx = jin - jout + 1                       # horizontal tap linking j_in -> j_out
    valid = (kx >= 0) & (kx <= 2)
    kxc = jnp.clip(kx, 0, 2)
    mats = []
    for ky in range(3):
        m = wf[ky][kxc]                       # (W_in, W_out, Cin, Cout)
        m = jnp.where(valid[:, :, None, None], m, 0.0)
        m = jnp.transpose(m, (0, 2, 1, 3))    # (j_in, Cin, j_out, Cout)
        m = m.reshape(W, Cin, W // 2, 2, Cout)        # j_out -> (jo, dj)
        m = jnp.transpose(m, (0, 1, 3, 2, 4))         # (j_in, Cin, dj, jo, Cout)
        mats.append(m.reshape(W * Cin, W * Cout))
    return jnp.stack(mats, 0).astype(jnp.bfloat16)    # (3, W*Cin, W*Cout)


def init_params(key, num_classes=2):
    """Deterministic synthetic parameters (shapes from the module's __init__)."""
    eps = 1e-5
    folded = {}
    raw_convs = []
    for li, (W, cin, cout) in enumerate(_LAYERS, start=1):
        key, kw, kb, kg, kbe, km, kv = jax.random.split(key, 7)
        w = jax.random.normal(kw, (3, 3, cin, cout), jnp.float32) * 0.1    # HWIO
        cb = jax.random.normal(kb, (cout,), jnp.float32) * 0.1
        gamma = 1.0 + 0.1 * jax.random.normal(kg, (cout,), jnp.float32)
        beta = 0.1 * jax.random.normal(kbe, (cout,), jnp.float32)
        mean = 0.1 * jax.random.normal(km, (cout,), jnp.float32)
        var = jax.random.uniform(kv, (cout,), jnp.float32, minval=0.5, maxval=1.5)
        scale = gamma / jnp.sqrt(var + eps)
        bias = beta + scale * (cb - mean)
        raw_convs.append((w, cb, gamma, beta, mean, var))
        folded[f"w{li}"] = _expand_conv_weights(w, scale, W)
        folded[f"b{li}"] = jnp.tile(bias, W).reshape(1, W * cout)
    key, kfw, kfb = jax.random.split(key, 3)
    fc_w = jax.random.normal(kfw, (128, num_classes), jnp.float32) * 0.1
    fc_b = jax.random.normal(kfb, (num_classes,), jnp.float32) * 0.1
    folded["fc_w"] = fc_w
    folded["fc_b"] = fc_b.reshape(1, num_classes)
    raw = {"convs": raw_convs, "fc_w": fc_w, "fc_b": fc_b}
    return folded, raw


def reference_forward(x_nchw, raw):
    """Pure-JAX f32 reference with identical semantics (sanity check)."""
    eps = 1e-5
    x = jnp.transpose(x_nchw, (0, 2, 3, 1)).astype(jnp.float32)
    for (w, cb, gamma, beta, mean, var) in raw["convs"]:
        y = jax.lax.conv_general_dilated(
            x, w, window_strides=(1, 1), padding="SAME",
            dimension_numbers=("NHWC", "HWIO", "NHWC"),
            precision=jax.lax.Precision.HIGHEST) + cb
        y = (y - mean) / jnp.sqrt(var + eps) * gamma + beta
        y = jnp.maximum(y, 0.0)
        x = jax.lax.reduce_window(y, -jnp.inf, jax.lax.max,
                                  (1, 2, 2, 1), (1, 2, 2, 1), "VALID")
    g = jnp.mean(x, axis=(1, 2))
    return g @ raw["fc_w"] + raw["fc_b"]


# ---------------------------------- main ------------------------------------ #

if __name__ == "__main__":
    key = jax.random.PRNGKey(0)
    key, kx = jax.random.split(key)
    # PyTorch-style NCHW input: batch=2, 3 color channels, 16x16 spatial.
    x = jax.random.normal(kx, (2, 3, 16, 16), jnp.float32)
    folded, raw = init_params(key, num_classes=_NUM_CLASSES)

    fwd = jax.jit(simple_cnn_color)
    out = jax.block_until_ready(fwd(x, folded))
    assert out.shape == (2, _NUM_CLASSES), out.shape

    ref = reference_forward(x, raw)
    # bf16 matmul operands (f32 accumulation) -> keep a loose-but-meaningful bound.
    rel_err = float(jnp.max(jnp.abs(out - ref)) / (jnp.max(jnp.abs(ref)) + 1e-6))
    assert rel_err < 2e-2, f"mismatch vs reference: rel_err={rel_err}"

    print("KERNEL_OK")
</pallas_src>

<mosaic_0001>
module attributes {stable_mosaic.version = 11 : i64} {
  func.func @fused_cnn_kernel(%arg0: i32, %arg1: memref<1x18x48xf32, #tpu.memory_space<vmem>>, %arg2: memref<3x48x512xbf16, #tpu.memory_space<vmem>>, %arg3: memref<1x512xf32, #tpu.memory_space<vmem>>, %arg4: memref<3x256x512xbf16, #tpu.memory_space<vmem>>, %arg5: memref<1x512xf32, #tpu.memory_space<vmem>>, %arg6: memref<3x256x512xbf16, #tpu.memory_space<vmem>>, %arg7: memref<1x512xf32, #tpu.memory_space<vmem>>, %arg8: memref<128x2xf32, #tpu.memory_space<vmem>>, %arg9: memref<1x2xf32, #tpu.memory_space<vmem>>, %arg10: memref<1x1x2xf32, #tpu.memory_space<vmem>>, %arg11: memref<10x256xf32, #tpu.memory_space<vmem>>, %arg12: memref<6x256xf32, #tpu.memory_space<vmem>>, %arg13: memref<16x256xf32, #tpu.memory_space<vmem>>) attributes {dimension_semantics = [#tpu.dimension_semantics<parallel>], iteration_bounds = array<i64: 2>, scalar_prefetch = 0 : i64, scratch_operands = 3 : i64, tpu.core_type = #tpu.core_type<tc>, window_params = [{transform_indices = @transform_0, window_bounds = array<i64: 1, 18, 48>}, {pipeline_mode = #tpu.pipeline_mode<synchronous>, transform_indices = @transform_1, window_bounds = array<i64: 3, 48, 512>}, {pipeline_mode = #tpu.pipeline_mode<synchronous>, transform_indices = @transform_2, window_bounds = array<i64: 1, 512>}, {pipeline_mode = #tpu.pipeline_mode<synchronous>, transform_indices = @transform_3, window_bounds = array<i64: 3, 256, 512>}, {pipeline_mode = #tpu.pipeline_mode<synchronous>, transform_indices = @transform_4, window_bounds = array<i64: 1, 512>}, {pipeline_mode = #tpu.pipeline_mode<synchronous>, transform_indices = @transform_5, window_bounds = array<i64: 3, 256, 512>}, {pipeline_mode = #tpu.pipeline_mode<synchronous>, transform_indices = @transform_6, window_bounds = array<i64: 1, 512>}, {pipeline_mode = #tpu.pipeline_mode<synchronous>, transform_indices = @transform_7, window_bounds = array<i64: 128, 2>}, {pipeline_mode = #tpu.pipeline_mode<synchronous>, transform_indices = @transform_8, window_bounds = array<i64: 1, 2>}, {transform_indices = @transform_9, window_bounds = array<i64: 1, 1, 2>}]} {
    %cst = arith.constant 0.000000e+00 : f32
    %0 = vector.broadcast %cst : f32 to vector<10x256xf32>
    %c0 = arith.constant 0 : index
    %c0_0 = arith.constant 0 : index
    %1 = vector.load %arg11[%c0, %c0_0] : memref<10x256xf32, #tpu.memory_space<vmem>>, vector<10x256xf32>
    tpu.vector_store %arg11[%c0, %c0_0], %0 {strides = array<i32>} : memref<10x256xf32, #tpu.memory_space<vmem>>, vector<10x256xf32>,
    %cst_1 = arith.constant 0.000000e+00 : f32
    %2 = vector.broadcast %cst_1 : f32 to vector<6x256xf32>
    %c0_2 = arith.constant 0 : index
    %c0_3 = arith.constant 0 : index
    %3 = vector.load %arg12[%c0_2, %c0_3] : memref<6x256xf32, #tpu.memory_space<vmem>>, vector<6x256xf32>
    tpu.vector_store %arg12[%c0_2, %c0_3], %2 {strides = array<i32>} : memref<6x256xf32, #tpu.memory_space<vmem>>, vector<6x256xf32>,
    %c0_4 = arith.constant 0 : index
    %c0_5 = arith.constant 0 : index
    %c0_6 = arith.constant 0 : index
    %4 = vector.load %arg1[%c0_4, %c0_5, %c0_6] : memref<1x18x48xf32, #tpu.memory_space<vmem>>, vector<1x16x48xf32>
    %5 = vector.shape_cast %4 : vector<1x16x48xf32> to vector<16x48xf32>
    %6 = arith.truncf %5 : vector<16x48xf32> to vector<16x48xbf16>
    %c0_7 = arith.constant 0 : index
    %c0_8 = arith.constant 0 : index
    %c0_9 = arith.constant 0 : index
    %7 = vector.load %arg2[%c0_7, %c0_8, %c0_9] : memref<3x48x512xbf16, #tpu.memory_space<vmem>>, vector<1x48x512xbf16>
    %8 = vector.shape_cast %7 : vector<1x48x512xbf16> to vector<48x512xbf16>
    %cst_10 = arith.constant dense<0.000000e+00> : vector<16x512xf32>
    %9 = tpu.matmul %6, %8, %cst_10 {dimension_numbers = #tpu.dot_dimension_numbers<[1], [0], [0], [1], [0, 0, 1, 1], [], []>} : vector<16x48xbf16>, vector<48x512xbf16>, vector<16x512xf32> -> vector<16x512xf32>
    %c0_11 = arith.constant 0 : index
    %c1 = arith.constant 1 : index
    %c0_12 = arith.constant 0 : index
    %10 = vector.load %arg1[%c0_11, %c1, %c0_12] : memref<1x18x48xf32, #tpu.memory_space<vmem>>, vector<1x16x48xf32>
    %11 = vector.shape_cast %10 : vector<1x16x48xf32> to vector<16x48xf32>
    %12 = arith.truncf %11 : vector<16x48xf32> to vector<16x48xbf16>
    %c1_13 = arith.constant 1 : index
    %c0_14 = arith.constant 0 : index
    %c0_15 = arith.constant 0 : index
    %13 = vector.load %arg2[%c1_13, %c0_14, %c0_15] : memref<3x48x512xbf16, #tpu.memory_space<vmem>>, vector<1x48x512xbf16>
    %14 = vector.shape_cast %13 : vector<1x48x512xbf16> to vector<48x512xbf16>
    %cst_16 = arith.constant dense<0.000000e+00> : vector<16x512xf32>
    %15 = tpu.matmul %12, %14, %cst_16 {dimension_numbers = #tpu.dot_dimension_numbers<[1], [0], [0], [1], [0, 0, 1, 1], [], []>} : vector<16x48xbf16>, vector<48x512xbf16>, vector<16x512xf32> -> vector<16x512xf32>
    %16 = arith.addf %9, %15 : vector<16x512xf32>
    %c0_17 = arith.constant 0 : index
    %c2 = arith.constant 2 : index
    %c0_18 = arith.constant 0 : index
    %17 = vector.load %arg1[%c0_17, %c2, %c0_18] : memref<1x18x48xf32, #tpu.memory_space<vmem>>, vector<1x16x48xf32>
    %18 = vector.shape_cast %17 : vector<1x16x48xf32> to vector<16x48xf32>
    %19 = arith.truncf %18 : vector<16x48xf32> to vector<16x48xbf16>
    %c2_19 = arith.constant 2 : index
    %c0_20 = arith.constant 0 : index
    %c0_21 = arith.constant 0 : index
    %20 = vector.load %arg2[%c2_19, %c0_20, %c0_21] : memref<3x48x512xbf16, #tpu.memory_space<vmem>>, vector<1x48x512xbf16>
    %21 = vector.shape_cast %20 : vector<1x48x512xbf16> to vector<48x512xbf16>
    %cst_22 = arith.constant dense<0.000000e+00> : vector<16x512xf32>
    %22 = tpu.matmul %19, %21, %cst_22 {dimension_numbers = #tpu.dot_dimension_numbers<[1], [0], [0], [1], [0, 0, 1, 1], [], []>} : vector<16x48xbf16>, vector<48x512xbf16>, vector<16x512xf32> -> vector<16x512xf32>
    %23 = arith.addf %16, %22 : vector<16x512xf32>
    %c0_23 = arith.constant 0 : index
    %c0_24 = arith.constant 0 : index
    %24 = vector.load %arg3[%c0_23, %c0_24] : memref<1x512xf32, #tpu.memory_space<vmem>>, vector<1x512xf32>
    %25 = vector.broadcast %24 : vector<1x512xf32> to vector<16x512xf32>
    %26 = arith.addf %23, %25 : vector<16x512xf32>
    %cst_25 = arith.constant 0.000000e+00 : f32
    %27 = vector.broadcast %cst_25 : f32 to vector<16x512xf32>
    %28 = arith.maximumf %26, %27 : vector<16x512xf32>
    %29 = vector.extract_strided_slice %28 {offsets = [0, 0], sizes = [16, 256], strides = [1, 1]} : vector<16x512xf32> to vector<16x256xf32>
    %30 = vector.extract_strided_slice %28 {offsets = [0, 256], sizes = [16, 256], strides = [1, 1]} : vector<16x512xf32> to vector<16x256xf32>
    %31 = arith.maximumf %29, %30 : vector<16x256xf32>
    %c0_26 = arith.constant 0 : index
    %c0_27 = arith.constant 0 : index
    %32 = vector.load %arg13[%c0_26, %c0_27] : memref<16x256xf32, #tpu.memory_space<vmem>>, vector<16x256xf32>
    tpu.vector_store %arg13[%c0_26, %c0_27], %31 {strides = array<i32>} : memref<16x256xf32, #tpu.memory_space<vmem>>, vector<16x256xf32>,
    %c0_28 = arith.constant 0 : index
    %c0_29 = arith.constant 0 : index
    %33 = vector.load %arg13[%c0_28, %c0_29] : memref<16x256xf32, #tpu.memory_space<vmem>>, vector<1x256xf32>
    %c1_30 = arith.constant 1 : index
    %c0_31 = arith.constant 0 : index
    %34 = vector.load %arg13[%c1_30, %c0_31] : memref<16x256xf32, #tpu.memory_space<vmem>>, vector<1x256xf32>
    %35 = arith.maximumf %33, %34 : vector<1x256xf32>
    %c2_32 = arith.constant 2 : index
    %c0_33 = arith.constant 0 : index
    %36 = vector.load %arg13[%c2_32, %c0_33] : memref<16x256xf32, #tpu.memory_space<vmem>>, vector<1x256xf32>
    %c3 = arith.constant 3 : index
    %c0_34 = arith.constant 0 : index
    %37 = vector.load %arg13[%c3, %c0_34] : memref<16x256xf32, #tpu.memory_space<vmem>>, vector<1x256xf32>
    %38 = arith.maximumf %36, %37 : vector<1x256xf32>
    %c4 = arith.constant 4 : index
    %c0_35 = arith.constant 0 : index
    %39 = vector.load %arg13[%c4, %c0_35] : memref<16x256xf32, #tpu.memory_space<vmem>>, vector<1x256xf32>
    %c5 = arith.constant 5 : index
    %c0_36 = arith.constant 0 : index
    %40 = vector.load %arg13[%c5, %c0_36] : memref<16x256xf32, #tpu.memory_space<vmem>>, vector<1x256xf32>
    %41 = arith.maximumf %39, %40 : vector<1x256xf32>
    %c6 = arith.constant 6 : index
    %c0_37 = arith.constant 0 : index
    %42 = vector.load %arg13[%c6, %c0_37] : memref<16x256xf32, #tpu.memory_space<vmem>>, vector<1x256xf32>
    %c7 = arith.constant 7 : index
    %c0_38 = arith.constant 0 : index
    %43 = vector.load %arg13[%c7, %c0_38] : memref<16x256xf32, #tpu.memory_space<vmem>>, vector<1x256xf32>
    %44 = arith.maximumf %42, %43 : vector<1x256xf32>
    %c8 = arith.constant 8 : index
    %c0_39 = arith.constant 0 : index
    %45 = vector.load %arg13[%c8, %c0_39] : memref<16x256xf32, #tpu.memory_space<vmem>>, vector<1x256xf32>
    %c9 = arith.constant 9 : index
    %c0_40 = arith.constant 0 : index
    %46 = vector.load %arg13[%c9, %c0_40] : memref<16x256xf32, #tpu.memory_space<vmem>>, vector<1x256xf32>
    %47 = arith.maximumf %45, %46 : vector<1x256xf32>
    %c10 = arith.constant 10 : index
    %c0_41 = arith.constant 0 : index
    %48 = vector.load %arg13[%c10, %c0_41] : memref<16x256xf32, #tpu.memory_space<vmem>>, vector<1x256xf32>
    %c11 = arith.constant 11 : index
    %c0_42 = arith.constant 0 : index
    %49 = vector.load %arg13[%c11, %c0_42] : memref<16x256xf32, #tpu.memory_space<vmem>>, vector<1x256xf32>
    %50 = arith.maximumf %48, %49 : vector<1x256xf32>
    %c12 = arith.constant 12 : index
    %c0_43 = arith.constant 0 : index
    %51 = vector.load %arg13[%c12, %c0_43] : memref<16x256xf32, #tpu.memory_space<vmem>>, vector<1x256xf32>
    %c13 = arith.constant 13 : index
    %c0_44 = arith.constant 0 : index
    %52 = vector.load %arg13[%c13, %c0_44] : memref<16x256xf32, #tpu.memory_space<vmem>>, vector<1x256xf32>
    %53 = arith.maximumf %51, %52 : vector<1x256xf32>
    %c14 = arith.constant 14 : index
    %c0_45 = arith.constant 0 : index
    %54 = vector.load %arg13[%c14, %c0_45] : memref<16x256xf32, #tpu.memory_space<vmem>>, vector<1x256xf32>
    %c15 = arith.constant 15 : index
    %c0_46 = arith.constant 0 : index
    %55 = vector.load %arg13[%c15, %c0_46] : memref<16x256xf32, #tpu.memory_space<vmem>>, vector<1x256xf32>
    %56 = arith.maximumf %54, %55 : vector<1x256xf32>
    %c1_47 = arith.constant 1 : index
    %c0_48 = arith.constant 0 : index
    %57 = vector.load %arg11[%c1_47, %c0_48] : memref<10x256xf32, #tpu.memory_space<vmem>>, vector<1x256xf32>
    tpu.vector_store %arg11[%c1_47, %c0_48], %35 {strides = array<i32>} : memref<10x256xf32, #tpu.memory_space<vmem>>, vector<1x256xf32>,
    %c2_49 = arith.constant 2 : index
    %c0_50 = arith.constant 0 : index
    %58 = vector.load %arg11[%c2_49, %c0_50] : memref<10x256xf32, #tpu.memory_space<vmem>>, vector<1x256xf32>
    tpu.vector_store %arg11[%c2_49, %c0_50], %38 {strides = array<i32>} : memref<10x256xf32, #tpu.memory_space<vmem>>, vector<1x256xf32>,
    %c3_51 = arith.constant 3 : index
    %c0_52 = arith.constant 0 : index
    %59 = vector.load %arg11[%c3_51, %c0_52] : memref<10x256xf32, #tpu.memory_space<vmem>>, vector<1x256xf32>
    tpu.vector_store %arg11[%c3_51, %c0_52], %41 {strides = array<i32>} : memref<10x256xf32, #tpu.memory_space<vmem>>, vector<1x256xf32>,
    %c4_53 = arith.constant 4 : index
    %c0_54 = arith.constant 0 : index
    %60 = vector.load %arg11[%c4_53, %c0_54] : memref<10x256xf32, #tpu.memory_space<vmem>>, vector<1x256xf32>
    tpu.vector_store %arg11[%c4_53, %c0_54], %44 {strides = array<i32>} : memref<10x256xf32, #tpu.memory_space<vmem>>, vector<1x256xf32>,
    %c5_55 = arith.constant 5 : index
    %c0_56 = arith.constant 0 : index
    %61 = vector.load %arg11[%c5_55, %c0_56] : memref<10x256xf32, #tpu.memory_space<vmem>>, vector<1x256xf32>
    tpu.vector_store %arg11[%c5_55, %c0_56], %47 {strides = array<i32>} : memref<10x256xf32, #tpu.memory_space<vmem>>, vector<1x256xf32>,
    %c6_57 = arith.constant 6 : index
    %c0_58 = arith.constant 0 : index
    %62 = vector.load %arg11[%c6_57, %c0_58] : memref<10x256xf32, #tpu.memory_space<vmem>>, vector<1x256xf32>
    tpu.vector_store %arg11[%c6_57, %c0_58], %50 {strides = array<i32>} : memref<10x256xf32, #tpu.memory_space<vmem>>, vector<1x256xf32>,
    %c7_59 = arith.constant 7 : index
    %c0_60 = arith.constant 0 : index
    %63 = vector.load %arg11[%c7_59, %c0_60] : memref<10x256xf32, #tpu.memory_space<vmem>>, vector<1x256xf32>
    tpu.vector_store %arg11[%c7_59, %c0_60], %53 {strides = array<i32>} : memref<10x256xf32, #tpu.memory_space<vmem>>, vector<1x256xf32>,
    %c8_61 = arith.constant 8 : index
    %c0_62 = arith.constant 0 : index
    %64 = vector.load %arg11[%c8_61, %c0_62] : memref<10x256xf32, #tpu.memory_space<vmem>>, vector<1x256xf32>
    tpu.vector_store %arg11[%c8_61, %c0_62], %56 {strides = array<i32>} : memref<10x256xf32, #tpu.memory_space<vmem>>, vector<1x256xf32>,
    %c0_63 = arith.constant 0 : index
    %c0_64 = arith.constant 0 : index
    %65 = vector.load %arg11[%c0_63, %c0_64] : memref<10x256xf32, #tpu.memory_space<vmem>>, vector<8x256xf32>
    %66 = arith.truncf %65 : vector<8x256xf32> to vector<8x256xbf16>
    %c0_65 = arith.constant 0 : index
    %c0_66 = arith.constant 0 : index
    %c0_67 = arith.constant 0 : index
    %67 = vector.load %arg4[%c0_65, %c0_66, %c0_67] : memref<3x256x512xbf16, #tpu.memory_space<vmem>>, vector<1x256x512xbf16>
    %68 = vector.shape_cast %67 : vector<1x256x512xbf16> to vector<256x512xbf16>
    %cst_68 = arith.constant dense<0.000000e+00> : vector<8x512xf32>
    %69 = tpu.matmul %66, %68, %cst_68 {dimension_numbers = #tpu.dot_dimension_numbers<[1], [0], [0], [1], [0, 0, 1, 1], [], []>} : vector<8x256xbf16>, vector<256x512xbf16>, vector<8x512xf32> -> vector<8x512xf32>
    %c1_69 = arith.constant 1 : index
    %c0_70 = arith.constant 0 : index
    %70 = vector.load %arg11[%c1_69, %c0_70] : memref<10x256xf32, #tpu.memory_space<vmem>>, vector<8x256xf32>
    %71 = arith.truncf %70 : vector<8x256xf32> to vector<8x256xbf16>
    %c1_71 = arith.constant 1 : index
    %c0_72 = arith.constant 0 : index
    %c0_73 = arith.constant 0 : index
    %72 = vector.load %arg4[%c1_71, %c0_72, %c0_73] : memref<3x256x512xbf16, #tpu.memory_space<vmem>>, vector<1x256x512xbf16>
    %73 = vector.shape_cast %72 : vector<1x256x512xbf16> to vector<256x512xbf16>
    %cst_74 = arith.constant dense<0.000000e+00> : vector<8x512xf32>
    %74 = tpu.matmul %71, %73, %cst_74 {dimension_numbers = #tpu.dot_dimension_numbers<[1], [0], [0], [1], [0, 0, 1, 1], [], []>} : vector<8x256xbf16>, vector<256x512xbf16>, vector<8x512xf32> -> vector<8x512xf32>
    %75 = arith.addf %69, %74 : vector<8x512xf32>
    %c2_75 = arith.constant 2 : index
    %c0_76 = arith.constant 0 : index
    %76 = vector.load %arg11[%c2_75, %c0_76] : memref<10x256xf32, #tpu.memory_space<vmem>>, vector<8x256xf32>
    %77 = arith.truncf %76 : vector<8x256xf32> to vector<8x256xbf16>
    %c2_77 = arith.constant 2 : index
    %c0_78 = arith.constant 0 : index
    %c0_79 = arith.constant 0 : index
    %78 = vector.load %arg4[%c2_77, %c0_78, %c0_79] : memref<3x256x512xbf16, #tpu.memory_space<vmem>>, vector<1x256x512xbf16>
    %79 = vector.shape_cast %78 : vector<1x256x512xbf16> to vector<256x512xbf16>
    %cst_80 = arith.constant dense<0.000000e+00> : vector<8x512xf32>
    %80 = tpu.matmul %77, %79, %cst_80 {dimension_numbers = #tpu.dot_dimension_numbers<[1], [0], [0], [1], [0, 0, 1, 1], [], []>} : vector<8x256xbf16>, vector<256x512xbf16>, vector<8x512xf32> -> vector<8x512xf32>
    %81 = arith.addf %75, %80 : vector<8x512xf32>
    %c0_81 = arith.constant 0 : index
    %c0_82 = arith.constant 0 : index
    %82 = vector.load %arg5[%c0_81, %c0_82] : memref<1x512xf32, #tpu.memory_space<vmem>>, vector<1x512xf32>
    %83 = vector.broadcast %82 : vector<1x512xf32> to vector<8x512xf32>
    %84 = arith.addf %81, %83 : vector<8x512xf32>
    %cst_83 = arith.constant 0.000000e+00 : f32
    %85 = vector.broadcast %cst_83 : f32 to vector<8x512xf32>
    %86 = arith.maximumf %84, %85 : vector<8x512xf32>
    %87 = vector.extract_strided_slice %86 {offsets = [0, 0], sizes = [8, 256], strides = [1, 1]} : vector<8x512xf32> to vector<8x256xf32>
    %88 = vector.extract_strided_slice %86 {offsets = [0, 256], sizes = [8, 256], strides = [1, 1]} : vector<8x512xf32> to vector<8x256xf32>
    %89 = arith.maximumf %87, %88 : vector<8x256xf32>
    %c0_84 = arith.constant 0 : index
    %c0_85 = arith.constant 0 : index
    %90 = vector.load %arg13[%c0_84, %c0_85] : memref<16x256xf32, #tpu.memory_space<vmem>>, vector<8x256xf32>
    tpu.vector_store %arg13[%c0_84, %c0_85], %89 {strides = array<i32>} : memref<16x256xf32, #tpu.memory_space<vmem>>, vector<8x256xf32>,
    %c0_86 = arith.constant 0 : index
    %c0_87 = arith.constant 0 : index
    %91 = vector.load %arg13[%c0_86, %c0_87] : memref<16x256xf32, #tpu.memory_space<vmem>>, vector<1x256xf32>
    %c1_88 = arith.constant 1 : index
    %c0_89 = arith.constant 0 : index
    %92 = vector.load %arg13[%c1_88, %c0_89] : memref<16x256xf32, #tpu.memory_space<vmem>>, vector<1x256xf32>
    %93 = arith.maximumf %91, %92 : vector<1x256xf32>
    %c2_90 = arith.constant 2 : index
    %c0_91 = arith.constant 0 : index
    %94 = vector.load %arg13[%c2_90, %c0_91] : memref<16x256xf32, #tpu.memory_space<vmem>>, vector<1x256xf32>
    %c3_92 = arith.constant 3 : index
    %c0_93 = arith.constant 0 : index
    %95 = vector.load %arg13[%c3_92, %c0_93] : memref<16x256xf32, #tpu.memory_space<vmem>>, vector<1x256xf32>
    %96 = arith.maximumf %94, %95 : vector<1x256xf32>
    %c4_94 = arith.constant 4 : index
    %c0_95 = arith.constant 0 : index
    %97 = vector.load %arg13[%c4_94, %c0_95] : memref<16x256xf32, #tpu.memory_space<vmem>>, vector<1x256xf32>
    %c5_96 = arith.constant 5 : index
    %c0_97 = arith.constant 0 : index
    %98 = vector.load %arg13[%c5_96, %c0_97] : memref<16x256xf32, #tpu.memory_space<vmem>>, vector<1x256xf32>
    %99 = arith.maximumf %97, %98 : vector<1x256xf32>
    %c6_98 = arith.constant 6 : index
    %c0_99 = arith.constant 0 : index
    %100 = vector.load %arg13[%c6_98, %c0_99] : memref<16x256xf32, #tpu.memory_space<vmem>>, vector<1x256xf32>
    %c7_100 = arith.constant 7 : index
    %c0_101 = arith.constant 0 : index
    %101 = vector.load %arg13[%c7_100, %c0_101] : memref<16x256xf32, #tpu.memory_space<vmem>>, vector<1x256xf32>
    %102 = arith.maximumf %100, %101 : vector<1x256xf32>
    %c1_102 = arith.constant 1 : index
    %c0_103 = arith.constant 0 : index
    %103 = vector.load %arg12[%c1_102, %c0_103] : memref<6x256xf32, #tpu.memory_space<vmem>>, vector<1x256xf32>
    tpu.vector_store %arg12[%c1_102, %c0_103], %93 {strides = array<i32>} : memref<6x256xf32, #tpu.memory_space<vmem>>, vector<1x256xf32>,
    %c2_104 = arith.constant 2 : index
    %c0_105 = arith.constant 0 : index
    %104 = vector.load %arg12[%c2_104, %c0_105] : memref<6x256xf32, #tpu.memory_space<vmem>>, vector<1x256xf32>
    tpu.vector_store %arg12[%c2_104, %c0_105], %96 {strides = array<i32>} : memref<6x256xf32, #tpu.memory_space<vmem>>, vector<1x256xf32>,
    %c3_106 = arith.constant 3 : index
    %c0_107 = arith.constant 0 : index
    %105 = vector.load %arg12[%c3_106, %c0_107] : memref<6x256xf32, #tpu.memory_space<vmem>>, vector<1x256xf32>
    tpu.vector_store %arg12[%c3_106, %c0_107], %99 {strides = array<i32>} : memref<6x256xf32, #tpu.memory_space<vmem>>, vector<1x256xf32>,
    %c4_108 = arith.constant 4 : index
    %c0_109 = arith.constant 0 : index
    %106 = vector.load %arg12[%c4_108, %c0_109] : memref<6x256xf32, #tpu.memory_space<vmem>>, vector<1x256xf32>
    tpu.vector_store %arg12[%c4_108, %c0_109], %102 {strides = array<i32>} : memref<6x256xf32, #tpu.memory_space<vmem>>, vector<1x256xf32>,
    %c0_110 = arith.constant 0 : index
    %c0_111 = arith.constant 0 : index
    %107 = vector.load %arg12[%c0_110, %c0_111] : memref<6x256xf32, #tpu.memory_space<vmem>>, vector<4x256xf32>
    %108 = arith.truncf %107 : vector<4x256xf32> to vector<4x256xbf16>
    %c0_112 = arith.constant 0 : index
    %c0_113 = arith.constant 0 : index
    %c0_114 = arith.constant 0 : index
    %109 = vector.load %arg6[%c0_112, %c0_113, %c0_114] : memref<3x256x512xbf16, #tpu.memory_space<vmem>>, vector<1x256x512xbf16>
    %110 = vector.shape_cast %109 : vector<1x256x512xbf16> to vector<256x512xbf16>
    %cst_115 = arith.constant dense<0.000000e+00> : vector<4x512xf32>
    %111 = tpu.matmul %108, %110, %cst_115 {dimension_numbers = #tpu.dot_dimension_numbers<[1], [0], [0], [1], [0, 0, 1, 1], [], []>} : vector<4x256xbf16>, vector<256x512xbf16>, vector<4x512xf32> -> vector<4x512xf32>
    %c1_116 = arith.constant 1 : index
    %c0_117 = arith.constant 0 : index
    %112 = vector.load %arg12[%c1_116, %c0_117] : memref<6x256xf32, #tpu.memory_space<vmem>>, vector<4x256xf32>
    %113 = arith.truncf %112 : vector<4x256xf32> to vector<4x256xbf16>
    %c1_118 = arith.constant 1 : index
    %c0_119 = arith.constant 0 : index
    %c0_120 = arith.constant 0 : index
    %114 = vector.load %arg6[%c1_118, %c0_119, %c0_120] : memref<3x256x512xbf16, #tpu.memory_space<vmem>>, vector<1x256x512xbf16>
    %115 = vector.shape_cast %114 : vector<1x256x512xbf16> to vector<256x512xbf16>
    %cst_121 = arith.constant dense<0.000000e+00> : vector<4x512xf32>
    %116 = tpu.matmul %113, %115, %cst_121 {dimension_numbers = #tpu.dot_dimension_numbers<[1], [0], [0], [1], [0, 0, 1, 1], [], []>} : vector<4x256xbf16>, vector<256x512xbf16>, vector<4x512xf32> -> vector<4x512xf32>
    %117 = arith.addf %111, %116 : vector<4x512xf32>
    %c2_122 = arith.constant 2 : index
    %c0_123 = arith.constant 0 : index
    %118 = vector.load %arg12[%c2_122, %c0_123] : memref<6x256xf32, #tpu.memory_space<vmem>>, vector<4x256xf32>
    %119 = arith.truncf %118 : vector<4x256xf32> to vector<4x256xbf16>
    %c2_124 = arith.constant 2 : index
    %c0_125 = arith.constant 0 : index
    %c0_126 = arith.constant 0 : index
    %120 = vector.load %arg6[%c2_124, %c0_125, %c0_126] : memref<3x256x512xbf16, #tpu.memory_space<vmem>>, vector<1x256x512xbf16>
    %121 = vector.shape_cast %120 : vector<1x256x512xbf16> to vector<256x512xbf16>
    %cst_127 = arith.constant dense<0.000000e+00> : vector<4x512xf32>
    %122 = tpu.matmul %119, %121, %cst_127 {dimension_numbers = #tpu.dot_dimension_numbers<[1], [0], [0], [1], [0, 0, 1, 1], [], []>} : vector<4x256xbf16>, vector<256x512xbf16>, vector<4x512xf32> -> vector<4x512xf32>
    %123 = arith.addf %117, %122 : vector<4x512xf32>
    %c0_128 = arith.constant 0 : index
    %c0_129 = arith.constant 0 : index
    %124 = vector.load %arg7[%c0_128, %c0_129] : memref<1x512xf32, #tpu.memory_space<vmem>>, vector<1x512xf32>
    %125 = vector.broadcast %124 : vector<1x512xf32> to vector<4x512xf32>
    %126 = arith.addf %123, %125 : vector<4x512xf32>
    %cst_130 = arith.constant 0.000000e+00 : f32
    %127 = vector.broadcast %cst_130 : f32 to vector<4x512xf32>
    %128 = arith.maximumf %126, %127 : vector<4x512xf32>
    %129 = vector.extract_strided_slice %128 {offsets = [0, 0], sizes = [4, 256], strides = [1, 1]} : vector<4x512xf32> to vector<4x256xf32>
    %130 = vector.extract_strided_slice %128 {offsets = [0, 256], sizes = [4, 256], strides = [1, 1]} : vector<4x512xf32> to vector<4x256xf32>
    %131 = arith.maximumf %129, %130 : vector<4x256xf32>
    %c0_131 = arith.constant 0 : index
    %c0_132 = arith.constant 0 : index
    %132 = vector.load %arg13[%c0_131, %c0_132] : memref<16x256xf32, #tpu.memory_space<vmem>>, vector<4x256xf32>
    tpu.vector_store %arg13[%c0_131, %c0_132], %131 {strides = array<i32>} : memref<16x256xf32, #tpu.memory_space<vmem>>, vector<4x256xf32>,
    %c0_133 = arith.constant 0 : index
    %c0_134 = arith.constant 0 : index
    %133 = vector.load %arg13[%c0_133, %c0_134] : memref<16x256xf32, #tpu.memory_space<vmem>>, vector<1x256xf32>
    %c1_135 = arith.constant 1 : index
    %c0_136 = arith.constant 0 : index
    %134 = vector.load %arg13[%c1_135, %c0_136] : memref<16x256xf32, #tpu.memory_space<vmem>>, vector<1x256xf32>
    %135 = arith.maximumf %133, %134 : vector<1x256xf32>
    %c2_137 = arith.constant 2 : index
    %c0_138 = arith.constant 0 : index
    %136 = vector.load %arg13[%c2_137, %c0_138] : memref<16x256xf32, #tpu.memory_space<vmem>>, vector<1x256xf32>
    %c3_139 = arith.constant 3 : index
    %c0_140 = arith.constant 0 : index
    %137 = vector.load %arg13[%c3_139, %c0_140] : memref<16x256xf32, #tpu.memory_space<vmem>>, vector<1x256xf32>
    %138 = arith.maximumf %136, %137 : vector<1x256xf32>
    %139 = vector.extract_strided_slice %135 {offsets = [0, 0], sizes = [1, 128], strides = [1, 1]} : vector<1x256xf32> to vector<1x128xf32>
    %140 = vector.extract_strided_slice %135 {offsets = [0, 128], sizes = [1, 128], strides = [1, 1]} : vector<1x256xf32> to vector<1x128xf32>
    %141 = arith.addf %139, %140 : vector<1x128xf32>
    %142 = vector.extract_strided_slice %138 {offsets = [0, 0], sizes = [1, 128], strides = [1, 1]} : vector<1x256xf32> to vector<1x128xf32>
    %143 = arith.addf %141, %142 : vector<1x128xf32>
    %144 = vector.extract_strided_slice %138 {offsets = [0, 128], sizes = [1, 128], strides = [1, 1]} : vector<1x256xf32> to vector<1x128xf32>
    %145 = arith.addf %143, %144 : vector<1x128xf32>
    %cst_141 = arith.constant 2.500000e-01 : f32
    %146 = vector.broadcast %cst_141 : f32 to vector<1x128xf32>
    %147 = arith.mulf %145, %146 : vector<1x128xf32>
    %c0_142 = arith.constant 0 : index
    %c0_143 = arith.constant 0 : index
    %148 = vector.load %arg8[%c0_142, %c0_143] : memref<128x2xf32, #tpu.memory_space<vmem>>, vector<128x2xf32>
    %cst_144 = arith.constant dense<0.000000e+00> : vector<1x2xf32>
    %149 = tpu.matmul %147, %148, %cst_144 {dimension_numbers = #tpu.dot_dimension_numbers<[1], [0], [0], [1], [0, 0, 1, 1], [], []>} : vector<1x128xf32>, vector<128x2xf32>, vector<1x2xf32> -> vector<1x2xf32>
    %c0_145 = arith.constant 0 : index
    %c0_146 = arith.constant 0 : index
    %150 = vector.load %arg9[%c0_145, %c0_146] : memref<1x2xf32, #tpu.memory_space<vmem>>, vector<1x2xf32>
    %151 = arith.addf %149, %150 : vector<1x2xf32>
    %c0_147 = arith.constant 0 : index
    %c0_148 = arith.constant 0 : index
    %c0_149 = arith.constant 0 : index
    %152 = vector.load %arg10[%c0_147, %c0_148, %c0_149] : memref<1x1x2xf32, #tpu.memory_space<vmem>>, vector<1x1x2xf32>
    %153 = vector.shape_cast %152 : vector<1x1x2xf32> to vector<1x2xf32>
    %154 = vector.shape_cast %151 : vector<1x2xf32> to vector<1x1x2xf32>
    tpu.vector_store %arg10[%c0_147, %c0_148, %c0_149], %154 {strides = array<i32>} : memref<1x1x2xf32, #tpu.memory_space<vmem>>, vector<1x1x2xf32>,
    return
  }
  func.func @transform_0(%arg0: i32) -> (i32, i32, i32) {
    %c0_i32 = arith.constant 0 : i32
    %c0_i32_0 = arith.constant 0 : i32
    %c0_i32_1 = arith.constant 0 : i32
    return %arg0, %c0_i32, %c0_i32_0 : i32, i32, i32
  }
  func.func @transform_1(%arg0: i32) -> (i32, i32, i32) {
    %c0_i32 = arith.constant 0 : i32
    %c0_i32_0 = arith.constant 0 : i32
    %c0_i32_1 = arith.constant 0 : i32
    %c0_i32_2 = arith.constant 0 : i32
    return %c0_i32, %c0_i32_0, %c0_i32_1 : i32, i32, i32
  }
  func.func @transform_2(%arg0: i32) -> (i32, i32) {
    %c0_i32 = arith.constant 0 : i32
    %c0_i32_0 = arith.constant 0 : i32
    %c0_i32_1 = arith.constant 0 : i32
    return %c0_i32, %c0_i32_0 : i32, i32
  }
  func.func @transform_3(%arg0: i32) -> (i32, i32, i32) {
    %c0_i32 = arith.constant 0 : i32
    %c0_i32_0 = arith.constant 0 : i32
    %c0_i32_1 = arith.constant 0 : i32
    %c0_i32_2 = arith.constant 0 : i32
    return %c0_i32, %c0_i32_0, %c0_i32_1 : i32, i32, i32
  }
  func.func @transform_4(%arg0: i32) -> (i32, i32) {
    %c0_i32 = arith.constant 0 : i32
    %c0_i32_0 = arith.constant 0 : i32
    %c0_i32_1 = arith.constant 0 : i32
    return %c0_i32, %c0_i32_0 : i32, i32
  }
  func.func @transform_5(%arg0: i32) -> (i32, i32, i32) {
    %c0_i32 = arith.constant 0 : i32
    %c0_i32_0 = arith.constant 0 : i32
    %c0_i32_1 = arith.constant 0 : i32
    %c0_i32_2 = arith.constant 0 : i32
    return %c0_i32, %c0_i32_0, %c0_i32_1 : i32, i32, i32
  }
  func.func @transform_6(%arg0: i32) -> (i32, i32) {
    %c0_i32 = arith.constant 0 : i32
    %c0_i32_0 = arith.constant 0 : i32
    %c0_i32_1 = arith.constant 0 : i32
    return %c0_i32, %c0_i32_0 : i32, i32
  }
  func.func @transform_7(%arg0: i32) -> (i32, i32) {
    %c0_i32 = arith.constant 0 : i32
    %c0_i32_0 = arith.constant 0 : i32
    %c0_i32_1 = arith.constant 0 : i32
    return %c0_i32, %c0_i32_0 : i32, i32
  }
  func.func @transform_8(%arg0: i32) -> (i32, i32) {
    %c0_i32 = arith.constant 0 : i32
    %c0_i32_0 = arith.constant 0 : i32
    %c0_i32_1 = arith.constant 0 : i32
    return %c0_i32, %c0_i32_0 : i32, i32
  }
  func.func @transform_9(%arg0: i32) -> (i32, i32, i32) {
    %c0_i32 = arith.constant 0 : i32
    %c0_i32_0 = arith.constant 0 : i32
    %c0_i32_1 = arith.constant 0 : i32
    return %arg0, %c0_i32, %c0_i32_0 : i32, i32, i32
  }
}

</mosaic_0001>

<llo_original>
// kernel: simple_cnn_color.1
$region0: #{simple_cnn_color.1}
  #allocation0 [shape = 'u32[]', space=smem, size = 0x4, offset = 0x4, fixed_abs, tag = 'smem constant byte address 0x4 - core index']
  #allocation1 [shape = 'u32[144,128]{1,0:T(1,128)}', space=vmem, size = 0x12000, scoped, tag = 'internal scratch']
  #allocation2 [shape = 'f32[10,256]{1,0:T(8,128)}', space=vmem, size = 0x4000, scoped, tag = 'scratch operand']
  #allocation3 [shape = 'f32[6,256]{1,0:T(8,128)}', space=vmem, size = 0x2000, scoped, tag = 'scratch operand']
  #allocation4 [shape = 'f32[16,256]{1,0:T(8,128)}', space=vmem, size = 0x4000, scoped, tag = 'scratch operand']
  %s0 = inlined_call_operand.vmem [shape: f32[2,18,48], index: 0, kind: input, shape index: {}]
  %s1 = inlined_call_operand.vmem [shape: bf16[3,48,512], index: 1, kind: input, shape index: {}]
  %s2 = inlined_call_operand.vmem [shape: f32[1,512], index: 2, kind: input, shape index: {}]
  %s3 = inlined_call_operand.hbm [shape: bf16[3,256,512], index: 3, kind: input, shape index: {}]
  %s4 = inlined_call_operand.vmem [shape: f32[1,512], index: 4, kind: input, shape index: {}]
  %s5 = inlined_call_operand.hbm [shape: bf16[3,256,512], index: 5, kind: input, shape index: {}]
  %s6 = inlined_call_operand.vmem [shape: f32[1,512], index: 6, kind: input, shape index: {}]
  %s7 = inlined_call_operand.vmem [shape: f32[128,2], index: 7, kind: input, shape index: {}]
  %s8 = inlined_call_operand.vmem [shape: f32[1,2], index: 8, kind: input, shape index: {}]
  %s9 = inlined_call_operand.hbm [shape: f32[2,1,2], index: 9, kind: output, shape index: {}]
  %s10 = sld [smem:[#allocation0]]
  $region77: #{simple_cnn_color.1} parent=0
    _
  %s12 = ssub.s32 1, %s10
  %s13 = scalar_select 0, %s12, %s10
  $region1: #{simple_cnn_color.1} parent=0
    #allocation5 [shape = 'u8[786432]{0}', space=vmem, size = 0xc0000, scoped, tag = 'input window, operand 3, single buffered']
    #allocation6 [shape = 's32[2]{0}', space=sflag, size = 0x8, scoped, tag = 'scoped memory for simple_cnn_color.1']
    #allocation7 [shape = 's32[2]{0}', space=sflag, size = 0x8, scoped, tag = 'scoped memory for simple_cnn_color.1']
    #allocation8 [shape = 'u8[786432]{0}', space=vmem, size = 0xc0000, scoped, tag = 'input window, operand 5, single buffered']
    #allocation9 [shape = 's32[1]{0}', space=sflag, size = 0x4, scoped, tag = 'scoped memory for simple_cnn_color.1']
    #allocation10 [shape = 'u8[1024]{0}', space=vmem, size = 0x400, scoped, tag = 'output window, operand 0']
    %14 = vsyncpa [#allocation6], 0
    %15 = vsyncpa [#allocation9], 0
    %16 = vsyncpa [#allocation7], 0
    %s17 = scalar_lea.sflag [#allocation7], 1
    %18 = vsyncpa %s17, 0
    loop: start=0, step=1, limit=4
    $region2: #{simple_cnn_color.1} parent=1 // loop_pre_header
      _
    $region3: #{simple_cnn_color.1} parent=1 // loop_header
      %s20 = sphi 0, %s24
      %p21 = scmp.ge.s32.totalorder %s20, 4
      %s30 = sphi 0, %s32
      %s33 = sphi 0, %s30
      %s34 = sphi 0, %s33
      %s50 = sphi 0, %s34
      %s54 = sphi 0, %s54
      %s56 = sphi 0, %s54
      %s57 = sphi 0, %s56
      %s71 = sphi 0, %s57
      %s75 = sphi 0, %s75
      %s77 = sphi 0, %s75
      %s78 = sphi 0, %s77
      %s92 = sphi 0, %s78
      %s96 = sphi 0, %s96
      %s98 = sphi 0, %s96
      %s99 = sphi 0, %s98
      %s113 = sphi 0, %s99
      %s117 = sphi 0, %s117
      %s119 = sphi 0, %s117
      %s120 = sphi 0, %s119
      %s134 = sphi 0, %s120
      %s138 = sphi 0, %s138
      %s140 = sphi 0, %s138
      %s141 = sphi 0, %s140
      %s155 = sphi 0, %s141
      %s159 = sphi 0, %s159
      %s161 = sphi 0, %s159
      %s162 = sphi 0, %s161
      %s176 = sphi 0, %s162
      %s180 = sphi 0, %s180
      %s182 = sphi 0, %s180
      %s183 = sphi 0, %s182
      %s197 = sphi 0, %s183
      %s201 = sphi 0, %s201
      %s203 = sphi 0, %s201
      %s204 = sphi 0, %s203
      %s218 = sphi 0, %s204
      %s224 = sphi 0, %s226
      %s227 = sphi 0, %s224
      %s228 = sphi 0, %s227
      %s244 = sphi 0, %s228
    $region4: #{simple_cnn_color.1} parent=1 // loop_header_branch
      %23 = sbr.rel (%p21) target = $region8
    $region5: #{simple_cnn_color.1} parent=1 // loop_body
      %s25 = ssub.s32 %s20, 1
      %s26 = ssub.s32 %s20, 2
      %s27 = sadd.s32 %s20, 1
      %s28 = ssub.s32 %s20, %s27
      %p29 = scmp.eq.s32.totalorder %s28, 0
      %s31 = sadd.s32 %s30, 1
      %s32 = scalar_select %p29, %s30, %s31
      %p35 = pneg %p29
      %p36 = scmp.eq.s32.totalorder %s20, 1
      %p37 = por %p35, %p36
      %p38 = scmp.ne.s32.totalorder %s30, %s33
      %p39 = scmp.eq.s32.totalorder %s20, 0
      %p40 = por %p38, %p39
      %p41 = scmp.ne.s32.totalorder %s30, %s33
      %p42 = scmp.eq.s32.totalorder %s25, 1
      %p43 = por %p41, %p42
      %p44 = scmp.ne.s32.totalorder %s33, %s34
      %p45 = scmp.eq.s32.totalorder %s25, 0
      %p46 = por %p44, %p45
      %p47 = scmp.ne.s32.totalorder %s33, %s34
      %p48 = scmp.eq.s32.totalorder %s26, 1
      %p49 = por %p47, %p48
      %p51 = scmp.ne.s32.totalorder %s34, %s50
      %p52 = scmp.eq.s32.totalorder %s26, 0
      %p53 = por %p51, %p52
      %s55 = sadd.s32 %s54, 1
      %p58 = scmp.eq.s32.totalorder %s20, 1
      %p59 = scmp.ne.s32.totalorder %s54, %s56
      %p60 = scmp.eq.s32.totalorder %s20, 0
      %p61 = por %p59, %p60
      %p62 = scmp.ne.s32.totalorder %s54, %s56
      %p63 = scmp.eq.s32.totalorder %s25, 1
      %p64 = por %p62, %p63
      %p65 = scmp.ne.s32.totalorder %s56, %s57
      %p66 = scmp.eq.s32.totalorder %s25, 0
      %p67 = por %p65, %p66
      %p68 = scmp.ne.s32.totalorder %s56, %s57
      %p69 = scmp.eq.s32.totalorder %s26, 1
      %p70 = por %p68, %p69
      %p72 = scmp.ne.s32.totalorder %s57, %s71
      %p73 = scmp.eq.s32.totalorder %s26, 0
      %p74 = por %p72, %p73
      %s76 = sadd.s32 %s75, 1
      %p79 = scmp.eq.s32.totalorder %s20, 1
      %p80 = scmp.ne.s32.totalorder %s75, %s77
      %p81 = scmp.eq.s32.totalorder %s20, 0
      %p82 = por %p80, %p81
      %p83 = scmp.ne.s32.totalorder %s75, %s77
      %p84 = scmp.eq.s32.totalorder %s25, 1
      %p85 = por %p83, %p84
      %p86 = scmp.ne.s32.totalorder %s77, %s78
      %p87 = scmp.eq.s32.totalorder %s25, 0
      %p88 = por %p86, %p87
      %p89 = scmp.ne.s32.totalorder %s77, %s78
      %p90 = scmp.eq.s32.totalorder %s26, 1
      %p91 = por %p89, %p90
      %p93 = scmp.ne.s32.totalorder %s78, %s92
      %p94 = scmp.eq.s32.totalorder %s26, 0
      %p95 = por %p93, %p94
      %s97 = sadd.s32 %s96, 1
      %p100 = scmp.eq.s32.totalorder %s20, 1
      %p101 = scmp.ne.s32.totalorder %s96, %s98
      %p102 = scmp.eq.s32.totalorder %s20, 0
      %p103 = por %p101, %p102
      %p104 = scmp.ne.s32.totalorder %s96, %s98
      %p105 = scmp.eq.s32.totalorder %s25, 1
      %p106 = por %p104, %p105
      %p107 = scmp.ne.s32.totalorder %s98, %s99
      %p108 = scmp.eq.s32.totalorder %s25, 0
      %p109 = por %p107, %p108
      %p110 = scmp.ne.s32.totalorder %s98, %s99
      %p111 = scmp.eq.s32.totalorder %s26, 1
      %p112 = por %p110, %p111
      %p114 = scmp.ne.s32.totalorder %s99, %s113
      %p115 = scmp.eq.s32.totalorder %s26, 0
      %p116 = por %p114, %p115
      %s118 = sadd.s32 %s117, 1
      %p121 = scmp.eq.s32.totalorder %s20, 1
      %p122 = scmp.ne.s32.totalorder %s117, %s119
      %p123 = scmp.eq.s32.totalorder %s20, 0
      %p124 = por %p122, %p123
      %p125 = scmp.ne.s32.totalorder %s117, %s119
      %p126 = scmp.eq.s32.totalorder %s25, 1
      %p127 = por %p125, %p126
      %p128 = scmp.ne.s32.totalorder %s119, %s120
      %p129 = scmp.eq.s32.totalorder %s25, 0
      %p130 = por %p128, %p129
      %p131 = scmp.ne.s32.totalorder %s119, %s120
      %p132 = scmp.eq.s32.totalorder %s26, 1
      %p133 = por %p131, %p132
      %p135 = scmp.ne.s32.totalorder %s120, %s134
      %p136 = scmp.eq.s32.totalorder %s26, 0
      %p137 = por %p135, %p136
      %s139 = sadd.s32 %s138, 1
      %p142 = scmp.eq.s32.totalorder %s20, 1
      %p143 = scmp.ne.s32.totalorder %s138, %s140
      %p144 = scmp.eq.s32.totalorder %s20, 0
      %p145 = por %p143, %p144
      %p146 = scmp.ne.s32.totalorder %s138, %s140
      %p147 = scmp.eq.s32.totalorder %s25, 1
      %p148 = por %p146, %p147
      %p149 = scmp.ne.s32.totalorder %s140, %s141
      %p150 = scmp.eq.s32.totalorder %s25, 0
      %p151 = por %p149, %p150
      %p152 = scmp.ne.s32.totalorder %s140, %s141
      %p153 = scmp.eq.s32.totalorder %s26, 1
      %p154 = por %p152, %p153
      %p156 = scmp.ne.s32.totalorder %s141, %s155
      %p157 = scmp.eq.s32.totalorder %s26, 0
      %p158 = por %p156, %p157
      %s160 = sadd.s32 %s159, 1
      %p163 = scmp.eq.s32.totalorder %s20, 1
      %p164 = scmp.ne.s32.totalorder %s159, %s161
      %p165 = scmp.eq.s32.totalorder %s20, 0
      %p166 = por %p164, %p165
      %p167 = scmp.ne.s32.totalorder %s159, %s161
      %p168 = scmp.eq.s32.totalorder %s25, 1
      %p169 = por %p167, %p168
      %p170 = scmp.ne.s32.totalorder %s161, %s162
      %p171 = scmp.eq.s32.totalorder %s25, 0
      %p172 = por %p170, %p171
      %p173 = scmp.ne.s32.totalorder %s161, %s162
      %p174 = scmp.eq.s32.totalorder %s26, 1
      %p175 = por %p173, %p174
      %p177 = scmp.ne.s32.totalorder %s162, %s176
      %p178 = scmp.eq.s32.totalorder %s26, 0
      %p179 = por %p177, %p178
      %s181 = sadd.s32 %s180, 1
      %p184 = scmp.eq.s32.totalorder %s20, 1
      %p185 = scmp.ne.s32.totalorder %s180, %s182
      %p186 = scmp.eq.s32.totalorder %s20, 0
      %p187 = por %p185, %p186
      %p188 = scmp.ne.s32.totalorder %s180, %s182
      %p189 = scmp.eq.s32.totalorder %s25, 1
      %p190 = por %p188, %p189
      %p191 = scmp.ne.s32.totalorder %s182, %s183
      %p192 = scmp.eq.s32.totalorder %s25, 0
      %p193 = por %p191, %p192
      %p194 = scmp.ne.s32.totalorder %s182, %s183
      %p195 = scmp.eq.s32.totalorder %s26, 1
      %p196 = por %p194, %p195
      %p198 = scmp.ne.s32.totalorder %s183, %s197
      %p199 = scmp.eq.s32.totalorder %s26, 0
      %p200 = por %p198, %p199
      %s202 = sadd.s32 %s201, 1
      %p205 = scmp.eq.s32.totalorder %s20, 1
      %p206 = scmp.ne.s32.totalorder %s201, %s203
      %p207 = scmp.eq.s32.totalorder %s20, 0
      %p208 = por %p206, %p207
      %p209 = scmp.ne.s32.totalorder %s201, %s203
      %p210 = scmp.eq.s32.totalorder %s25, 1
      %p211 = por %p209, %p210
      %p212 = scmp.ne.s32.totalorder %s203, %s204
      %p213 = scmp.eq.s32.totalorder %s25, 0
      %p214 = por %p212, %p213
      %p215 = scmp.ne.s32.totalorder %s203, %s204
      %p216 = scmp.eq.s32.totalorder %s26, 1
      %p217 = por %p215, %p216
      %p219 = scmp.ne.s32.totalorder %s204, %s218
      %p220 = scmp.eq.s32.totalorder %s26, 0
      %p221 = por %p219, %p220
      %s222 = ssub.s32 %s20, %s27
      %p223 = scmp.eq.s32.totalorder %s222, 0
      %s225 = sadd.s32 %s224, 1
      %s226 = scalar_select %p223, %s224, %s225
      %p229 = pneg %p223
      %p230 = scmp.eq.s32.totalorder %s20, 1
      %p231 = por %p229, %p230
      %p232 = scmp.ne.s32.totalorder %s224, %s227
      %p233 = scmp.eq.s32.totalorder %s20, 0
      %p234 = por %p232, %p233
      %p235 = scmp.ne.s32.totalorder %s224, %s227
      %p236 = scmp.eq.s32.totalorder %s25, 1
      %p237 = por %p235, %p236
      %p238 = scmp.ne.s32.totalorder %s227, %s228
      %p239 = scmp.eq.s32.totalorder %s25, 0
      %p240 = por %p238, %p239
      %p241 = scmp.ne.s32.totalorder %s227, %s228
      %p242 = scmp.eq.s32.totalorder %s26, 1
      %p243 = por %p241, %p242
      %p245 = scmp.ne.s32.totalorder %s228, %s244
      %p246 = scmp.eq.s32.totalorder %s26, 0
      %p247 = por %p245, %p246
      %p248 = scmp.le.s32.totalorder 1, %s20
      %p249 = scmp.lt.s32.totalorder %s20, 3
      %p250 = pnand %p248, %p249
      %p251 = pneg %p250
      // Predicated region
      $region9: #{simple_cnn_color.1} parent=5 // pred_check
        _
      $region10: #{simple_cnn_color.1} parent=5 // pred_check_branch
        %253 = sbr.rel (%p250) target = $region12
      $region11: #{simple_cnn_color.1} parent=5 // pred_region
        %s254 = ssub.s32 %s20, 1
        // Predicated region
        $region13: #{simple_cnn_color.1} parent=11 // pred_check
          %p255 = pneg %p67
        $region14: #{simple_cnn_color.1} parent=11 // pred_check_branch
          %257 = sbr.rel (%p255) target = $region16
        $region15: #{simple_cnn_color.1} parent=11 // pred_region
          _
        $region16: #{simple_cnn_color.1} parent=11 // pred_fallthru
          _
        // Predicated region
        $region17: #{simple_cnn_color.1} parent=11 // pred_check
          %p258 = pneg %p88
        $region18: #{simple_cnn_color.1} parent=11 // pred_check_branch
          %260 = sbr.rel (%p258) target = $region20
        $region19: #{simple_cnn_color.1} parent=11 // pred_region
          _
        $region20: #{simple_cnn_color.1} parent=11 // pred_fallthru
          _
        // Predicated region
        $region21: #{simple_cnn_color.1} parent=11 // pred_check
          %p261 = pneg %p109
        $region22: #{simple_cnn_color.1} parent=11 // pred_check_branch
          %263 = sbr.rel (%p261) target = $region24
        $region23: #{simple_cnn_color.1} parent=11 // pred_region
          %s265 = ssub.s32 24576, 24576
          %266 = vsyncadd [#allocation6], %s265
          %s267 = sshll.u32 [#allocation5], 4
          %s268 = int_to_ptr.vmem [resolvable:$true] %s267
          %273 = dma.hbm_to_vmem [thread:$0]  %s3, 24576, %s268, [#allocation6], 256, 256, 16
        $region24: #{simple_cnn_color.1} parent=11 // pred_fallthru
          _
        // Predicated region
        $region25: #{simple_cnn_color.1} parent=11 // pred_check
          %p274 = pneg %p130
        $region26: #{simple_cnn_color.1} parent=11 // pred_check_branch
          %276 = sbr.rel (%p274) target = $region28
        $region27: #{simple_cnn_color.1} parent=11 // pred_region
          _
        $region28: #{simple_cnn_color.1} parent=11 // pred_fallthru
          _
        // Predicated region
        $region29: #{simple_cnn_color.1} parent=11 // pred_check
          %p277 = pneg %p151
        $region30: #{simple_cnn_color.1} parent=11 // pred_check_branch
          %279 = sbr.rel (%p277) target = $region32
        $region31: #{simple_cnn_color.1} parent=11 // pred_region
          %s281 = ssub.s32 24576, 24576
          %282 = vsyncadd [#allocation9], %s281
          %s283 = sshll.u32 [#allocation8], 4
          %s284 = int_to_ptr.vmem [resolvable:$true] %s283
          %289 = dma.hbm_to_vmem [thread:$0]  %s5, 24576, %s284, [#allocation9], 256, 256, 16
        $region32: #{simple_cnn_color.1} parent=11 // pred_fallthru
          _
        // Predicated region
        $region33: #{simple_cnn_color.1} parent=11 // pred_check
          %p290 = pneg %p172
        $region34: #{simple_cnn_color.1} parent=11 // pred_check_branch
          %292 = sbr.rel (%p290) target = $region36
        $region35: #{simple_cnn_color.1} parent=11 // pred_region
          _
        $region36: #{simple_cnn_color.1} parent=11 // pred_fallthru
          _
        // Predicated region
        $region37: #{simple_cnn_color.1} parent=11 // pred_check
          %p293 = pneg %p193
        $region38: #{simple_cnn_color.1} parent=11 // pred_check_branch
          %295 = sbr.rel (%p293) target = $region40
        $region39: #{simple_cnn_color.1} parent=11 // pred_region
          _
        $region40: #{simple_cnn_color.1} parent=11 // pred_fallthru
          _
        // Predicated region
        $region41: #{simple_cnn_color.1} parent=11 // pred_check
          %p296 = pneg %p214
        $region42: #{simple_cnn_color.1} parent=11 // pred_check_branch
          %298 = sbr.rel (%p296) target = $region44
        $region43: #{simple_cnn_color.1} parent=11 // pred_region
          _
        $region44: #{simple_cnn_color.1} parent=11 // pred_fallthru
          _
      $region12: #{simple_cnn_color.1} parent=5 // pred_fallthru
        _
      %p299 = scmp.lt.s32.totalorder %s20, 2
      // Predicated region
      $region45: #{simple_cnn_color.1} parent=5 // pred_check
        %p300 = pneg %p299
      $region46: #{simple_cnn_color.1} parent=5 // pred_check_branch
        %302 = sbr.rel (%p300) target = $region48
      $region47: #{simple_cnn_color.1} parent=5 // pred_region
        // Predicated region
        $region49: #{simple_cnn_color.1} parent=47 // pred_check
          %p303 = pneg %p40
        $region50: #{simple_cnn_color.1} parent=47 // pred_check_branch
          %305 = sbr.rel (%p303) target = $region52
        $region51: #{simple_cnn_color.1} parent=47 // pred_region
          %p306 = scmp.lt.s32.totalorder %s20, 1
          %s307 = scalar_select %p306, %s20, 1
          %s308 = smul.addr %s307, 3
          %s309 = smul.addr %s308, 8
          %s310 = scalar_lea.vmem %s0, %s309
        $region52: #{simple_cnn_color.1} parent=47 // pred_fallthru
          _
      $region48: #{simple_cnn_color.1} parent=5 // pred_fallthru
        _
      %p311 = scmp.le.s32.totalorder 1, %s20
      %p312 = scmp.lt.s32.totalorder %s20, 3
      %p313 = pnand %p311, %p312
      %p314 = pneg %p313
      // Predicated region
      $region53: #{simple_cnn_color.1} parent=5 // pred_check
        _
      $region54: #{simple_cnn_color.1} parent=5 // pred_check_branch
        %316 = sbr.rel (%p313) target = $region56
      $region55: #{simple_cnn_color.1} parent=5 // pred_region
        %s317 = ssub.s32 %s20, 1
        // Predicated region
        $region57: #{simple_cnn_color.1} parent=55 // pred_check
          %p318 = pneg %p109
        $region58: #{simple_cnn_color.1} parent=55 // pred_check_branch
          %320 = sbr.rel (%p318) target = $region60
        $region59: #{simple_cnn_color.1} parent=55 // pred_region
          %321 = dma.done [#allocation6], 24576
        $region60: #{simple_cnn_color.1} parent=55 // pred_fallthru
          _
        // Predicated region
        $region61: #{simple_cnn_color.1} parent=55 // pred_check
          %p322 = pneg %p151
        $region62: #{simple_cnn_color.1} parent=55 // pred_check_branch
          %324 = sbr.rel (%p322) target = $region64
        $region63: #{simple_cnn_color.1} parent=55 // pred_region
          %325 = dma.done [#allocation9], 24576
        $region64: #{simple_cnn_color.1} parent=55 // pred_fallthru
          _
        %p326 = scmp.lt.s32.totalorder %s25, 1
        %s327 = scalar_select %p326, %s25, 1
        %s328 = smul.addr %s327, 3
        %s329 = smul.addr %s328, 8
        %s330 = scalar_lea.vmem %s0, %s329
        %p331 = pneg %p46
        %p332 = pneg %p43
        %p333 = pneg %p67
        %p334 = pneg %p64
        %p335 = pneg %p88
        %p336 = pneg %p85
        %p337 = pneg %p109
        %p338 = pneg %p106
        %p339 = pneg %p130
        %p340 = pneg %p127
        %p341 = pneg %p151
        %p342 = pneg %p148
        %p343 = pneg %p172
        %p344 = pneg %p169
        %p345 = pneg %p193
        %p346 = pneg %p190
        %p347 = pneg %p214
        %p348 = pneg %p211
        %p349 = pneg %p240
        %p350 = pneg %p237
        %s351 = sand.u32 %s227, 1
        %s352 = scalar_lea.sflag [#allocation7], %s351
        %s353 = sand.u32 %s227, 1
        %s354 = scalar_lea.vmem [#allocation10], %s353
        %p355 = scmp.lt.s32.totalorder %s25, 1
        %s356 = scalar_select %p355, %s25, 1
        %s357 = smul.addr %s356, 3
        %s358 = smul.addr %s357, 8
        %s359 = scalar_lea.vmem %s0, %s358
        %361 = vst [vmem:[#allocation2] sm:$0xff] 0.0
        %362 = vst [vmem:[#allocation2 + $0x8] sm:$0xff] 0.0
        %363 = vst [vmem:[#allocation2 + $0x10] sm:$0x3] 0.0
        %364 = vst [vmem:[#allocation2 + $0x18] sm:$0x3] 0.0
        %365 = vst [vmem:[#allocation3] sm:$0x3f] 0.0
        %366 = vst [vmem:[#allocation3 + $0x8] sm:$0x3f] 0.0
        %v367 = vld [vmem:[%s359] sm:$0xff]
        %v368 = vld [vmem:[%s359 + $0x8] sm:$0xff]
        %v369 = vpack.c.bf16 %v368, %v367
        %v370 = vld [vmem:[%s1] sm:$0xff]
        %v371 = vld [vmem:[%s1 + $0x8] sm:$0xff]
        %v372 = vld [vmem:[%s1 + $0x10] sm:$0xff]
        %v373 = vld [vmem:[%s1 + $0x18] sm:$0xff]
        %v374 = vld [vmem:[%s1 + $0x20] sm:$0xff]
        %v375 = vld [vmem:[%s1 + $0x28] sm:$0xff]
        %v376 = vld [vmem:[%s1 + $0x30] sm:$0xff]
        %v377 = vld [vmem:[%s1 + $0x38] sm:$0xff]
        %v378 = vld [vmem:[%s1 + $0x40] sm:$0xff]
        %v379 = vld [vmem:[%s1 + $0x48] sm:$0xff]
        %v380 = vld [vmem:[%s1 + $0x50] sm:$0xff]
        %v381 = vld [vmem:[%s1 + $0x58] sm:$0xff]
        %v382 = vld [vmem:[%s359 + $0x1] sm:$0xff]
        %v383 = vld [vmem:[%s359 + $0x9] sm:$0xff]
        %v384 = vpack.c.bf16 %v383, %v382
        %s385 = scalar_lea.vmem %s1, 96
        %v386 = vld [vmem:[%s385] sm:$0xff]
        %v387 = vld [vmem:[%s385 + $0x8] sm:$0xff]
        %v388 = vld [vmem:[%s385 + $0x10] sm:$0xff]
        %v389 = vld [vmem:[%s385 + $0x18] sm:$0xff]
        %v390 = vld [vmem:[%s385 + $0x20] sm:$0xff]
        %v391 = vld [vmem:[%s385 + $0x28] sm:$0xff]
        %v392 = vld [vmem:[%s385 + $0x30] sm:$0xff]
        %v393 = vld [vmem:[%s385 + $0x38] sm:$0xff]
        %v394 = vld [vmem:[%s385 + $0x40] sm:$0xff]
        %v395 = vld [vmem:[%s385 + $0x48] sm:$0xff]
        %v396 = vld [vmem:[%s385 + $0x50] sm:$0xff]
        %v397 = vld [vmem:[%s385 + $0x58] sm:$0xff]
        %v410 = vunpack.c.l.b16 %v386
        %v411 = vunpack.c.h.b16 %v386
        %v412 = vunpack.c.l.b16 %v387
        %v413 = vunpack.c.h.b16 %v387
        %v414 = vunpack.c.l.b16 %v388
        %v415 = vunpack.c.h.b16 %v388
        %v416 = vunpack.c.l.b16 %v389
        %v417 = vunpack.c.h.b16 %v389
        %v418 = vunpack.c.l.b16 %v390
        %v419 = vunpack.c.h.b16 %v390
        %v420 = vunpack.c.l.b16 %v391
        %v421 = vunpack.c.h.b16 %v391
        %v422 = vunpack.c.l.b16 %v392
        %v423 = vunpack.c.h.b16 %v392
        %v424 = vunpack.c.l.b16 %v393
        %v425 = vunpack.c.h.b16 %v393
        %v426 = vunpack.c.l.b16 %v394
        %v427 = vunpack.c.h.b16 %v394
        %v428 = vunpack.c.l.b16 %v395
        %v429 = vunpack.c.h.b16 %v395
        %v430 = vunpack.c.l.b16 %v396
        %v431 = vunpack.c.h.b16 %v396
        %v432 = vunpack.c.l.b16 %v397
        %v433 = vunpack.c.h.b16 %v397
        %v434 = vpack.c.b16 %v414, %v410
        %v435 = vpack.c.b16 %v415, %v411
        %v436 = vpack.c.b16 %v416, %v412
        %v437 = vpack.c.b16 %v417, %v413
        %v438 = vpack.c.b16 %v422, %v418
        %v439 = vpack.c.b16 %v423, %v419
        %v440 = vpack.c.b16 %v424, %v420
        %v441 = vpack.c.b16 %v425, %v421
        %v442 = vpack.c.b16 %v430, %v426
        %v443 = vpack.c.b16 %v431, %v427
        %v444 = vpack.c.b16 %v432, %v428
        %v445 = vpack.c.b16 %v433, %v429
        %vm458 = vcmask 392192
        %v460 = vsel %vm458, %v384, 0
        %462 = vmatprep.subr.bf16.mxu0 %v435
        %463 = vmatpush1.bf16.msra.mxu0 %v434
        %464 = vmatprep.subr.bf16.mxu0 %v439
        %465 = vmatpush1.bf16.msra.mxu0 %v438
        %466 = vmatprep.subr.bf16.mxu0 %v443
        %467 = vmatpush1.bf16.msra.mxu0 %v442
        %468 = vmatprep.subr.bf16.mxu0 0
        %469 = vmatpush1.bf16.msra.mxu0 0
        %470 = vmatprep.subr.bf16.mxu0 0
        %471 = vmatpush1.bf16.msra.mxu0 0
        %472 = vmatprep.subr.bf16.mxu0 0
        %473 = vmatpush1.bf16.msra.mxu0 0
        %474 = vmatprep.subr.bf16.mxu0 0
        %475 = vmatpush1.bf16.msra.mxu0 0
        %476 = vmatprep.subr.bf16.mxu0 0
        %477 = vmatpush1.bf16.msra.mxu0 0
        %478 = vmatprep.subr.bf16.mxu0 0
        %479 = vmatpush1.bf16.msra.mxu0 0
        %480 = vmatprep.subr.bf16.mxu0 0
        %481 = vmatpush1.bf16.msra.mxu0 0
        %482 = vmatprep.subr.bf16.mxu0 0
        %483 = vmatpush1.bf16.msra.mxu0 0
        %484 = vmatprep.subr.bf16.mxu0 0
        %485 = vmatpush1.bf16.msra.mxu0 0
        %486 = vmatprep.subr.bf16.mxu0 0
        %487 = vmatpush1.bf16.msra.mxu0 0
        %488 = vmatprep.subr.bf16.mxu0 0
        %489 = vmatpush1.bf16.msra.mxu0 0
        %490 = vmatprep.subr.bf16.mxu0 0
        %491 = vmatpush1.bf16.msra.mxu0 0
        %492 = vmatprep.subr.bf16.mxu0 0
        %493 = vmatpush1.bf16.msra.mxu0 0
        %494 = vmatprep.mubr.bf16.mxu0 0
        %495 = vmatmul.mubr.bf16.gmra.mrb[0].mxu0 %v460
        %v496 = vpop.f32.mrb[0].mxu0
        %v497 = vadd.f32 0.0, %v496
        %v498 = vpop.f32.mrb[0].mxu0
        %v499 = vadd.f32 0.0, %v498
        %v500 = vpop.f32.mrb[0].mxu0
        %v501 = vadd.f32 0.0, %v500
        %v502 = vpop.f32.mrb[0].mxu0
        %v503 = vadd.f32 0.0, %v502
        %504 = vdwg.mxu0
        %505 = vmatprep.subr.bf16.mxu0 %v437
        %506 = vmatpush1.bf16.msra.mxu0 %v436
        %507 = vmatprep.subr.bf16.mxu0 %v441
        %508 = vmatpush1.bf16.msra.mxu0 %v440
        %509 = vmatprep.subr.bf16.mxu0 %v445
        %510 = vmatpush1.bf16.msra.mxu0 %v444
        %511 = vmatprep.subr.bf16.mxu0 0
        %512 = vmatpush1.bf16.msra.mxu0 0
        %513 = vmatprep.subr.bf16.mxu0 0
        %514 = vmatpush1.bf16.msra.mxu0 0
        %515 = vmatprep.subr.bf16.mxu0 0
        %516 = vmatpush1.bf16.msra.mxu0 0
        %517 = vmatprep.subr.bf16.mxu0 0
        %518 = vmatpush1.bf16.msra.mxu0 0
        %519 = vmatprep.subr.bf16.mxu0 0
        %520 = vmatpush1.bf16.msra.mxu0 0
        %521 = vmatprep.subr.bf16.mxu0 0
        %522 = vmatpush1.bf16.msra.mxu0 0
        %523 = vmatprep.subr.bf16.mxu0 0
        %524 = vmatpush1.bf16.msra.mxu0 0
        %525 = vmatprep.subr.bf16.mxu0 0
        %526 = vmatpush1.bf16.msra.mxu0 0
        %527 = vmatprep.subr.bf16.mxu0 0
        %528 = vmatpush1.bf16.msra.mxu0 0
        %529 = vmatprep.subr.bf16.mxu0 0
        %530 = vmatpush1.bf16.msra.mxu0 0
        %531 = vmatprep.subr.bf16.mxu0 0
        %532 = vmatpush1.bf16.msra.mxu0 0
        %533 = vmatprep.subr.bf16.mxu0 0
        %534 = vmatpush1.bf16.msra.mxu0 0
        %535 = vmatprep.subr.bf16.mxu0 0
        %536 = vmatpush1.bf16.msra.mxu0 0
        %537 = vmatprep.mubr.bf16.mxu0 0
        %538 = vmatmul.mubr.bf16.gmra.mrb[0].mxu0 %v460
        %v539 = vpop.f32.mrb[0].mxu0
        %v540 = vadd.f32 0.0, %v539
        %v541 = vpop.f32.mrb[0].mxu0
        %v542 = vadd.f32 0.0, %v541
        %v543 = vpop.f32.mrb[0].mxu0
        %v544 = vadd.f32 0.0, %v543
        %v545 = vpop.f32.mrb[0].mxu0
        %v546 = vadd.f32 0.0, %v545
        %547 = vdwg.mxu0
        %v560 = vunpack.c.l.b16 %v370
        %v561 = vunpack.c.h.b16 %v370
        %v562 = vunpack.c.l.b16 %v371
        %v563 = vunpack.c.h.b16 %v371
        %v564 = vunpack.c.l.b16 %v372
        %v565 = vunpack.c.h.b16 %v372
        %v566 = vunpack.c.l.b16 %v373
        %v567 = vunpack.c.h.b16 %v373
        %v568 = vunpack.c.l.b16 %v374
        %v569 = vunpack.c.h.b16 %v374
        %v570 = vunpack.c.l.b16 %v375
        %v571 = vunpack.c.h.b16 %v375
        %v572 = vunpack.c.l.b16 %v376
        %v573 = vunpack.c.h.b16 %v376
        %v574 = vunpack.c.l.b16 %v377
        %v575 = vunpack.c.h.b16 %v377
        %v576 = vunpack.c.l.b16 %v378
        %v577 = vunpack.c.h.b16 %v378
        %v578 = vunpack.c.l.b16 %v379
        %v579 = vunpack.c.h.b16 %v379
        %v580 = vunpack.c.l.b16 %v380
        %v581 = vunpack.c.h.b16 %v380
        %v582 = vunpack.c.l.b16 %v381
        %v583 = vunpack.c.h.b16 %v381
        %v584 = vpack.c.b16 %v564, %v560
        %v585 = vpack.c.b16 %v565, %v561
        %v586 = vpack.c.b16 %v566, %v562
        %v587 = vpack.c.b16 %v567, %v563
        %v588 = vpack.c.b16 %v572, %v568
        %v589 = vpack.c.b16 %v573, %v569
        %v590 = vpack.c.b16 %v574, %v570
        %v591 = vpack.c.b16 %v575, %v571
        %v592 = vpack.c.b16 %v580, %v576
        %v593 = vpack.c.b16 %v581, %v577
        %v594 = vpack.c.b16 %v582, %v578
        %v595 = vpack.c.b16 %v583, %v579
        %v609 = vsel %vm458, %v369, 0
        %611 = vmatprep.subr.bf16.mxu0 %v585
        %612 = vmatpush1.bf16.msra.mxu0 %v584
        %613 = vmatprep.subr.bf16.mxu0 %v589
        %614 = vmatpush1.bf16.msra.mxu0 %v588
        %615 = vmatprep.subr.bf16.mxu0 %v593
        %616 = vmatpush1.bf16.msra.mxu0 %v592
        %617 = vmatprep.subr.bf16.mxu0 0
        %618 = vmatpush1.bf16.msra.mxu0 0
        %619 = vmatprep.subr.bf16.mxu0 0
        %620 = vmatpush1.bf16.msra.mxu0 0
        %621 = vmatprep.subr.bf16.mxu0 0
        %622 = vmatpush1.bf16.msra.mxu0 0
        %623 = vmatprep.subr.bf16.mxu0 0
        %624 = vmatpush1.bf16.msra.mxu0 0
        %625 = vmatprep.subr.bf16.mxu0 0
        %626 = vmatpush1.bf16.msra.mxu0 0
        %627 = vmatprep.subr.bf16.mxu0 0
        %628 = vmatpush1.bf16.msra.mxu0 0
        %629 = vmatprep.subr.bf16.mxu0 0
        %630 = vmatpush1.bf16.msra.mxu0 0
        %631 = vmatprep.subr.bf16.mxu0 0
        %632 = vmatpush1.bf16.msra.mxu0 0
        %633 = vmatprep.subr.bf16.mxu0 0
        %634 = vmatpush1.bf16.msra.mxu0 0
        %635 = vmatprep.subr.bf16.mxu0 0
        %636 = vmatpush1.bf16.msra.mxu0 0
        %637 = vmatprep.subr.bf16.mxu0 0
        %638 = vmatpush1.bf16.msra.mxu0 0
        %639 = vmatprep.subr.bf16.mxu0 0
        %640 = vmatpush1.bf16.msra.mxu0 0
        %641 = vmatprep.subr.bf16.mxu0 0
        %642 = vmatpush1.bf16.msra.mxu0 0
        %643 = vmatprep.mubr.bf16.mxu0 0
        %644 = vmatmul.mubr.bf16.gmra.mrb[0].mxu0 %v609
        %v645 = vpop.f32.mrb[0].mxu0
        %v646 = vadd.f32 %v497, %v645
        %v647 = vpop.f32.mrb[0].mxu0
        %v648 = vadd.f32 %v499, %v647
        %v649 = vpop.f32.mrb[0].mxu0
        %v650 = vadd.f32 %v501, %v649
        %v651 = vpop.f32.mrb[0].mxu0
        %v652 = vadd.f32 %v503, %v651
        %653 = vdwg.mxu0
        %654 = vmatprep.subr.bf16.mxu0 %v587
        %655 = vmatpush1.bf16.msra.mxu0 %v586
        %656 = vmatprep.subr.bf16.mxu0 %v591
        %657 = vmatpush1.bf16.msra.mxu0 %v590
        %658 = vmatprep.subr.bf16.mxu0 %v595
        %659 = vmatpush1.bf16.msra.mxu0 %v594
        %660 = vmatprep.subr.bf16.mxu0 0
        %661 = vmatpush1.bf16.msra.mxu0 0
        %662 = vmatprep.subr.bf16.mxu0 0
        %663 = vmatpush1.bf16.msra.mxu0 0
        %664 = vmatprep.subr.bf16.mxu0 0
        %665 = vmatpush1.bf16.msra.mxu0 0
        %666 = vmatprep.subr.bf16.mxu0 0
        %667 = vmatpush1.bf16.msra.mxu0 0
        %668 = vmatprep.subr.bf16.mxu0 0
        %669 = vmatpush1.bf16.msra.mxu0 0
        %670 = vmatprep.subr.bf16.mxu0 0
        %671 = vmatpush1.bf16.msra.mxu0 0
        %672 = vmatprep.subr.bf16.mxu0 0
        %673 = vmatpush1.bf16.msra.mxu0 0
        %674 = vmatprep.subr.bf16.mxu0 0
        %675 = vmatpush1.bf16.msra.mxu0 0
        %676 = vmatprep.subr.bf16.mxu0 0
        %677 = vmatpush1.bf16.msra.mxu0 0
        %678 = vmatprep.subr.bf16.mxu0 0
        %679 = vmatpush1.bf16.msra.mxu0 0
        %680 = vmatprep.subr.bf16.mxu0 0
        %681 = vmatpush1.bf16.msra.mxu0 0
        %682 = vmatprep.subr.bf16.mxu0 0
        %683 = vmatpush1.bf16.msra.mxu0 0
        %684 = vmatprep.subr.bf16.mxu0 0
        %685 = vmatpush1.bf16.msra.mxu0 0
        %686 = vmatprep.mubr.bf16.mxu0 0
        %687 = vmatmul.mubr.bf16.gmra.mrb[0].mxu0 %v609
        %v688 = vpop.f32.mrb[0].mxu0
        %v689 = vadd.f32 %v540, %v688
        %v690 = vpop.f32.mrb[0].mxu0
        %v691 = vadd.f32 %v542, %v690
        %v692 = vpop.f32.mrb[0].mxu0
        %v693 = vadd.f32 %v544, %v692
        %v694 = vpop.f32.mrb[0].mxu0
        %v695 = vadd.f32 %v546, %v694
        %696 = vdwg.mxu0
        %v697 = vld [vmem:[%s359 + $0x2] sm:$0xff]
        %v698 = vld [vmem:[%s359 + $0xa] sm:$0xff]
        %v699 = vpack.c.bf16 %v698, %v697
        %s700 = scalar_lea.vmem %s1, 192
        %v701 = vld [vmem:[%s700] sm:$0xff]
        %v702 = vld [vmem:[%s700 + $0x8] sm:$0xff]
        %v703 = vld [vmem:[%s700 + $0x10] sm:$0xff]
        %v704 = vld [vmem:[%s700 + $0x18] sm:$0xff]
        %v705 = vld [vmem:[%s700 + $0x20] sm:$0xff]
        %v706 = vld [vmem:[%s700 + $0x28] sm:$0xff]
        %v707 = vld [vmem:[%s700 + $0x30] sm:$0xff]
        %v708 = vld [vmem:[%s700 + $0x38] sm:$0xff]
        %v709 = vld [vmem:[%s700 + $0x40] sm:$0xff]
        %v710 = vld [vmem:[%s700 + $0x48] sm:$0xff]
        %v711 = vld [vmem:[%s700 + $0x50] sm:$0xff]
        %v712 = vld [vmem:[%s700 + $0x58] sm:$0xff]
        %v725 = vunpack.c.l.b16 %v701
        %v726 = vunpack.c.h.b16 %v701
        %v727 = vunpack.c.l.b16 %v702
        %v728 = vunpack.c.h.b16 %v702
        %v729 = vunpack.c.l.b16 %v703
        %v730 = vunpack.c.h.b16 %v703
        %v731 = vunpack.c.l.b16 %v704
        %v732 = vunpack.c.h.b16 %v704
        %v733 = vunpack.c.l.b16 %v705
        %v734 = vunpack.c.h.b16 %v705
        %v735 = vunpack.c.l.b16 %v706
        %v736 = vunpack.c.h.b16 %v706
        %v737 = vunpack.c.l.b16 %v707
        %v738 = vunpack.c.h.b16 %v707
        %v739 = vunpack.c.l.b16 %v708
        %v740 = vunpack.c.h.b16 %v708
        %v741 = vunpack.c.l.b16 %v709
        %v742 = vunpack.c.h.b16 %v709
        %v743 = vunpack.c.l.b16 %v710
        %v744 = vunpack.c.h.b16 %v710
        %v745 = vunpack.c.l.b16 %v711
        %v746 = vunpack.c.h.b16 %v711
        %v747 = vunpack.c.l.b16 %v712
        %v748 = vunpack.c.h.b16 %v712
        %v749 = vpack.c.b16 %v729, %v725
        %v750 = vpack.c.b16 %v730, %v726
        %v751 = vpack.c.b16 %v731, %v727
        %v752 = vpack.c.b16 %v732, %v728
        %v753 = vpack.c.b16 %v737, %v733
        %v754 = vpack.c.b16 %v738, %v734
        %v755 = vpack.c.b16 %v739, %v735
        %v756 = vpack.c.b16 %v740, %v736
        %v757 = vpack.c.b16 %v745, %v741
        %v758 = vpack.c.b16 %v746, %v742
        %v759 = vpack.c.b16 %v747, %v743
        %v760 = vpack.c.b16 %v748, %v744
        %v774 = vsel %vm458, %v699, 0
        %776 = vmatprep.subr.bf16.mxu0 %v750
        %777 = vmatpush1.bf16.msra.mxu0 %v749
        %778 = vmatprep.subr.bf16.mxu0 %v754
        %779 = vmatpush1.bf16.msra.mxu0 %v753
        %780 = vmatprep.subr.bf16.mxu0 %v758
        %781 = vmatpush1.bf16.msra.mxu0 %v757
        %782 = vmatprep.subr.bf16.mxu0 0
        %783 = vmatpush1.bf16.msra.mxu0 0
        %784 = vmatprep.subr.bf16.mxu0 0
        %785 = vmatpush1.bf16.msra.mxu0 0
        %786 = vmatprep.subr.bf16.mxu0 0
        %787 = vmatpush1.bf16.msra.mxu0 0
        %788 = vmatprep.subr.bf16.mxu0 0
        %789 = vmatpush1.bf16.msra.mxu0 0
        %790 = vmatprep.subr.bf16.mxu0 0
        %791 = vmatpush1.bf16.msra.mxu0 0
        %792 = vmatprep.subr.bf16.mxu0 0
        %793 = vmatpush1.bf16.msra.mxu0 0
        %794 = vmatprep.subr.bf16.mxu0 0
        %795 = vmatpush1.bf16.msra.mxu0 0
        %796 = vmatprep.subr.bf16.mxu0 0
        %797 = vmatpush1.bf16.msra.mxu0 0
        %798 = vmatprep.subr.bf16.mxu0 0
        %799 = vmatpush1.bf16.msra.mxu0 0
        %800 = vmatprep.subr.bf16.mxu0 0
        %801 = vmatpush1.bf16.msra.mxu0 0
        %802 = vmatprep.subr.bf16.mxu0 0
        %803 = vmatpush1.bf16.msra.mxu0 0
        %804 = vmatprep.subr.bf16.mxu0 0
        %805 = vmatpush1.bf16.msra.mxu0 0
        %806 = vmatprep.subr.bf16.mxu0 0
        %807 = vmatpush1.bf16.msra.mxu0 0
        %808 = vmatprep.mubr.bf16.mxu0 0
        %809 = vmatmul.mubr.bf16.gmra.mrb[0].mxu0 %v774
        %v810 = vpop.f32.mrb[0].mxu0
        %v811 = vadd.f32 0.0, %v810
        %v812 = vpop.f32.mrb[0].mxu0
        %v813 = vadd.f32 0.0, %v812
        %v814 = vpop.f32.mrb[0].mxu0
        %v815 = vadd.f32 0.0, %v814
        %v816 = vpop.f32.mrb[0].mxu0
        %v817 = vadd.f32 0.0, %v816
        %818 = vdwg.mxu0
        %819 = vmatprep.subr.bf16.mxu0 %v752
        %820 = vmatpush1.bf16.msra.mxu0 %v751
        %821 = vmatprep.subr.bf16.mxu0 %v756
        %822 = vmatpush1.bf16.msra.mxu0 %v755
        %823 = vmatprep.subr.bf16.mxu0 %v760
        %824 = vmatpush1.bf16.msra.mxu0 %v759
        %825 = vmatprep.subr.bf16.mxu0 0
        %826 = vmatpush1.bf16.msra.mxu0 0
        %827 = vmatprep.subr.bf16.mxu0 0
        %828 = vmatpush1.bf16.msra.mxu0 0
        %829 = vmatprep.subr.bf16.mxu0 0
        %830 = vmatpush1.bf16.msra.mxu0 0
        %831 = vmatprep.subr.bf16.mxu0 0
        %832 = vmatpush1.bf16.msra.mxu0 0
        %833 = vmatprep.subr.bf16.mxu0 0
        %834 = vmatpush1.bf16.msra.mxu0 0
        %835 = vmatprep.subr.bf16.mxu0 0
        %836 = vmatpush1.bf16.msra.mxu0 0
        %837 = vmatprep.subr.bf16.mxu0 0
        %838 = vmatpush1.bf16.msra.mxu0 0
        %839 = vmatprep.subr.bf16.mxu0 0
        %840 = vmatpush1.bf16.msra.mxu0 0
        %841 = vmatprep.subr.bf16.mxu0 0
        %842 = vmatpush1.bf16.msra.mxu0 0
        %843 = vmatprep.subr.bf16.mxu0 0
        %844 = vmatpush1.bf16.msra.mxu0 0
        %845 = vmatprep.subr.bf16.mxu0 0
        %846 = vmatpush1.bf16.msra.mxu0 0
        %847 = vmatprep.subr.bf16.mxu0 0
        %848 = vmatpush1.bf16.msra.mxu0 0
        %849 = vmatprep.subr.bf16.mxu0 0
        %850 = vmatpush1.bf16.msra.mxu0 0
        %851 = vmatprep.mubr.bf16.mxu0 0
        %852 = vmatmul.mubr.bf16.gmra.mrb[0].mxu0 %v774
        %v853 = vpop.f32.mrb[0].mxu0
        %v854 = vadd.f32 0.0, %v853
        %v855 = vpop.f32.mrb[0].mxu0
        %v856 = vadd.f32 0.0, %v855
        %v857 = vpop.f32.mrb[0].mxu0
        %v858 = vadd.f32 0.0, %v857
        %v859 = vpop.f32.mrb[0].mxu0
        %v860 = vadd.f32 0.0, %v859
        %861 = vdwg.mxu0
        %v862 = vadd.f32 %v646, %v811
        %v863 = vadd.f32 %v648, %v813
        %v864 = vadd.f32 %v689, %v854
        %v865 = vadd.f32 %v691, %v856
        %v866 = vadd.f32 %v650, %v815
        %v867 = vadd.f32 %v652, %v817
        %v868 = vadd.f32 %v693, %v858
        %v869 = vadd.f32 %v695, %v860
        %v870 = vld [vmem:[%s2] sm:$0xf]
        %v872 = vlaneseq
        %v873 = vshrl.u32 %v872, 7
        %v874 = vsub.s32 0, %v873
        %v875 = vrot.slane %v870, %v874
        %v876 = vlaneseq
        %v877 = vshrl.u32 %v876, 7
        %v878 = vsub.s32 1, %v877
        %v879 = vrot.slane %v870, %v878
        %v880 = vlaneseq
        %v881 = vshrl.u32 %v880, 7
        %v882 = vsub.s32 2, %v881
        %v883 = vrot.slane %v870, %v882
        %v884 = vlaneseq
        %v885 = vshrl.u32 %v884, 7
        %v886 = vsub.s32 3, %v885
        %v887 = vrot.slane %v870, %v886
        %v892 = vadd.f32 %v862, %v875
        %v893 = vadd.f32 %v863, %v879
        %v894 = vadd.f32 %v864, %v883
        %v895 = vadd.f32 %v865, %v887
        %v896 = vadd.f32 %v866, %v875
        %v897 = vadd.f32 %v867, %v879
        %v898 = vadd.f32 %v868, %v883
        %v899 = vadd.f32 %v869, %v887
        %v900 = vmax.f32 %v892, 0.0
        %v901 = vmax.f32 %v893, 0.0
        %v902 = vmax.f32 %v894, 0.0
        %v903 = vmax.f32 %v895, 0.0
        %v904 = vmax.f32 %v896, 0.0
        %v905 = vmax.f32 %v897, 0.0
        %v906 = vmax.f32 %v898, 0.0
        %v907 = vmax.f32 %v899, 0.0
        %v908 = vmax.f32 %v900, %v902
        %v909 = vmax.f32 %v901, %v903
        %v910 = vmax.f32 %v904, %v906
        %v911 = vmax.f32 %v905, %v907
        %912 = vst [vmem:[#allocation4] sm:$0xff] %v908
        %913 = vst [vmem:[#allocation4 + $0x8] sm:$0xff] %v909
        %914 = vst [vmem:[#allocation4 + $0x10] sm:$0xff] %v910
        %915 = vst [vmem:[#allocation4 + $0x18] sm:$0xff] %v911
        %v916 = vld [vmem:[#allocation4] ss:$8 sm:$0x3]
        %s917 = scalar_lea.vmem [#allocation4], 1
        %v918 = vld [vmem:[%s917] ss:$8 sm:$0x3]
        %v919 = vmax.f32 %v916, %v918
        %s920 = scalar_lea.vmem [#allocation4], 2
        %v921 = vld [vmem:[%s920] ss:$8 sm:$0x3]
        %s922 = scalar_lea.vmem [#allocation4], 3
        %v923 = vld [vmem:[%s922] ss:$8 sm:$0x3]
        %v924 = vmax.f32 %v921, %v923
        %s925 = scalar_lea.vmem [#allocation4], 4
        %v926 = vld [vmem:[%s925] ss:$8 sm:$0x3]
        %s927 = scalar_lea.vmem [#allocation4], 5
        %v928 = vld [vmem:[%s927] ss:$8 sm:$0x3]
        %v929 = vmax.f32 %v926, %v928
        %s930 = scalar_lea.vmem [#allocation4], 6
        %v931 = vld [vmem:[%s930] ss:$8 sm:$0x3]
        %s932 = scalar_lea.vmem [#allocation4], 7
        %v933 = vld [vmem:[%s932] ss:$8 sm:$0x3]
        %v934 = vmax.f32 %v931, %v933
        %s935 = scalar_lea.vmem [#allocation4], 16
        %v936 = vld [vmem:[%s935] ss:$8 sm:$0x3]
        %s937 = scalar_lea.vmem [#allocation4], 17
        %v938 = vld [vmem:[%s937] ss:$8 sm:$0x3]
        %v939 = vmax.f32 %v936, %v938
        %s940 = scalar_lea.vmem [#allocation4], 18
        %v941 = vld [vmem:[%s940] ss:$8 sm:$0x3]
        %s942 = scalar_lea.vmem [#allocation4], 19
        %v943 = vld [vmem:[%s942] ss:$8 sm:$0x3]
        %v944 = vmax.f32 %v941, %v943
        %s945 = scalar_lea.vmem [#allocation4], 20
        %v946 = vld [vmem:[%s945] ss:$8 sm:$0x3]
        %s947 = scalar_lea.vmem [#allocation4], 21
        %v948 = vld [vmem:[%s947] ss:$8 sm:$0x3]
        %v949 = vmax.f32 %v946, %v948
        %s950 = scalar_lea.vmem [#allocation4], 22
        %v951 = vld [vmem:[%s950] ss:$8 sm:$0x3]
        %s952 = scalar_lea.vmem [#allocation4], 23
        %v953 = vld [vmem:[%s952] ss:$8 sm:$0x3]
        %v954 = vmax.f32 %v951, %v953
        %v955 = vlaneseq
        %vm956 = vcmp.ge.s32.totalorder %v955, 0
        %vm957 = vcmp.lt.s32.totalorder %v955, 256
        %vm958 = vmand %vm956, %vm957
        %s959 = scalar_lea.vmem [#allocation2], 1
        %960 = vst.msk [vmem:[%s959] ss:$8 sm:$0x3] %vm958, %v919
        %961 = vst.msk [vmem:[%s959] ss:$8 sm:$0x0] %vm958, %v919
        %s962 = scalar_lea.vmem [#allocation2], 2
        %963 = vst.msk [vmem:[%s962] ss:$8 sm:$0x3] %vm958, %v924
        %964 = vst.msk [vmem:[%s962] ss:$8 sm:$0x0] %vm958, %v924
        %s965 = scalar_lea.vmem [#allocation2], 3
        %966 = vst.msk [vmem:[%s965] ss:$8 sm:$0x3] %vm958, %v929
        %967 = vst.msk [vmem:[%s965] ss:$8 sm:$0x0] %vm958, %v929
        %s968 = scalar_lea.vmem [#allocation2], 4
        %969 = vst.msk [vmem:[%s968] ss:$8 sm:$0x3] %vm958, %v934
        %970 = vst.msk [vmem:[%s968] ss:$8 sm:$0x0] %vm958, %v934
        %s971 = scalar_lea.vmem [#allocation2], 5
        %972 = vst.msk [vmem:[%s971] ss:$8 sm:$0x3] %vm958, %v939
        %973 = vst.msk [vmem:[%s971] ss:$8 sm:$0x0] %vm958, %v939
        %s974 = scalar_lea.vmem [#allocation2], 6
        %975 = vst.msk [vmem:[%s974] ss:$8 sm:$0x3] %vm958, %v944
        %976 = vst.msk [vmem:[%s974] ss:$8 sm:$0x0] %vm958, %v944
        %s977 = scalar_lea.vmem [#allocation2], 7
        %978 = vst.msk [vmem:[%s977] ss:$8 sm:$0x3] %vm958, %v949
        %979 = vst.msk [vmem:[%s977] ss:$8 sm:$0x0] %vm958, %v949
        %s980 = scalar_lea.vmem [#allocation2], 16
        %981 = vst.msk [vmem:[%s980] ss:$8 sm:$0x3] %vm958, %v954
        %982 = vst.msk [vmem:[%s980] ss:$8 sm:$0x0] %vm958, %v954
        %v983 = vld [vmem:[#allocation2] sm:$0xff]
        %v984 = vld [vmem:[#allocation2 + $0x8] sm:$0xff]
        %v985 = vpack.c.bf16 %v983, %v983
        %v986 = vpack.c.bf16 %v984, %v984
        %v987 = vld [vmem:[#allocation5] sm:$0xff]
        %v988 = vld [vmem:[#allocation5 + $0x8] sm:$0xff]
        %v989 = vld [vmem:[#allocation5 + $0x10] sm:$0xff]
        %v990 = vld [vmem:[#allocation5 + $0x18] sm:$0xff]
        %v991 = vld [vmem:[#allocation5 + $0x20] sm:$0xff]
        %v992 = vld [vmem:[#allocation5 + $0x28] sm:$0xff]
        %v993 = vld [vmem:[#allocation5 + $0x30] sm:$0xff]
        %v994 = vld [vmem:[#allocation5 + $0x38] sm:$0xff]
        %v995 = vld [vmem:[#allocation5 + $0x40] sm:$0xff]
        %v996 = vld [vmem:[#allocation5 + $0x48] sm:$0xff]
        %v997 = vld [vmem:[#allocation5 + $0x50] sm:$0xff]
        %v998 = vld [vmem:[#allocation5 + $0x58] sm:$0xff]
        %v999 = vld [vmem:[#allocation5 + $0x60] sm:$0xff]
        %v1000 = vld [vmem:[#allocation5 + $0x68] sm:$0xff]
        %v1001 = vld [vmem:[#allocation5 + $0x70] sm:$0xff]
        %v1002 = vld [vmem:[#allocation5 + $0x78] sm:$0xff]
        %v1003 = vld [vmem:[#allocation5 + $0x80] sm:$0xff]
        %v1004 = vld [vmem:[#allocation5 + $0x88] sm:$0xff]
        %v1005 = vld [vmem:[#allocation5 + $0x90] sm:$0xff]
        %v1006 = vld [vmem:[#allocation5 + $0x98] sm:$0xff]
        %v1007 = vld [vmem:[#allocation5 + $0xa0] sm:$0xff]
        %v1008 = vld [vmem:[#allocation5 + $0xa8] sm:$0xff]
        %v1009 = vld [vmem:[#allocation5 + $0xb0] sm:$0xff]
        %v1010 = vld [vmem:[#allocation5 + $0xb8] sm:$0xff]
        %v1011 = vld [vmem:[#allocation5 + $0xc0] sm:$0xff]
        %v1012 = vld [vmem:[#allocation5 + $0xc8] sm:$0xff]
        %v1013 = vld [vmem:[#allocation5 + $0xd0] sm:$0xff]
        %v1014 = vld [vmem:[#allocation5 + $0xd8] sm:$0xff]
        %v1015 = vld [vmem:[#allocation5 + $0xe0] sm:$0xff]
        %v1016 = vld [vmem:[#allocation5 + $0xe8] sm:$0xff]
        %v1017 = vld [vmem:[#allocation5 + $0xf0] sm:$0xff]
        %v1018 = vld [vmem:[#allocation5 + $0xf8] sm:$0xff]
        %v1019 = vld [vmem:[#allocation5 + $0x100] sm:$0xff]
        %v1020 = vld [vmem:[#allocation5 + $0x108] sm:$0xff]
        %v1021 = vld [vmem:[#allocation5 + $0x110] sm:$0xff]
        %v1022 = vld [vmem:[#allocation5 + $0x118] sm:$0xff]
        %v1023 = vld [vmem:[#allocation5 + $0x120] sm:$0xff]
        %v1024 = vld [vmem:[#allocation5 + $0x128] sm:$0xff]
        %v1025 = vld [vmem:[#allocation5 + $0x130] sm:$0xff]
        %v1026 = vld [vmem:[#allocation5 + $0x138] sm:$0xff]
        %v1027 = vld [vmem:[#allocation5 + $0x140] sm:$0xff]
        %v1028 = vld [vmem:[#allocation5 + $0x148] sm:$0xff]
        %v1029 = vld [vmem:[#allocation5 + $0x150] sm:$0xff]
        %v1030 = vld [vmem:[#allocation5 + $0x158] sm:$0xff]
        %v1031 = vld [vmem:[#allocation5 + $0x160] sm:$0xff]
        %v1032 = vld [vmem:[#allocation5 + $0x168] sm:$0xff]
        %v1033 = vld [vmem:[#allocation5 + $0x170] sm:$0xff]
        %v1034 = vld [vmem:[#allocation5 + $0x178] sm:$0xff]
        %v1035 = vld [vmem:[#allocation5 + $0x180] sm:$0xff]
        %v1036 = vld [vmem:[#allocation5 + $0x188] sm:$0xff]
        %v1037 = vld [vmem:[#allocation5 + $0x190] sm:$0xff]
        %v1038 = vld [vmem:[#allocation5 + $0x198] sm:$0xff]
        %v1039 = vld [vmem:[#allocation5 + $0x1a0] sm:$0xff]
        %v1040 = vld [vmem:[#allocation5 + $0x1a8] sm:$0xff]
        %v1041 = vld [vmem:[#allocation5 + $0x1b0] sm:$0xff]
        %v1042 = vld [vmem:[#allocation5 + $0x1b8] sm:$0xff]
        %v1043 = vld [vmem:[#allocation5 + $0x1c0] sm:$0xff]
        %v1044 = vld [vmem:[#allocation5 + $0x1c8] sm:$0xff]
        %v1045 = vld [vmem:[#allocation5 + $0x1d0] sm:$0xff]
        %v1046 = vld [vmem:[#allocation5 + $0x1d8] sm:$0xff]
        %v1047 = vld [vmem:[#allocation5 + $0x1e0] sm:$0xff]
        %v1048 = vld [vmem:[#allocation5 + $0x1e8] sm:$0xff]
        %v1049 = vld [vmem:[#allocation5 + $0x1f0] sm:$0xff]
        %v1050 = vld [vmem:[#allocation5 + $0x1f8] sm:$0xff]
        %v1051 = vld [vmem:[#allocation2] sm:$0xfe]
        %v1052 = vld [vmem:[#allocation2 + $0x8] sm:$0xfe]
        %v1053 = vld [vmem:[#allocation2 + $0x10] sm:$0x1]
        %v1054 = vld [vmem:[#allocation2 + $0x18] sm:$0x1]
        %v1055 = vpack.c.bf16 %v1053, %v1051
        %v1056 = vpack.c.bf16 %v1054, %v1052
        %s1057 = scalar_lea.vmem [#allocation5], 512
        %v1058 = vld [vmem:[%s1057] sm:$0xff]
        %v1059 = vld [vmem:[%s1057 + $0x8] sm:$0xff]
        %v1060 = vld [vmem:[%s1057 + $0x10] sm:$0xff]
        %v1061 = vld [vmem:[%s1057 + $0x18] sm:$0xff]
        %v1062 = vld [vmem:[%s1057 + $0x20] sm:$0xff]
        %v1063 = vld [vmem:[%s1057 + $0x28] sm:$0xff]
        %v1064 = vld [vmem:[%s1057 + $0x30] sm:$0xff]
        %v1065 = vld [vmem:[%s1057 + $0x38] sm:$0xff]
        %v1066 = vld [vmem:[%s1057 + $0x40] sm:$0xff]
        %v1067 = vld [vmem:[%s1057 + $0x48] sm:$0xff]
        %v1068 = vld [vmem:[%s1057 + $0x50] sm:$0xff]
        %v1069 = vld [vmem:[%s1057 + $0x58] sm:$0xff]
        %v1070 = vld [vmem:[%s1057 + $0x60] sm:$0xff]
        %v1071 = vld [vmem:[%s1057 + $0x68] sm:$0xff]
        %v1072 = vld [vmem:[%s1057 + $0x70] sm:$0xff]
        %v1073 = vld [vmem:[%s1057 + $0x78] sm:$0xff]
        %v1074 = vld [vmem:[%s1057 + $0x80] sm:$0xff]
        %v1075 = vld [vmem:[%s1057 + $0x88] sm:$0xff]
        %v1076 = vld [vmem:[%s1057 + $0x90] sm:$0xff]
        %v1077 = vld [vmem:[%s1057 + $0x98] sm:$0xff]
        %v1078 = vld [vmem:[%s1057 + $0xa0] sm:$0xff]
        %v1079 = vld [vmem:[%s1057 + $0xa8] sm:$0xff]
        %v1080 = vld [vmem:[%s1057 + $0xb0] sm:$0xff]
        %v1081 = vld [vmem:[%s1057 + $0xb8] sm:$0xff]
        %v1082 = vld [vmem:[%s1057 + $0xc0] sm:$0xff]
        %v1083 = vld [vmem:[%s1057 + $0xc8] sm:$0xff]
        %v1084 = vld [vmem:[%s1057 + $0xd0] sm:$0xff]
        %v1085 = vld [vmem:[%s1057 + $0xd8] sm:$0xff]
        %v1086 = vld [vmem:[%s1057 + $0xe0] sm:$0xff]
        %v1087 = vld [vmem:[%s1057 + $0xe8] sm:$0xff]
        %v1088 = vld [vmem:[%s1057 + $0xf0] sm:$0xff]
        %v1089 = vld [vmem:[%s1057 + $0xf8] sm:$0xff]
        %v1090 = vld [vmem:[%s1057 + $0x100] sm:$0xff]
        %v1091 = vld [vmem:[%s1057 + $0x108] sm:$0xff]
        %v1092 = vld [vmem:[%s1057 + $0x110] sm:$0xff]
        %v1093 = vld [vmem:[%s1057 + $0x118] sm:$0xff]
        %v1094 = vld [vmem:[%s1057 + $0x120] sm:$0xff]
        %v1095 = vld [vmem:[%s1057 + $0x128] sm:$0xff]
        %v1096 = vld [vmem:[%s1057 + $0x130] sm:$0xff]
        %v1097 = vld [vmem:[%s1057 + $0x138] sm:$0xff]
        %v1098 = vld [vmem:[%s1057 + $0x140] sm:$0xff]
        %v1099 = vld [vmem:[%s1057 + $0x148] sm:$0xff]
        %v1100 = vld [vmem:[%s1057 + $0x150] sm:$0xff]
        %v1101 = vld [vmem:[%s1057 + $0x158] sm:$0xff]
        %v1102 = vld [vmem:[%s1057 + $0x160] sm:$0xff]
        %v1103 = vld [vmem:[%s1057 + $0x168] sm:$0xff]
        %v1104 = vld [vmem:[%s1057 + $0x170] sm:$0xff]
        %v1105 = vld [vmem:[%s1057 + $0x178] sm:$0xff]
        %v1106 = vld [vmem:[%s1057 + $0x180] sm:$0xff]
        %v1107 = vld [vmem:[%s1057 + $0x188] sm:$0xff]
        %v1108 = vld [vmem:[%s1057 + $0x190] sm:$0xff]
        %v1109 = vld [vmem:[%s1057 + $0x198] sm:$0xff]
        %v1110 = vld [vmem:[%s1057 + $0x1a0] sm:$0xff]
        %v1111 = vld [vmem:[%s1057 + $0x1a8] sm:$0xff]
        %v1112 = vld [vmem:[%s1057 + $0x1b0] sm:$0xff]
        %v1113 = vld [vmem:[%s1057 + $0x1b8] sm:$0xff]
        %v1114 = vld [vmem:[%s1057 + $0x1c0] sm:$0xff]
        %v1115 = vld [vmem:[%s1057 + $0x1c8] sm:$0xff]
        %v1116 = vld [vmem:[%s1057 + $0x1d0] sm:$0xff]
        %v1117 = vld [vmem:[%s1057 + $0x1d8] sm:$0xff]
        %v1118 = vld [vmem:[%s1057 + $0x1e0] sm:$0xff]
        %v1119 = vld [vmem:[%s1057 + $0x1e8] sm:$0xff]
        %v1120 = vld [vmem:[%s1057 + $0x1f0] sm:$0xff]
        %v1121 = vld [vmem:[%s1057 + $0x1f8] sm:$0xff]
        %v1123 = vshrl.u32 %v1055, 16
        %v1125 = vshll.u32 %v1055, 16
        %v1127 = vrot.slane %v1125, 1
        %v1128 = vor.u32 %v1123, %v1127
        %v1130 = vshrl.u32 %v1056, 16
        %v1132 = vshll.u32 %v1056, 16
        %v1134 = vrot.slane %v1132, 1
        %v1135 = vor.u32 %v1130, %v1134
        %v1202 = vunpack.c.l.b16 %v1058
        %v1203 = vunpack.c.h.b16 %v1058
        %v1204 = vunpack.c.l.b16 %v1059
        %v1205 = vunpack.c.h.b16 %v1059
        %v1206 = vunpack.c.l.b16 %v1060
        %v1207 = vunpack.c.h.b16 %v1060
        %v1208 = vunpack.c.l.b16 %v1061
        %v1209 = vunpack.c.h.b16 %v1061
        %v1210 = vunpack.c.l.b16 %v1062
        %v1211 = vunpack.c.h.b16 %v1062
        %v1212 = vunpack.c.l.b16 %v1063
        %v1213 = vunpack.c.h.b16 %v1063
        %v1214 = vunpack.c.l.b16 %v1064
        %v1215 = vunpack.c.h.b16 %v1064
        %v1216 = vunpack.c.l.b16 %v1065
        %v1217 = vunpack.c.h.b16 %v1065
        %v1218 = vunpack.c.l.b16 %v1066
        %v1219 = vunpack.c.h.b16 %v1066
        %v1220 = vunpack.c.l.b16 %v1067
        %v1221 = vunpack.c.h.b16 %v1067
        %v1222 = vunpack.c.l.b16 %v1068
        %v1223 = vunpack.c.h.b16 %v1068
        %v1224 = vunpack.c.l.b16 %v1069
        %v1225 = vunpack.c.h.b16 %v1069
        %v1226 = vunpack.c.l.b16 %v1070
        %v1227 = vunpack.c.h.b16 %v1070
        %v1228 = vunpack.c.l.b16 %v1071
        %v1229 = vunpack.c.h.b16 %v1071
        %v1230 = vunpack.c.l.b16 %v1072
        %v1231 = vunpack.c.h.b16 %v1072
        %v1232 = vunpack.c.l.b16 %v1073
        %v1233 = vunpack.c.h.b16 %v1073
        %v1234 = vunpack.c.l.b16 %v1074
        %v1235 = vunpack.c.h.b16 %v1074
        %v1236 = vunpack.c.l.b16 %v1075
        %v1237 = vunpack.c.h.b16 %v1075
        %v1238 = vunpack.c.l.b16 %v1076
        %v1239 = vunpack.c.h.b16 %v1076
        %v1240 = vunpack.c.l.b16 %v1077
        %v1241 = vunpack.c.h.b16 %v1077
        %v1242 = vunpack.c.l.b16 %v1078
        %v1243 = vunpack.c.h.b16 %v1078
        %v1244 = vunpack.c.l.b16 %v1079
        %v1245 = vunpack.c.h.b16 %v1079
        %v1246 = vunpack.c.l.b16 %v1080
        %v1247 = vunpack.c.h.b16 %v1080
        %v1248 = vunpack.c.l.b16 %v1081
        %v1249 = vunpack.c.h.b16 %v1081
        %v1250 = vunpack.c.l.b16 %v1082
        %v1251 = vunpack.c.h.b16 %v1082
        %v1252 = vunpack.c.l.b16 %v1083
        %v1253 = vunpack.c.h.b16 %v1083
        %v1254 = vunpack.c.l.b16 %v1084
        %v1255 = vunpack.c.h.b16 %v1084
        %v1256 = vunpack.c.l.b16 %v1085
        %v1257 = vunpack.c.h.b16 %v1085
        %v1258 = vunpack.c.l.b16 %v1086
        %v1259 = vunpack.c.h.b16 %v1086
        %v1260 = vunpack.c.l.b16 %v1087
        %v1261 = vunpack.c.h.b16 %v1087
        %v1262 = vunpack.c.l.b16 %v1088
        %v1263 = vunpack.c.h.b16 %v1088
        %v1264 = vunpack.c.l.b16 %v1089
        %v1265 = vunpack.c.h.b16 %v1089
        %v1266 = vunpack.c.l.b16 %v1090
        %v1267 = vunpack.c.h.b16 %v1090
        %v1268 = vunpack.c.l.b16 %v1091
        %v1269 = vunpack.c.h.b16 %v1091
        %v1270 = vunpack.c.l.b16 %v1092
        %v1271 = vunpack.c.h.b16 %v1092
        %v1272 = vunpack.c.l.b16 %v1093
        %v1273 = vunpack.c.h.b16 %v1093
        %v1274 = vunpack.c.l.b16 %v1094
        %v1275 = vunpack.c.h.b16 %v1094
        %v1276 = vunpack.c.l.b16 %v1095
        %v1277 = vunpack.c.h.b16 %v1095
        %v1278 = vunpack.c.l.b16 %v1096
        %v1279 = vunpack.c.h.b16 %v1096
        %v1280 = vunpack.c.l.b16 %v1097
        %v1281 = vunpack.c.h.b16 %v1097
        %v1282 = vunpack.c.l.b16 %v1098
        %v1283 = vunpack.c.h.b16 %v1098
        %v1284 = vunpack.c.l.b16 %v1099
        %v1285 = vunpack.c.h.b16 %v1099
        %v1286 = vunpack.c.l.b16 %v1100
        %v1287 = vunpack.c.h.b16 %v1100
        %v1288 = vunpack.c.l.b16 %v1101
        %v1289 = vunpack.c.h.b16 %v1101
        %v1290 = vunpack.c.l.b16 %v1102
        %v1291 = vunpack.c.h.b16 %v1102
        %v1292 = vunpack.c.l.b16 %v1103
        %v1293 = vunpack.c.h.b16 %v1103
        %v1294 = vunpack.c.l.b16 %v1104
        %v1295 = vunpack.c.h.b16 %v1104
        %v1296 = vunpack.c.l.b16 %v1105
        %v1297 = vunpack.c.h.b16 %v1105
        %v1298 = vunpack.c.l.b16 %v1106
        %v1299 = vunpack.c.h.b16 %v1106
        %v1300 = vunpack.c.l.b16 %v1107
        %v1301 = vunpack.c.h.b16 %v1107
        %v1302 = vunpack.c.l.b16 %v1108
        %v1303 = vunpack.c.h.b16 %v1108
        %v1304 = vunpack.c.l.b16 %v1109
        %v1305 = vunpack.c.h.b16 %v1109
        %v1306 = vunpack.c.l.b16 %v1110
        %v1307 = vunpack.c.h.b16 %v1110
        %v1308 = vunpack.c.l.b16 %v1111
        %v1309 = vunpack.c.h.b16 %v1111
        %v1310 = vunpack.c.l.b16 %v1112
        %v1311 = vunpack.c.h.b16 %v1112
        %v1312 = vunpack.c.l.b16 %v1113
        %v1313 = vunpack.c.h.b16 %v1113
        %v1314 = vunpack.c.l.b16 %v1114
        %v1315 = vunpack.c.h.b16 %v1114
        %v1316 = vunpack.c.l.b16 %v1115
        %v1317 = vunpack.c.h.b16 %v1115
        %v1318 = vunpack.c.l.b16 %v1116
        %v1319 = vunpack.c.h.b16 %v1116
        %v1320 = vunpack.c.l.b16 %v1117
        %v1321 = vunpack.c.h.b16 %v1117
        %v1322 = vunpack.c.l.b16 %v1118
        %v1323 = vunpack.c.h.b16 %v1118
        %v1324 = vunpack.c.l.b16 %v1119
        %v1325 = vunpack.c.h.b16 %v1119
        %v1326 = vunpack.c.l.b16 %v1120
        %v1327 = vunpack.c.h.b16 %v1120
        %v1328 = vunpack.c.l.b16 %v1121
        %v1329 = vunpack.c.h.b16 %v1121
        %v1330 = vpack.c.b16 %v1206, %v1202
        %v1331 = vpack.c.b16 %v1207, %v1203
        %v1332 = vpack.c.b16 %v1208, %v1204
        %v1333 = vpack.c.b16 %v1209, %v1205
        %v1334 = vpack.c.b16 %v1214, %v1210
        %v1335 = vpack.c.b16 %v1215, %v1211
        %v1336 = vpack.c.b16 %v1216, %v1212
        %v1337 = vpack.c.b16 %v1217, %v1213
        %v1338 = vpack.c.b16 %v1222, %v1218
        %v1339 = vpack.c.b16 %v1223, %v1219
        %v1340 = vpack.c.b16 %v1224, %v1220
        %v1341 = vpack.c.b16 %v1225, %v1221
        %v1342 = vpack.c.b16 %v1230, %v1226
        %v1343 = vpack.c.b16 %v1231, %v1227
        %v1344 = vpack.c.b16 %v1232, %v1228
        %v1345 = vpack.c.b16 %v1233, %v1229
        %v1346 = vpack.c.b16 %v1238, %v1234
        %v1347 = vpack.c.b16 %v1239, %v1235
        %v1348 = vpack.c.b16 %v1240, %v1236
        %v1349 = vpack.c.b16 %v1241, %v1237
        %v1350 = vpack.c.b16 %v1246, %v1242
        %v1351 = vpack.c.b16 %v1247, %v1243
        %v1352 = vpack.c.b16 %v1248, %v1244
        %v1353 = vpack.c.b16 %v1249, %v1245
        %v1354 = vpack.c.b16 %v1254, %v1250
        %v1355 = vpack.c.b16 %v1255, %v1251
        %v1356 = vpack.c.b16 %v1256, %v1252
        %v1357 = vpack.c.b16 %v1257, %v1253
        %v1358 = vpack.c.b16 %v1262, %v1258
        %v1359 = vpack.c.b16 %v1263, %v1259
        %v1360 = vpack.c.b16 %v1264, %v1260
        %v1361 = vpack.c.b16 %v1265, %v1261
        %v1362 = vpack.c.b16 %v1270, %v1266
        %v1363 = vpack.c.b16 %v1271, %v1267
        %v1364 = vpack.c.b16 %v1272, %v1268
        %v1365 = vpack.c.b16 %v1273, %v1269
        %v1366 = vpack.c.b16 %v1278, %v1274
        %v1367 = vpack.c.b16 %v1279, %v1275
        %v1368 = vpack.c.b16 %v1280, %v1276
        %v1369 = vpack.c.b16 %v1281, %v1277
        %v1370 = vpack.c.b16 %v1286, %v1282
        %v1371 = vpack.c.b16 %v1287, %v1283
        %v1372 = vpack.c.b16 %v1288, %v1284
        %v1373 = vpack.c.b16 %v1289, %v1285
        %v1374 = vpack.c.b16 %v1294, %v1290
        %v1375 = vpack.c.b16 %v1295, %v1291
        %v1376 = vpack.c.b16 %v1296, %v1292
        %v1377 = vpack.c.b16 %v1297, %v1293
        %v1378 = vpack.c.b16 %v1302, %v1298
        %v1379 = vpack.c.b16 %v1303, %v1299
        %v1380 = vpack.c.b16 %v1304, %v1300
        %v1381 = vpack.c.b16 %v1305, %v1301
        %v1382 = vpack.c.b16 %v1310, %v1306
        %v1383 = vpack.c.b16 %v1311, %v1307
        %v1384 = vpack.c.b16 %v1312, %v1308
        %v1385 = vpack.c.b16 %v1313, %v1309
        %v1386 = vpack.c.b16 %v1318, %v1314
        %v1387 = vpack.c.b16 %v1319, %v1315
        %v1388 = vpack.c.b16 %v1320, %v1316
        %v1389 = vpack.c.b16 %v1321, %v1317
        %v1390 = vpack.c.b16 %v1326, %v1322
        %v1391 = vpack.c.b16 %v1327, %v1323
        %v1392 = vpack.c.b16 %v1328, %v1324
        %v1393 = vpack.c.b16 %v1329, %v1325
        %1458 = vmatprep.subr.bf16.mxu0 %v1331
        %1459 = vmatpush1.bf16.msra.mxu0 %v1330
        %1460 = vmatprep.subr.bf16.mxu0 %v1335
        %1461 = vmatpush1.bf16.msra.mxu0 %v1334
        %1462 = vmatprep.subr.bf16.mxu0 %v1339
        %1463 = vmatpush1.bf16.msra.mxu0 %v1338
        %1464 = vmatprep.subr.bf16.mxu0 %v1343
        %1465 = vmatpush1.bf16.msra.mxu0 %v1342
        %1466 = vmatprep.subr.bf16.mxu0 %v1347
        %1467 = vmatpush1.bf16.msra.mxu0 %v1346
        %1468 = vmatprep.subr.bf16.mxu0 %v1351
        %1469 = vmatpush1.bf16.msra.mxu0 %v1350
        %1470 = vmatprep.subr.bf16.mxu0 %v1355
        %1471 = vmatpush1.bf16.msra.mxu0 %v1354
        %1472 = vmatprep.subr.bf16.mxu0 %v1359
        %1473 = vmatpush1.bf16.msra.mxu0 %v1358
        %1474 = vmatprep.subr.bf16.mxu0 %v1363
        %1475 = vmatpush1.bf16.msra.mxu0 %v1362
        %1476 = vmatprep.subr.bf16.mxu0 %v1367
        %1477 = vmatpush1.bf16.msra.mxu0 %v1366
        %1478 = vmatprep.subr.bf16.mxu0 %v1371
        %1479 = vmatpush1.bf16.msra.mxu0 %v1370
        %1480 = vmatprep.subr.bf16.mxu0 %v1375
        %1481 = vmatpush1.bf16.msra.mxu0 %v1374
        %1482 = vmatprep.subr.bf16.mxu0 %v1379
        %1483 = vmatpush1.bf16.msra.mxu0 %v1378
        %1484 = vmatprep.subr.bf16.mxu0 %v1383
        %1485 = vmatpush1.bf16.msra.mxu0 %v1382
        %1486 = vmatprep.subr.bf16.mxu0 %v1387
        %1487 = vmatpush1.bf16.msra.mxu0 %v1386
        %1488 = vmatprep.subr.bf16.mxu0 %v1391
        %1489 = vmatpush1.bf16.msra.mxu0 %v1390
        %1490 = vmatprep.mubr.bf16.mxu0 %v1135
        %1491 = vmatmul.mubr.bf16.gmra.mrb[0].mxu0 %v1128
        %v1492 = vpop.f32.mrb[0].mxu0
        %v1493 = vadd.f32 0.0, %v1492
        %v1494 = vpop.f32.mrb[0].mxu0
        %v1495 = vadd.f32 0.0, %v1494
        %v1496 = vpop.f32.mrb[0].mxu0
        %v1497 = vpop.f32.mrb[0].mxu0
        %1498 = vdwg.mxu0
        %1499 = vmatprep.subr.bf16.mxu0 %v1333
        %1500 = vmatpush1.bf16.msra.mxu0 %v1332
        %1501 = vmatprep.subr.bf16.mxu0 %v1337
        %1502 = vmatpush1.bf16.msra.mxu0 %v1336
        %1503 = vmatprep.subr.bf16.mxu0 %v1341
        %1504 = vmatpush1.bf16.msra.mxu0 %v1340
        %1505 = vmatprep.subr.bf16.mxu0 %v1345
        %1506 = vmatpush1.bf16.msra.mxu0 %v1344
        %1507 = vmatprep.subr.bf16.mxu0 %v1349
        %1508 = vmatpush1.bf16.msra.mxu0 %v1348
        %1509 = vmatprep.subr.bf16.mxu0 %v1353
        %1510 = vmatpush1.bf16.msra.mxu0 %v1352
        %1511 = vmatprep.subr.bf16.mxu0 %v1357
        %1512 = vmatpush1.bf16.msra.mxu0 %v1356
        %1513 = vmatprep.subr.bf16.mxu0 %v1361
        %1514 = vmatpush1.bf16.msra.mxu0 %v1360
        %1515 = vmatprep.subr.bf16.mxu0 %v1365
        %1516 = vmatpush1.bf16.msra.mxu0 %v1364
        %1517 = vmatprep.subr.bf16.mxu0 %v1369
        %1518 = vmatpush1.bf16.msra.mxu0 %v1368
        %1519 = vmatprep.subr.bf16.mxu0 %v1373
        %1520 = vmatpush1.bf16.msra.mxu0 %v1372
        %1521 = vmatprep.subr.bf16.mxu0 %v1377
        %1522 = vmatpush1.bf16.msra.mxu0 %v1376
        %1523 = vmatprep.subr.bf16.mxu0 %v1381
        %1524 = vmatpush1.bf16.msra.mxu0 %v1380
        %1525 = vmatprep.subr.bf16.mxu0 %v1385
        %1526 = vmatpush1.bf16.msra.mxu0 %v1384
        %1527 = vmatprep.subr.bf16.mxu0 %v1389
        %1528 = vmatpush1.bf16.msra.mxu0 %v1388
        %1529 = vmatprep.subr.bf16.mxu0 %v1393
        %1530 = vmatpush1.bf16.msra.mxu0 %v1392
        %1531 = vmatprep.mubr.bf16.mxu0 %v1135
        %1532 = vmatmul.mubr.bf16.gmra.mrb[0].mxu0 %v1128
        %v1533 = vpop.f32.mrb[0].mxu0
        %v1534 = vadd.f32 0.0, %v1533
        %v1535 = vpop.f32.mrb[0].mxu0
        %v1536 = vadd.f32 0.0, %v1535
        %v1537 = vpop.f32.mrb[0].mxu0
        %v1538 = vpop.f32.mrb[0].mxu0
        %1539 = vdwg.mxu0
        %v1604 = vunpack.c.l.b16 %v987
        %v1605 = vunpack.c.h.b16 %v987
        %v1606 = vunpack.c.l.b16 %v988
        %v1607 = vunpack.c.h.b16 %v988
        %v1608 = vunpack.c.l.b16 %v989
        %v1609 = vunpack.c.h.b16 %v989
        %v1610 = vunpack.c.l.b16 %v990
        %v1611 = vunpack.c.h.b16 %v990
        %v1612 = vunpack.c.l.b16 %v991
        %v1613 = vunpack.c.h.b16 %v991
        %v1614 = vunpack.c.l.b16 %v992
        %v1615 = vunpack.c.h.b16 %v992
        %v1616 = vunpack.c.l.b16 %v993
        %v1617 = vunpack.c.h.b16 %v993
        %v1618 = vunpack.c.l.b16 %v994
        %v1619 = vunpack.c.h.b16 %v994
        %v1620 = vunpack.c.l.b16 %v995
        %v1621 = vunpack.c.h.b16 %v995
        %v1622 = vunpack.c.l.b16 %v996
        %v1623 = vunpack.c.h.b16 %v996
        %v1624 = vunpack.c.l.b16 %v997
        %v1625 = vunpack.c.h.b16 %v997
        %v1626 = vunpack.c.l.b16 %v998
        %v1627 = vunpack.c.h.b16 %v998
        %v1628 = vunpack.c.l.b16 %v999
        %v1629 = vunpack.c.h.b16 %v999
        %v1630 = vunpack.c.l.b16 %v1000
        %v1631 = vunpack.c.h.b16 %v1000
        %v1632 = vunpack.c.l.b16 %v1001
        %v1633 = vunpack.c.h.b16 %v1001
        %v1634 = vunpack.c.l.b16 %v1002
        %v1635 = vunpack.c.h.b16 %v1002
        %v1636 = vunpack.c.l.b16 %v1003
        %v1637 = vunpack.c.h.b16 %v1003
        %v1638 = vunpack.c.l.b16 %v1004
        %v1639 = vunpack.c.h.b16 %v1004
        %v1640 = vunpack.c.l.b16 %v1005
        %v1641 = vunpack.c.h.b16 %v1005
        %v1642 = vunpack.c.l.b16 %v1006
        %v1643 = vunpack.c.h.b16 %v1006
        %v1644 = vunpack.c.l.b16 %v1007
        %v1645 = vunpack.c.h.b16 %v1007
        %v1646 = vunpack.c.l.b16 %v1008
        %v1647 = vunpack.c.h.b16 %v1008
        %v1648 = vunpack.c.l.b16 %v1009
        %v1649 = vunpack.c.h.b16 %v1009
        %v1650 = vunpack.c.l.b16 %v1010
        %v1651 = vunpack.c.h.b16 %v1010
        %v1652 = vunpack.c.l.b16 %v1011
        %v1653 = vunpack.c.h.b16 %v1011
        %v1654 = vunpack.c.l.b16 %v1012
        %v1655 = vunpack.c.h.b16 %v1012
        %v1656 = vunpack.c.l.b16 %v1013
        %v1657 = vunpack.c.h.b16 %v1013
        %v1658 = vunpack.c.l.b16 %v1014
        %v1659 = vunpack.c.h.b16 %v1014
        %v1660 = vunpack.c.l.b16 %v1015
        %v1661 = vunpack.c.h.b16 %v1015
        %v1662 = vunpack.c.l.b16 %v1016
        %v1663 = vunpack.c.h.b16 %v1016
        %v1664 = vunpack.c.l.b16 %v1017
        %v1665 = vunpack.c.h.b16 %v1017
        %v1666 = vunpack.c.l.b16 %v1018
        %v1667 = vunpack.c.h.b16 %v1018
        %v1668 = vunpack.c.l.b16 %v1019
        %v1669 = vunpack.c.h.b16 %v1019
        %v1670 = vunpack.c.l.b16 %v1020
        %v1671 = vunpack.c.h.b16 %v1020
        %v1672 = vunpack.c.l.b16 %v1021
        %v1673 = vunpack.c.h.b16 %v1021
        %v1674 = vunpack.c.l.b16 %v1022
        %v1675 = vunpack.c.h.b16 %v1022
        %v1676 = vunpack.c.l.b16 %v1023
        %v1677 = vunpack.c.h.b16 %v1023
        %v1678 = vunpack.c.l.b16 %v1024
        %v1679 = vunpack.c.h.b16 %v1024
        %v1680 = vunpack.c.l.b16 %v1025
        %v1681 = vunpack.c.h.b16 %v1025
        %v1682 = vunpack.c.l.b16 %v1026
        %v1683 = vunpack.c.h.b16 %v1026
        %v1684 = vunpack.c.l.b16 %v1027
        %v1685 = vunpack.c.h.b16 %v1027
        %v1686 = vunpack.c.l.b16 %v1028
        %v1687 = vunpack.c.h.b16 %v1028
        %v1688 = vunpack.c.l.b16 %v1029
        %v1689 = vunpack.c.h.b16 %v1029
        %v1690 = vunpack.c.l.b16 %v1030
        %v1691 = vunpack.c.h.b16 %v1030
        %v1692 = vunpack.c.l.b16 %v1031
        %v1693 = vunpack.c.h.b16 %v1031
        %v1694 = vunpack.c.l.b16 %v1032
        %v1695 = vunpack.c.h.b16 %v1032
        %v1696 = vunpack.c.l.b16 %v1033
        %v1697 = vunpack.c.h.b16 %v1033
        %v1698 = vunpack.c.l.b16 %v1034
        %v1699 = vunpack.c.h.b16 %v1034
        %v1700 = vunpack.c.l.b16 %v1035
        %v1701 = vunpack.c.h.b16 %v1035
        %v1702 = vunpack.c.l.b16 %v1036
        %v1703 = vunpack.c.h.b16 %v1036
        %v1704 = vunpack.c.l.b16 %v1037
        %v1705 = vunpack.c.h.b16 %v1037
        %v1706 = vunpack.c.l.b16 %v1038
        %v1707 = vunpack.c.h.b16 %v1038
        %v1708 = vunpack.c.l.b16 %v1039
        %v1709 = vunpack.c.h.b16 %v1039
        %v1710 = vunpack.c.l.b16 %v1040
        %v1711 = vunpack.c.h.b16 %v1040
        %v1712 = vunpack.c.l.b16 %v1041
        %v1713 = vunpack.c.h.b16 %v1041
        %v1714 = vunpack.c.l.b16 %v1042
        %v1715 = vunpack.c.h.b16 %v1042
        %v1716 = vunpack.c.l.b16 %v1043
        %v1717 = vunpack.c.h.b16 %v1043
        %v1718 = vunpack.c.l.b16 %v1044
        %v1719 = vunpack.c.h.b16 %v1044
        %v1720 = vunpack.c.l.b16 %v1045
        %v1721 = vunpack.c.h.b16 %v1045
        %v1722 = vunpack.c.l.b16 %v1046
        %v1723 = vunpack.c.h.b16 %v1046
        %v1724 = vunpack.c.l.b16 %v1047
        %v1725 = vunpack.c.h.b16 %v1047
        %v1726 = vunpack.c.l.b16 %v1048
        %v1727 = vunpack.c.h.b16 %v1048
        %v1728 = vunpack.c.l.b16 %v1049
        %v1729 = vunpack.c.h.b16 %v1049
        %v1730 = vunpack.c.l.b16 %v1050
        %v1731 = vunpack.c.h.b16 %v1050
        %v1732 = vpack.c.b16 %v1608, %v1604
        %v1733 = vpack.c.b16 %v1609, %v1605
        %v1734 = vpack.c.b16 %v1610, %v1606
        %v1735 = vpack.c.b16 %v1611, %v1607
        %v1736 = vpack.c.b16 %v1616, %v1612
        %v1737 = vpack.c.b16 %v1617, %v1613
        %v1738 = vpack.c.b16 %v1618, %v1614
        %v1739 = vpack.c.b16 %v1619, %v1615
        %v1740 = vpack.c.b16 %v1624, %v1620
        %v1741 = vpack.c.b16 %v1625, %v1621
        %v1742 = vpack.c.b16 %v1626, %v1622
        %v1743 = vpack.c.b16 %v1627, %v1623
        %v1744 = vpack.c.b16 %v1632, %v1628
        %v1745 = vpack.c.b16 %v1633, %v1629
        %v1746 = vpack.c.b16 %v1634, %v1630
        %v1747 = vpack.c.b16 %v1635, %v1631
        %v1748 = vpack.c.b16 %v1640, %v1636
        %v1749 = vpack.c.b16 %v1641, %v1637
        %v1750 = vpack.c.b16 %v1642, %v1638
        %v1751 = vpack.c.b16 %v1643, %v1639
        %v1752 = vpack.c.b16 %v1648, %v1644
        %v1753 = vpack.c.b16 %v1649, %v1645
        %v1754 = vpack.c.b16 %v1650, %v1646
        %v1755 = vpack.c.b16 %v1651, %v1647
        %v1756 = vpack.c.b16 %v1656, %v1652
        %v1757 = vpack.c.b16 %v1657, %v1653
        %v1758 = vpack.c.b16 %v1658, %v1654
        %v1759 = vpack.c.b16 %v1659, %v1655
        %v1760 = vpack.c.b16 %v1664, %v1660
        %v1761 = vpack.c.b16 %v1665, %v1661
        %v1762 = vpack.c.b16 %v1666, %v1662
        %v1763 = vpack.c.b16 %v1667, %v1663
        %v1764 = vpack.c.b16 %v1672, %v1668
        %v1765 = vpack.c.b16 %v1673, %v1669
        %v1766 = vpack.c.b16 %v1674, %v1670
        %v1767 = vpack.c.b16 %v1675, %v1671
        %v1768 = vpack.c.b16 %v1680, %v1676
        %v1769 = vpack.c.b16 %v1681, %v1677
        %v1770 = vpack.c.b16 %v1682, %v1678
        %v1771 = vpack.c.b16 %v1683, %v1679
        %v1772 = vpack.c.b16 %v1688, %v1684
        %v1773 = vpack.c.b16 %v1689, %v1685
        %v1774 = vpack.c.b16 %v1690, %v1686
        %v1775 = vpack.c.b16 %v1691, %v1687
        %v1776 = vpack.c.b16 %v1696, %v1692
        %v1777 = vpack.c.b16 %v1697, %v1693
        %v1778 = vpack.c.b16 %v1698, %v1694
        %v1779 = vpack.c.b16 %v1699, %v1695
        %v1780 = vpack.c.b16 %v1704, %v1700
        %v1781 = vpack.c.b16 %v1705, %v1701
        %v1782 = vpack.c.b16 %v1706, %v1702
        %v1783 = vpack.c.b16 %v1707, %v1703
        %v1784 = vpack.c.b16 %v1712, %v1708
        %v1785 = vpack.c.b16 %v1713, %v1709
        %v1786 = vpack.c.b16 %v1714, %v1710
        %v1787 = vpack.c.b16 %v1715, %v1711
        %v1788 = vpack.c.b16 %v1720, %v1716
        %v1789 = vpack.c.b16 %v1721, %v1717
        %v1790 = vpack.c.b16 %v1722, %v1718
        %v1791 = vpack.c.b16 %v1723, %v1719
        %v1792 = vpack.c.b16 %v1728, %v1724
        %v1793 = vpack.c.b16 %v1729, %v1725
        %v1794 = vpack.c.b16 %v1730, %v1726
        %v1795 = vpack.c.b16 %v1731, %v1727
        %1860 = vmatprep.subr.bf16.mxu0 %v1733
        %1861 = vmatpush1.bf16.msra.mxu0 %v1732
        %1862 = vmatprep.subr.bf16.mxu0 %v1737
        %1863 = vmatpush1.bf16.msra.mxu0 %v1736
        %1864 = vmatprep.subr.bf16.mxu0 %v1741
        %1865 = vmatpush1.bf16.msra.mxu0 %v1740
        %1866 = vmatprep.subr.bf16.mxu0 %v1745
        %1867 = vmatpush1.bf16.msra.mxu0 %v1744
        %1868 = vmatprep.subr.bf16.mxu0 %v1749
        %1869 = vmatpush1.bf16.msra.mxu0 %v1748
        %1870 = vmatprep.subr.bf16.mxu0 %v1753
        %1871 = vmatpush1.bf16.msra.mxu0 %v1752
        %1872 = vmatprep.subr.bf16.mxu0 %v1757
        %1873 = vmatpush1.bf16.msra.mxu0 %v1756
        %1874 = vmatprep.subr.bf16.mxu0 %v1761
        %1875 = vmatpush1.bf16.msra.mxu0 %v1760
        %1876 = vmatprep.subr.bf16.mxu0 %v1765
        %1877 = vmatpush1.bf16.msra.mxu0 %v1764
        %1878 = vmatprep.subr.bf16.mxu0 %v1769
        %1879 = vmatpush1.bf16.msra.mxu0 %v1768
        %1880 = vmatprep.subr.bf16.mxu0 %v1773
        %1881 = vmatpush1.bf16.msra.mxu0 %v1772
        %1882 = vmatprep.subr.bf16.mxu0 %v1777
        %1883 = vmatpush1.bf16.msra.mxu0 %v1776
        %1884 = vmatprep.subr.bf16.mxu0 %v1781
        %1885 = vmatpush1.bf16.msra.mxu0 %v1780
        %1886 = vmatprep.subr.bf16.mxu0 %v1785
        %1887 = vmatpush1.bf16.msra.mxu0 %v1784
        %1888 = vmatprep.subr.bf16.mxu0 %v1789
        %1889 = vmatpush1.bf16.msra.mxu0 %v1788
        %1890 = vmatprep.subr.bf16.mxu0 %v1793
        %1891 = vmatpush1.bf16.msra.mxu0 %v1792
        %1892 = vmatprep.mubr.bf16.mxu0 %v986
        %1893 = vmatmul.mubr.bf16.gmra.mrb[0].mxu0 %v985
        %v1894 = vpop.f32.mrb[0].mxu0
        %v1895 = vadd.f32 %v1493, %v1894
        %v1896 = vpop.f32.mrb[0].mxu0
        %v1897 = vadd.f32 %v1495, %v1896
        %v1898 = vpop.f32.mrb[0].mxu0
        %v1899 = vpop.f32.mrb[0].mxu0
        %1900 = vdwg.mxu0
        %1901 = vmatprep.subr.bf16.mxu0 %v1735
        %1902 = vmatpush1.bf16.msra.mxu0 %v1734
        %1903 = vmatprep.subr.bf16.mxu0 %v1739
        %1904 = vmatpush1.bf16.msra.mxu0 %v1738
        %1905 = vmatprep.subr.bf16.mxu0 %v1743
        %1906 = vmatpush1.bf16.msra.mxu0 %v1742
        %1907 = vmatprep.subr.bf16.mxu0 %v1747
        %1908 = vmatpush1.bf16.msra.mxu0 %v1746
        %1909 = vmatprep.subr.bf16.mxu0 %v1751
        %1910 = vmatpush1.bf16.msra.mxu0 %v1750
        %1911 = vmatprep.subr.bf16.mxu0 %v1755
        %1912 = vmatpush1.bf16.msra.mxu0 %v1754
        %1913 = vmatprep.subr.bf16.mxu0 %v1759
        %1914 = vmatpush1.bf16.msra.mxu0 %v1758
        %1915 = vmatprep.subr.bf16.mxu0 %v1763
        %1916 = vmatpush1.bf16.msra.mxu0 %v1762
        %1917 = vmatprep.subr.bf16.mxu0 %v1767
        %1918 = vmatpush1.bf16.msra.mxu0 %v1766
        %1919 = vmatprep.subr.bf16.mxu0 %v1771
        %1920 = vmatpush1.bf16.msra.mxu0 %v1770
        %1921 = vmatprep.subr.bf16.mxu0 %v1775
        %1922 = vmatpush1.bf16.msra.mxu0 %v1774
        %1923 = vmatprep.subr.bf16.mxu0 %v1779
        %1924 = vmatpush1.bf16.msra.mxu0 %v1778
        %1925 = vmatprep.subr.bf16.mxu0 %v1783
        %1926 = vmatpush1.bf16.msra.mxu0 %v1782
        %1927 = vmatprep.subr.bf16.mxu0 %v1787
        %1928 = vmatpush1.bf16.msra.mxu0 %v1786
        %1929 = vmatprep.subr.bf16.mxu0 %v1791
        %1930 = vmatpush1.bf16.msra.mxu0 %v1790
        %1931 = vmatprep.subr.bf16.mxu0 %v1795
        %1932 = vmatpush1.bf16.msra.mxu0 %v1794
        %1933 = vmatprep.mubr.bf16.mxu0 %v986
        %1934 = vmatmul.mubr.bf16.gmra.mrb[0].mxu0 %v985
        %v1935 = vpop.f32.mrb[0].mxu0
        %v1936 = vadd.f32 %v1534, %v1935
        %v1937 = vpop.f32.mrb[0].mxu0
        %v1938 = vadd.f32 %v1536, %v1937
        %v1939 = vpop.f32.mrb[0].mxu0
        %v1940 = vpop.f32.mrb[0].mxu0
        %1941 = vdwg.mxu0
        %v1942 = vld [vmem:[#allocation2] sm:$0xfc]
        %v1943 = vld [vmem:[#allocation2 + $0x8] sm:$0xfc]
        %v1944 = vld [vmem:[#allocation2 + $0x10] sm:$0x3]
        %v1945 = vld [vmem:[#allocation2 + $0x18] sm:$0x3]
        %v1946 = vpack.c.bf16 %v1944, %v1942
        %v1947 = vpack.c.bf16 %v1945, %v1943
        %s1948 = scalar_lea.vmem [#allocation5], 1024
        %v1949 = vld [vmem:[%s1948] sm:$0xff]
        %v1950 = vld [vmem:[%s1948 + $0x8] sm:$0xff]
        %v1951 = vld [vmem:[%s1948 + $0x10] sm:$0xff]
        %v1952 = vld [vmem:[%s1948 + $0x18] sm:$0xff]
        %v1953 = vld [vmem:[%s1948 + $0x20] sm:$0xff]
        %v1954 = vld [vmem:[%s1948 + $0x28] sm:$0xff]
        %v1955 = vld [vmem:[%s1948 + $0x30] sm:$0xff]
        %v1956 = vld [vmem:[%s1948 + $0x38] sm:$0xff]
        %v1957 = vld [vmem:[%s1948 + $0x40] sm:$0xff]
        %v1958 = vld [vmem:[%s1948 + $0x48] sm:$0xff]
        %v1959 = vld [vmem:[%s1948 + $0x50] sm:$0xff]
        %v1960 = vld [vmem:[%s1948 + $0x58] sm:$0xff]
        %v1961 = vld [vmem:[%s1948 + $0x60] sm:$0xff]
        %v1962 = vld [vmem:[%s1948 + $0x68] sm:$0xff]
        %v1963 = vld [vmem:[%s1948 + $0x70] sm:$0xff]
        %v1964 = vld [vmem:[%s1948 + $0x78] sm:$0xff]
        %v1965 = vld [vmem:[%s1948 + $0x80] sm:$0xff]
        %v1966 = vld [vmem:[%s1948 + $0x88] sm:$0xff]
        %v1967 = vld [vmem:[%s1948 + $0x90] sm:$0xff]
        %v1968 = vld [vmem:[%s1948 + $0x98] sm:$0xff]
        %v1969 = vld [vmem:[%s1948 + $0xa0] sm:$0xff]
        %v1970 = vld [vmem:[%s1948 + $0xa8] sm:$0xff]
        %v1971 = vld [vmem:[%s1948 + $0xb0] sm:$0xff]
        %v1972 = vld [vmem:[%s1948 + $0xb8] sm:$0xff]
        %v1973 = vld [vmem:[%s1948 + $0xc0] sm:$0xff]
        %v1974 = vld [vmem:[%s1948 + $0xc8] sm:$0xff]
        %v1975 = vld [vmem:[%s1948 + $0xd0] sm:$0xff]
        %v1976 = vld [vmem:[%s1948 + $0xd8] sm:$0xff]
        %v1977 = vld [vmem:[%s1948 + $0xe0] sm:$0xff]
        %v1978 = vld [vmem:[%s1948 + $0xe8] sm:$0xff]
        %v1979 = vld [vmem:[%s1948 + $0xf0] sm:$0xff]
        %v1980 = vld [vmem:[%s1948 + $0xf8] sm:$0xff]
        %v1981 = vld [vmem:[%s1948 + $0x100] sm:$0xff]
        %v1982 = vld [vmem:[%s1948 + $0x108] sm:$0xff]
        %v1983 = vld [vmem:[%s1948 + $0x110] sm:$0xff]
        %v1984 = vld [vmem:[%s1948 + $0x118] sm:$0xff]
        %v1985 = vld [vmem:[%s1948 + $0x120] sm:$0xff]
        %v1986 = vld [vmem:[%s1948 + $0x128] sm:$0xff]
        %v1987 = vld [vmem:[%s1948 + $0x130] sm:$0xff]
        %v1988 = vld [vmem:[%s1948 + $0x138] sm:$0xff]
        %v1989 = vld [vmem:[%s1948 + $0x140] sm:$0xff]
        %v1990 = vld [vmem:[%s1948 + $0x148] sm:$0xff]
        %v1991 = vld [vmem:[%s1948 + $0x150] sm:$0xff]
        %v1992 = vld [vmem:[%s1948 + $0x158] sm:$0xff]
        %v1993 = vld [vmem:[%s1948 + $0x160] sm:$0xff]
        %v1994 = vld [vmem:[%s1948 + $0x168] sm:$0xff]
        %v1995 = vld [vmem:[%s1948 + $0x170] sm:$0xff]
        %v1996 = vld [vmem:[%s1948 + $0x178] sm:$0xff]
        %v1997 = vld [vmem:[%s1948 + $0x180] sm:$0xff]
        %v1998 = vld [vmem:[%s1948 + $0x188] sm:$0xff]
        %v1999 = vld [vmem:[%s1948 + $0x190] sm:$0xff]
        %v2000 = vld [vmem:[%s1948 + $0x198] sm:$0xff]
        %v2001 = vld [vmem:[%s1948 + $0x1a0] sm:$0xff]
        %v2002 = vld [vmem:[%s1948 + $0x1a8] sm:$0xff]
        %v2003 = vld [vmem:[%s1948 + $0x1b0] sm:$0xff]
        %v2004 = vld [vmem:[%s1948 + $0x1b8] sm:$0xff]
        %v2005 = vld [vmem:[%s1948 + $0x1c0] sm:$0xff]
        %v2006 = vld [vmem:[%s1948 + $0x1c8] sm:$0xff]
        %v2007 = vld [vmem:[%s1948 + $0x1d0] sm:$0xff]
        %v2008 = vld [vmem:[%s1948 + $0x1d8] sm:$0xff]
        %v2009 = vld [vmem:[%s1948 + $0x1e0] sm:$0xff]
        %v2010 = vld [vmem:[%s1948 + $0x1e8] sm:$0xff]
        %v2011 = vld [vmem:[%s1948 + $0x1f0] sm:$0xff]
        %v2012 = vld [vmem:[%s1948 + $0x1f8] sm:$0xff]
        %v2015 = vrot.slane %v1946, 1
        %v2016 = vrot.slane %v1947, 1
        %v2083 = vunpack.c.l.b16 %v1949
        %v2084 = vunpack.c.h.b16 %v1949
        %v2085 = vunpack.c.l.b16 %v1950
        %v2086 = vunpack.c.h.b16 %v1950
        %v2087 = vunpack.c.l.b16 %v1951
        %v2088 = vunpack.c.h.b16 %v1951
        %v2089 = vunpack.c.l.b16 %v1952
        %v2090 = vunpack.c.h.b16 %v1952
        %v2091 = vunpack.c.l.b16 %v1953
        %v2092 = vunpack.c.h.b16 %v1953
        %v2093 = vunpack.c.l.b16 %v1954
        %v2094 = vunpack.c.h.b16 %v1954
        %v2095 = vunpack.c.l.b16 %v1955
        %v2096 = vunpack.c.h.b16 %v1955
        %v2097 = vunpack.c.l.b16 %v1956
        %v2098 = vunpack.c.h.b16 %v1956
        %v2099 = vunpack.c.l.b16 %v1957
        %v2100 = vunpack.c.h.b16 %v1957
        %v2101 = vunpack.c.l.b16 %v1958
        %v2102 = vunpack.c.h.b16 %v1958
        %v2103 = vunpack.c.l.b16 %v1959
        %v2104 = vunpack.c.h.b16 %v1959
        %v2105 = vunpack.c.l.b16 %v1960
        %v2106 = vunpack.c.h.b16 %v1960
        %v2107 = vunpack.c.l.b16 %v1961
        %v2108 = vunpack.c.h.b16 %v1961
        %v2109 = vunpack.c.l.b16 %v1962
        %v2110 = vunpack.c.h.b16 %v1962
        %v2111 = vunpack.c.l.b16 %v1963
        %v2112 = vunpack.c.h.b16 %v1963
        %v2113 = vunpack.c.l.b16 %v1964
        %v2114 = vunpack.c.h.b16 %v1964
        %v2115 = vunpack.c.l.b16 %v1965
        %v2116 = vunpack.c.h.b16 %v1965
        %v2117 = vunpack.c.l.b16 %v1966
        %v2118 = vunpack.c.h.b16 %v1966
        %v2119 = vunpack.c.l.b16 %v1967
        %v2120 = vunpack.c.h.b16 %v1967
        %v2121 = vunpack.c.l.b16 %v1968
        %v2122 = vunpack.c.h.b16 %v1968
        %v2123 = vunpack.c.l.b16 %v1969
        %v2124 = vunpack.c.h.b16 %v1969
        %v2125 = vunpack.c.l.b16 %v1970
        %v2126 = vunpack.c.h.b16 %v1970
        %v2127 = vunpack.c.l.b16 %v1971
        %v2128 = vunpack.c.h.b16 %v1971
        %v2129 = vunpack.c.l.b16 %v1972
        %v2130 = vunpack.c.h.b16 %v1972
        %v2131 = vunpack.c.l.b16 %v1973
        %v2132 = vunpack.c.h.b16 %v1973
        %v2133 = vunpack.c.l.b16 %v1974
        %v2134 = vunpack.c.h.b16 %v1974
        %v2135 = vunpack.c.l.b16 %v1975
        %v2136 = vunpack.c.h.b16 %v1975
        %v2137 = vunpack.c.l.b16 %v1976
        %v2138 = vunpack.c.h.b16 %v1976
        %v2139 = vunpack.c.l.b16 %v1977
        %v2140 = vunpack.c.h.b16 %v1977
        %v2141 = vunpack.c.l.b16 %v1978
        %v2142 = vunpack.c.h.b16 %v1978
        %v2143 = vunpack.c.l.b16 %v1979
        %v2144 = vunpack.c.h.b16 %v1979
        %v2145 = vunpack.c.l.b16 %v1980
        %v2146 = vunpack.c.h.b16 %v1980
        %v2147 = vunpack.c.l.b16 %v1981
        %v2148 = vunpack.c.h.b16 %v1981
        %v2149 = vunpack.c.l.b16 %v1982
        %v2150 = vunpack.c.h.b16 %v1982
        %v2151 = vunpack.c.l.b16 %v1983
        %v2152 = vunpack.c.h.b16 %v1983
        %v2153 = vunpack.c.l.b16 %v1984
        %v2154 = vunpack.c.h.b16 %v1984
        %v2155 = vunpack.c.l.b16 %v1985
        %v2156 = vunpack.c.h.b16 %v1985
        %v2157 = vunpack.c.l.b16 %v1986
        %v2158 = vunpack.c.h.b16 %v1986
        %v2159 = vunpack.c.l.b16 %v1987
        %v2160 = vunpack.c.h.b16 %v1987
        %v2161 = vunpack.c.l.b16 %v1988
        %v2162 = vunpack.c.h.b16 %v1988
        %v2163 = vunpack.c.l.b16 %v1989
        %v2164 = vunpack.c.h.b16 %v1989
        %v2165 = vunpack.c.l.b16 %v1990
        %v2166 = vunpack.c.h.b16 %v1990
        %v2167 = vunpack.c.l.b16 %v1991
        %v2168 = vunpack.c.h.b16 %v1991
        %v2169 = vunpack.c.l.b16 %v1992
        %v2170 = vunpack.c.h.b16 %v1992
        %v2171 = vunpack.c.l.b16 %v1993
        %v2172 = vunpack.c.h.b16 %v1993
        %v2173 = vunpack.c.l.b16 %v1994
        %v2174 = vunpack.c.h.b16 %v1994
        %v2175 = vunpack.c.l.b16 %v1995
        %v2176 = vunpack.c.h.b16 %v1995
        %v2177 = vunpack.c.l.b16 %v1996
        %v2178 = vunpack.c.h.b16 %v1996
        %v2179 = vunpack.c.l.b16 %v1997
        %v2180 = vunpack.c.h.b16 %v1997
        %v2181 = vunpack.c.l.b16 %v1998
        %v2182 = vunpack.c.h.b16 %v1998
        %v2183 = vunpack.c.l.b16 %v1999
        %v2184 = vunpack.c.h.b16 %v1999
        %v2185 = vunpack.c.l.b16 %v2000
        %v2186 = vunpack.c.h.b16 %v2000
        %v2187 = vunpack.c.l.b16 %v2001
        %v2188 = vunpack.c.h.b16 %v2001
        %v2189 = vunpack.c.l.b16 %v2002
        %v2190 = vunpack.c.h.b16 %v2002
        %v2191 = vunpack.c.l.b16 %v2003
        %v2192 = vunpack.c.h.b16 %v2003
        %v2193 = vunpack.c.l.b16 %v2004
        %v2194 = vunpack.c.h.b16 %v2004
        %v2195 = vunpack.c.l.b16 %v2005
        %v2196 = vunpack.c.h.b16 %v2005
        %v2197 = vunpack.c.l.b16 %v2006
        %v2198 = vunpack.c.h.b16 %v2006
        %v2199 = vunpack.c.l.b16 %v2007
        %v2200 = vunpack.c.h.b16 %v2007
        %v2201 = vunpack.c.l.b16 %v2008
        %v2202 = vunpack.c.h.b16 %v2008
        %v2203 = vunpack.c.l.b16 %v2009
        %v2204 = vunpack.c.h.b16 %v2009
        %v2205 = vunpack.c.l.b16 %v2010
        %v2206 = vunpack.c.h.b16 %v2010
        %v2207 = vunpack.c.l.b16 %v2011
        %v2208 = vunpack.c.h.b16 %v2011
        %v2209 = vunpack.c.l.b16 %v2012
        %v2210 = vunpack.c.h.b16 %v2012
        %v2211 = vpack.c.b16 %v2087, %v2083
        %v2212 = vpack.c.b16 %v2088, %v2084
        %v2213 = vpack.c.b16 %v2089, %v2085
        %v2214 = vpack.c.b16 %v2090, %v2086
        %v2215 = vpack.c.b16 %v2095, %v2091
        %v2216 = vpack.c.b16 %v2096, %v2092
        %v2217 = vpack.c.b16 %v2097, %v2093
        %v2218 = vpack.c.b16 %v2098, %v2094
        %v2219 = vpack.c.b16 %v2103, %v2099
        %v2220 = vpack.c.b16 %v2104, %v2100
        %v2221 = vpack.c.b16 %v2105, %v2101
        %v2222 = vpack.c.b16 %v2106, %v2102
        %v2223 = vpack.c.b16 %v2111, %v2107
        %v2224 = vpack.c.b16 %v2112, %v2108
        %v2225 = vpack.c.b16 %v2113, %v2109
        %v2226 = vpack.c.b16 %v2114, %v2110
        %v2227 = vpack.c.b16 %v2119, %v2115
        %v2228 = vpack.c.b16 %v2120, %v2116
        %v2229 = vpack.c.b16 %v2121, %v2117
        %v2230 = vpack.c.b16 %v2122, %v2118
        %v2231 = vpack.c.b16 %v2127, %v2123
        %v2232 = vpack.c.b16 %v2128, %v2124
        %v2233 = vpack.c.b16 %v2129, %v2125
        %v2234 = vpack.c.b16 %v2130, %v2126
        %v2235 = vpack.c.b16 %v2135, %v2131
        %v2236 = vpack.c.b16 %v2136, %v2132
        %v2237 = vpack.c.b16 %v2137, %v2133
        %v2238 = vpack.c.b16 %v2138, %v2134
        %v2239 = vpack.c.b16 %v2143, %v2139
        %v2240 = vpack.c.b16 %v2144, %v2140
        %v2241 = vpack.c.b16 %v2145, %v2141
        %v2242 = vpack.c.b16 %v2146, %v2142
        %v2243 = vpack.c.b16 %v2151, %v2147
        %v2244 = vpack.c.b16 %v2152, %v2148
        %v2245 = vpack.c.b16 %v2153, %v2149
        %v2246 = vpack.c.b16 %v2154, %v2150
        %v2247 = vpack.c.b16 %v2159, %v2155
        %v2248 = vpack.c.b16 %v2160, %v2156
        %v2249 = vpack.c.b16 %v2161, %v2157
        %v2250 = vpack.c.b16 %v2162, %v2158
        %v2251 = vpack.c.b16 %v2167, %v2163
        %v2252 = vpack.c.b16 %v2168, %v2164
        %v2253 = vpack.c.b16 %v2169, %v2165
        %v2254 = vpack.c.b16 %v2170, %v2166
        %v2255 = vpack.c.b16 %v2175, %v2171
        %v2256 = vpack.c.b16 %v2176, %v2172
        %v2257 = vpack.c.b16 %v2177, %v2173
        %v2258 = vpack.c.b16 %v2178, %v2174
        %v2259 = vpack.c.b16 %v2183, %v2179
        %v2260 = vpack.c.b16 %v2184, %v2180
        %v2261 = vpack.c.b16 %v2185, %v2181
        %v2262 = vpack.c.b16 %v2186, %v2182
        %v2263 = vpack.c.b16 %v2191, %v2187
        %v2264 = vpack.c.b16 %v2192, %v2188
        %v2265 = vpack.c.b16 %v2193, %v2189
        %v2266 = vpack.c.b16 %v2194, %v2190
        %v2267 = vpack.c.b16 %v2199, %v2195
        %v2268 = vpack.c.b16 %v2200, %v2196
        %v2269 = vpack.c.b16 %v2201, %v2197
        %v2270 = vpack.c.b16 %v2202, %v2198
        %v2271 = vpack.c.b16 %v2207, %v2203
        %v2272 = vpack.c.b16 %v2208, %v2204
        %v2273 = vpack.c.b16 %v2209, %v2205
        %v2274 = vpack.c.b16 %v2210, %v2206
        %2339 = vmatprep.subr.bf16.mxu0 %v2212
        %2340 = vmatpush1.bf16.msra.mxu0 %v2211
        %2341 = vmatprep.subr.bf16.mxu0 %v2216
        %2342 = vmatpush1.bf16.msra.mxu0 %v2215
        %2343 = vmatprep.subr.bf16.mxu0 %v2220
        %2344 = vmatpush1.bf16.msra.mxu0 %v2219
        %2345 = vmatprep.subr.bf16.mxu0 %v2224
        %2346 = vmatpush1.bf16.msra.mxu0 %v2223
        %2347 = vmatprep.subr.bf16.mxu0 %v2228
        %2348 = vmatpush1.bf16.msra.mxu0 %v2227
        %2349 = vmatprep.subr.bf16.mxu0 %v2232
        %2350 = vmatpush1.bf16.msra.mxu0 %v2231
        %2351 = vmatprep.subr.bf16.mxu0 %v2236
        %2352 = vmatpush1.bf16.msra.mxu0 %v2235
        %2353 = vmatprep.subr.bf16.mxu0 %v2240
        %2354 = vmatpush1.bf16.msra.mxu0 %v2239
        %2355 = vmatprep.subr.bf16.mxu0 %v2244
        %2356 = vmatpush1.bf16.msra.mxu0 %v2243
        %2357 = vmatprep.subr.bf16.mxu0 %v2248
        %2358 = vmatpush1.bf16.msra.mxu0 %v2247
        %2359 = vmatprep.subr.bf16.mxu0 %v2252
        %2360 = vmatpush1.bf16.msra.mxu0 %v2251
        %2361 = vmatprep.subr.bf16.mxu0 %v2256
        %2362 = vmatpush1.bf16.msra.mxu0 %v2255
        %2363 = vmatprep.subr.bf16.mxu0 %v2260
        %2364 = vmatpush1.bf16.msra.mxu0 %v2259
        %2365 = vmatprep.subr.bf16.mxu0 %v2264
        %2366 = vmatpush1.bf16.msra.mxu0 %v2263
        %2367 = vmatprep.subr.bf16.mxu0 %v2268
        %2368 = vmatpush1.bf16.msra.mxu0 %v2267
        %2369 = vmatprep.subr.bf16.mxu0 %v2272
        %2370 = vmatpush1.bf16.msra.mxu0 %v2271
        %2371 = vmatprep.mubr.bf16.mxu0 %v2016
        %2372 = vmatmul.mubr.bf16.gmra.mrb[0].mxu0 %v2015
        %v2373 = vpop.f32.mrb[0].mxu0
        %v2374 = vadd.f32 0.0, %v2373
        %v2375 = vpop.f32.mrb[0].mxu0
        %v2376 = vadd.f32 0.0, %v2375
        %v2377 = vpop.f32.mrb[0].mxu0
        %v2378 = vpop.f32.mrb[0].mxu0
        %2379 = vdwg.mxu0
        %2380 = vmatprep.subr.bf16.mxu0 %v2214
        %2381 = vmatpush1.bf16.msra.mxu0 %v2213
        %2382 = vmatprep.subr.bf16.mxu0 %v2218
        %2383 = vmatpush1.bf16.msra.mxu0 %v2217
        %2384 = vmatprep.subr.bf16.mxu0 %v2222
        %2385 = vmatpush1.bf16.msra.mxu0 %v2221
        %2386 = vmatprep.subr.bf16.mxu0 %v2226
        %2387 = vmatpush1.bf16.msra.mxu0 %v2225
        %2388 = vmatprep.subr.bf16.mxu0 %v2230
        %2389 = vmatpush1.bf16.msra.mxu0 %v2229
        %2390 = vmatprep.subr.bf16.mxu0 %v2234
        %2391 = vmatpush1.bf16.msra.mxu0 %v2233
        %2392 = vmatprep.subr.bf16.mxu0 %v2238
        %2393 = vmatpush1.bf16.msra.mxu0 %v2237
        %2394 = vmatprep.subr.bf16.mxu0 %v2242
        %2395 = vmatpush1.bf16.msra.mxu0 %v2241
        %2396 = vmatprep.subr.bf16.mxu0 %v2246
        %2397 = vmatpush1.bf16.msra.mxu0 %v2245
        %2398 = vmatprep.subr.bf16.mxu0 %v2250
        %2399 = vmatpush1.bf16.msra.mxu0 %v2249
        %2400 = vmatprep.subr.bf16.mxu0 %v2254
        %2401 = vmatpush1.bf16.msra.mxu0 %v2253
        %2402 = vmatprep.subr.bf16.mxu0 %v2258
        %2403 = vmatpush1.bf16.msra.mxu0 %v2257
        %2404 = vmatprep.subr.bf16.mxu0 %v2262
        %2405 = vmatpush1.bf16.msra.mxu0 %v2261
        %2406 = vmatprep.subr.bf16.mxu0 %v2266
        %2407 = vmatpush1.bf16.msra.mxu0 %v2265
        %2408 = vmatprep.subr.bf16.mxu0 %v2270
        %2409 = vmatpush1.bf16.msra.mxu0 %v2269
        %2410 = vmatprep.subr.bf16.mxu0 %v2274
        %2411 = vmatpush1.bf16.msra.mxu0 %v2273
        %2412 = vmatprep.mubr.bf16.mxu0 %v2016
        %2413 = vmatmul.mubr.bf16.gmra.mrb[0].mxu0 %v2015
        %v2414 = vpop.f32.mrb[0].mxu0
        %v2415 = vadd.f32 0.0, %v2414
        %v2416 = vpop.f32.mrb[0].mxu0
        %v2417 = vadd.f32 0.0, %v2416
        %v2418 = vpop.f32.mrb[0].mxu0
        %v2419 = vpop.f32.mrb[0].mxu0
        %2420 = vdwg.mxu0
        %v2421 = vadd.f32 %v1895, %v2374
        %v2422 = vadd.f32 %v1897, %v2376
        %v2423 = vadd.f32 %v1936, %v2415
        %v2424 = vadd.f32 %v1938, %v2417
        %v2425 = vld [vmem:[%s4] sm:$0xf]
        %v2427 = vlaneseq
        %v2428 = vshrl.u32 %v2427, 7
        %v2429 = vsub.s32 0, %v2428
        %v2430 = vrot.slane %v2425, %v2429
        %v2431 = vlaneseq
        %v2432 = vshrl.u32 %v2431, 7
        %v2433 = vsub.s32 1, %v2432
        %v2434 = vrot.slane %v2425, %v2433
        %v2435 = vlaneseq
        %v2436 = vshrl.u32 %v2435, 7
        %v2437 = vsub.s32 2, %v2436
        %v2438 = vrot.slane %v2425, %v2437
        %v2439 = vlaneseq
        %v2440 = vshrl.u32 %v2439, 7
        %v2441 = vsub.s32 3, %v2440
        %v2442 = vrot.slane %v2425, %v2441
        %v2447 = vadd.f32 %v2421, %v2430
        %v2448 = vadd.f32 %v2422, %v2434
        %v2449 = vadd.f32 %v2423, %v2438
        %v2450 = vadd.f32 %v2424, %v2442
        %v2451 = vmax.f32 %v2447, 0.0
        %v2452 = vmax.f32 %v2448, 0.0
        %v2453 = vmax.f32 %v2449, 0.0
        %v2454 = vmax.f32 %v2450, 0.0
        %v2455 = vmax.f32 %v2451, %v2453
        %v2456 = vmax.f32 %v2452, %v2454
        %2457 = vst [vmem:[#allocation4] sm:$0xff] %v2455
        %2458 = vst [vmem:[#allocation4 + $0x8] sm:$0xff] %v2456
        %v2459 = vld [vmem:[#allocation4] ss:$8 sm:$0x3]
        %v2460 = vld [vmem:[%s917] ss:$8 sm:$0x3]
        %v2461 = vmax.f32 %v2459, %v2460
        %v2462 = vld [vmem:[%s920] ss:$8 sm:$0x3]
        %v2463 = vld [vmem:[%s922] ss:$8 sm:$0x3]
        %v2464 = vmax.f32 %v2462, %v2463
        %v2465 = vld [vmem:[%s925] ss:$8 sm:$0x3]
        %v2466 = vld [vmem:[%s927] ss:$8 sm:$0x3]
        %v2467 = vmax.f32 %v2465, %v2466
        %v2468 = vld [vmem:[%s930] ss:$8 sm:$0x3]
        %v2469 = vld [vmem:[%s932] ss:$8 sm:$0x3]
        %v2470 = vmax.f32 %v2468, %v2469
        %s2471 = scalar_lea.vmem [#allocation3], 1
        %2472 = vst.msk [vmem:[%s2471] ss:$8 sm:$0x3] %vm958, %v2461
        %2473 = vst.msk [vmem:[%s2471] ss:$8 sm:$0x0] %vm958, %v2461
        %s2474 = scalar_lea.vmem [#allocation3], 2
        %2475 = vst.msk [vmem:[%s2474] ss:$8 sm:$0x3] %vm958, %v2464
        %2476 = vst.msk [vmem:[%s2474] ss:$8 sm:$0x0] %vm958, %v2464
        %s2477 = scalar_lea.vmem [#allocation3], 3
        %2478 = vst.msk [vmem:[%s2477] ss:$8 sm:$0x3] %vm958, %v2467
        %2479 = vst.msk [vmem:[%s2477] ss:$8 sm:$0x0] %vm958, %v2467
        %s2480 = scalar_lea.vmem [#allocation3], 4
        %2481 = vst.msk [vmem:[%s2480] ss:$8 sm:$0x3] %vm958, %v2470
        %2482 = vst.msk [vmem:[%s2480] ss:$8 sm:$0x0] %vm958, %v2470
        %v2483 = vld [vmem:[#allocation3] sm:$0xf]
        %v2484 = vld [vmem:[#allocation3 + $0x8] sm:$0xf]
        %v2485 = vpack.c.bf16 %v2483, %v2483
        %v2486 = vpack.c.bf16 %v2484, %v2484
        %v2487 = vld [vmem:[#allocation8] sm:$0xff]
        %v2488 = vld [vmem:[#allocation8 + $0x8] sm:$0xff]
        %v2489 = vld [vmem:[#allocation8 + $0x10] sm:$0xff]
        %v2490 = vld [vmem:[#allocation8 + $0x18] sm:$0xff]
        %v2491 = vld [vmem:[#allocation8 + $0x20] sm:$0xff]
        %v2492 = vld [vmem:[#allocation8 + $0x28] sm:$0xff]
        %v2493 = vld [vmem:[#allocation8 + $0x30] sm:$0xff]
        %v2494 = vld [vmem:[#allocation8 + $0x38] sm:$0xff]
        %v2495 = vld [vmem:[#allocation8 + $0x40] sm:$0xff]
        %v2496 = vld [vmem:[#allocation8 + $0x48] sm:$0xff]
        %v2497 = vld [vmem:[#allocation8 + $0x50] sm:$0xff]
        %v2498 = vld [vmem:[#allocation8 + $0x58] sm:$0xff]
        %v2499 = vld [vmem:[#allocation8 + $0x60] sm:$0xff]
        %v2500 = vld [vmem:[#allocation8 + $0x68] sm:$0xff]
        %v2501 = vld [vmem:[#allocation8 + $0x70] sm:$0xff]
        %v2502 = vld [vmem:[#allocation8 + $0x78] sm:$0xff]
        %v2503 = vld [vmem:[#allocation8 + $0x80] sm:$0xff]
        %v2504 = vld [vmem:[#allocation8 + $0x88] sm:$0xff]
        %v2505 = vld [vmem:[#allocation8 + $0x90] sm:$0xff]
        %v2506 = vld [vmem:[#allocation8 + $0x98] sm:$0xff]
        %v2507 = vld [vmem:[#allocation8 + $0xa0] sm:$0xff]
        %v2508 = vld [vmem:[#allocation8 + $0xa8] sm:$0xff]
        %v2509 = vld [vmem:[#allocation8 + $0xb0] sm:$0xff]
        %v2510 = vld [vmem:[#allocation8 + $0xb8] sm:$0xff]
        %v2511 = vld [vmem:[#allocation8 + $0xc0] sm:$0xff]
        %v2512 = vld [vmem:[#allocation8 + $0xc8] sm:$0xff]
        %v2513 = vld [vmem:[#allocation8 + $0xd0] sm:$0xff]
        %v2514 = vld [vmem:[#allocation8 + $0xd8] sm:$0xff]
        %v2515 = vld [vmem:[#allocation8 + $0xe0] sm:$0xff]
        %v2516 = vld [vmem:[#allocation8 + $0xe8] sm:$0xff]
        %v2517 = vld [vmem:[#allocation8 + $0xf0] sm:$0xff]
        %v2518 = vld [vmem:[#allocation8 + $0xf8] sm:$0xff]
        %v2519 = vld [vmem:[#allocation8 + $0x100] sm:$0xff]
        %v2520 = vld [vmem:[#allocation8 + $0x108] sm:$0xff]
        %v2521 = vld [vmem:[#allocation8 + $0x110] sm:$0xff]
        %v2522 = vld [vmem:[#allocation8 + $0x118] sm:$0xff]
        %v2523 = vld [vmem:[#allocation8 + $0x120] sm:$0xff]
        %v2524 = vld [vmem:[#allocation8 + $0x128] sm:$0xff]
        %v2525 = vld [vmem:[#allocation8 + $0x130] sm:$0xff]
        %v2526 = vld [vmem:[#allocation8 + $0x138] sm:$0xff]
        %v2527 = vld [vmem:[#allocation8 + $0x140] sm:$0xff]
        %v2528 = vld [vmem:[#allocation8 + $0x148] sm:$0xff]
        %v2529 = vld [vmem:[#allocation8 + $0x150] sm:$0xff]
        %v2530 = vld [vmem:[#allocation8 + $0x158] sm:$0xff]
        %v2531 = vld [vmem:[#allocation8 + $0x160] sm:$0xff]
        %v2532 = vld [vmem:[#allocation8 + $0x168] sm:$0xff]
        %v2533 = vld [vmem:[#allocation8 + $0x170] sm:$0xff]
        %v2534 = vld [vmem:[#allocation8 + $0x178] sm:$0xff]
        %v2535 = vld [vmem:[#allocation8 + $0x180] sm:$0xff]
        %v2536 = vld [vmem:[#allocation8 + $0x188] sm:$0xff]
        %v2537 = vld [vmem:[#allocation8 + $0x190] sm:$0xff]
        %v2538 = vld [vmem:[#allocation8 + $0x198] sm:$0xff]
        %v2539 = vld [vmem:[#allocation8 + $0x1a0] sm:$0xff]
        %v2540 = vld [vmem:[#allocation8 + $0x1a8] sm:$0xff]
        %v2541 = vld [vmem:[#allocation8 + $0x1b0] sm:$0xff]
        %v2542 = vld [vmem:[#allocation8 + $0x1b8] sm:$0xff]
        %v2543 = vld [vmem:[#allocation8 + $0x1c0] sm:$0xff]
        %v2544 = vld [vmem:[#allocation8 + $0x1c8] sm:$0xff]
        %v2545 = vld [vmem:[#allocation8 + $0x1d0] sm:$0xff]
        %v2546 = vld [vmem:[#allocation8 + $0x1d8] sm:$0xff]
        %v2547 = vld [vmem:[#allocation8 + $0x1e0] sm:$0xff]
        %v2548 = vld [vmem:[#allocation8 + $0x1e8] sm:$0xff]
        %v2549 = vld [vmem:[#allocation8 + $0x1f0] sm:$0xff]
        %v2550 = vld [vmem:[#allocation8 + $0x1f8] sm:$0xff]
        %v2551 = vld [vmem:[#allocation3] sm:$0x1e]
        %v2552 = vld [vmem:[#allocation3 + $0x8] sm:$0x1e]
        %v2553 = vpack.c.bf16 %v2551, %v2551
        %v2554 = vpack.c.bf16 %v2552, %v2552
        %s2555 = scalar_lea.vmem [#allocation8], 512
        %v2556 = vld [vmem:[%s2555] sm:$0xff]
        %v2557 = vld [vmem:[%s2555 + $0x8] sm:$0xff]
        %v2558 = vld [vmem:[%s2555 + $0x10] sm:$0xff]
        %v2559 = vld [vmem:[%s2555 + $0x18] sm:$0xff]
        %v2560 = vld [vmem:[%s2555 + $0x20] sm:$0xff]
        %v2561 = vld [vmem:[%s2555 + $0x28] sm:$0xff]
        %v2562 = vld [vmem:[%s2555 + $0x30] sm:$0xff]
        %v2563 = vld [vmem:[%s2555 + $0x38] sm:$0xff]
        %v2564 = vld [vmem:[%s2555 + $0x40] sm:$0xff]
        %v2565 = vld [vmem:[%s2555 + $0x48] sm:$0xff]
        %v2566 = vld [vmem:[%s2555 + $0x50] sm:$0xff]
        %v2567 = vld [vmem:[%s2555 + $0x58] sm:$0xff]
        %v2568 = vld [vmem:[%s2555 + $0x60] sm:$0xff]
        %v2569 = vld [vmem:[%s2555 + $0x68] sm:$0xff]
        %v2570 = vld [vmem:[%s2555 + $0x70] sm:$0xff]
        %v2571 = vld [vmem:[%s2555 + $0x78] sm:$0xff]
        %v2572 = vld [vmem:[%s2555 + $0x80] sm:$0xff]
        %v2573 = vld [vmem:[%s2555 + $0x88] sm:$0xff]
        %v2574 = vld [vmem:[%s2555 + $0x90] sm:$0xff]
        %v2575 = vld [vmem:[%s2555 + $0x98] sm:$0xff]
        %v2576 = vld [vmem:[%s2555 + $0xa0] sm:$0xff]
        %v2577 = vld [vmem:[%s2555 + $0xa8] sm:$0xff]
        %v2578 = vld [vmem:[%s2555 + $0xb0] sm:$0xff]
        %v2579 = vld [vmem:[%s2555 + $0xb8] sm:$0xff]
        %v2580 = vld [vmem:[%s2555 + $0xc0] sm:$0xff]
        %v2581 = vld [vmem:[%s2555 + $0xc8] sm:$0xff]
        %v2582 = vld [vmem:[%s2555 + $0xd0] sm:$0xff]
        %v2583 = vld [vmem:[%s2555 + $0xd8] sm:$0xff]
        %v2584 = vld [vmem:[%s2555 + $0xe0] sm:$0xff]
        %v2585 = vld [vmem:[%s2555 + $0xe8] sm:$0xff]
        %v2586 = vld [vmem:[%s2555 + $0xf0] sm:$0xff]
        %v2587 = vld [vmem:[%s2555 + $0xf8] sm:$0xff]
        %v2588 = vld [vmem:[%s2555 + $0x100] sm:$0xff]
        %v2589 = vld [vmem:[%s2555 + $0x108] sm:$0xff]
        %v2590 = vld [vmem:[%s2555 + $0x110] sm:$0xff]
        %v2591 = vld [vmem:[%s2555 + $0x118] sm:$0xff]
        %v2592 = vld [vmem:[%s2555 + $0x120] sm:$0xff]
        %v2593 = vld [vmem:[%s2555 + $0x128] sm:$0xff]
        %v2594 = vld [vmem:[%s2555 + $0x130] sm:$0xff]
        %v2595 = vld [vmem:[%s2555 + $0x138] sm:$0xff]
        %v2596 = vld [vmem:[%s2555 + $0x140] sm:$0xff]
        %v2597 = vld [vmem:[%s2555 + $0x148] sm:$0xff]
        %v2598 = vld [vmem:[%s2555 + $0x150] sm:$0xff]
        %v2599 = vld [vmem:[%s2555 + $0x158] sm:$0xff]
        %v2600 = vld [vmem:[%s2555 + $0x160] sm:$0xff]
        %v2601 = vld [vmem:[%s2555 + $0x168] sm:$0xff]
        %v2602 = vld [vmem:[%s2555 + $0x170] sm:$0xff]
        %v2603 = vld [vmem:[%s2555 + $0x178] sm:$0xff]
        %v2604 = vld [vmem:[%s2555 + $0x180] sm:$0xff]
        %v2605 = vld [vmem:[%s2555 + $0x188] sm:$0xff]
        %v2606 = vld [vmem:[%s2555 + $0x190] sm:$0xff]
        %v2607 = vld [vmem:[%s2555 + $0x198] sm:$0xff]
        %v2608 = vld [vmem:[%s2555 + $0x1a0] sm:$0xff]
        %v2609 = vld [vmem:[%s2555 + $0x1a8] sm:$0xff]
        %v2610 = vld [vmem:[%s2555 + $0x1b0] sm:$0xff]
        %v2611 = vld [vmem:[%s2555 + $0x1b8] sm:$0xff]
        %v2612 = vld [vmem:[%s2555 + $0x1c0] sm:$0xff]
        %v2613 = vld [vmem:[%s2555 + $0x1c8] sm:$0xff]
        %v2614 = vld [vmem:[%s2555 + $0x1d0] sm:$0xff]
        %v2615 = vld [vmem:[%s2555 + $0x1d8] sm:$0xff]
        %v2616 = vld [vmem:[%s2555 + $0x1e0] sm:$0xff]
        %v2617 = vld [vmem:[%s2555 + $0x1e8] sm:$0xff]
        %v2618 = vld [vmem:[%s2555 + $0x1f0] sm:$0xff]
        %v2619 = vld [vmem:[%s2555 + $0x1f8] sm:$0xff]
        %v2621 = vshrl.u32 %v2553, 16
        %v2623 = vshll.u32 %v2553, 16
        %v2625 = vrot.slane %v2623, 1
        %v2626 = vor.u32 %v2621, %v2625
        %v2628 = vshrl.u32 %v2554, 16
        %v2630 = vshll.u32 %v2554, 16
        %v2632 = vrot.slane %v2630, 1
        %v2633 = vor.u32 %v2628, %v2632
        %v2700 = vunpack.c.l.b16 %v2556
        %v2701 = vunpack.c.h.b16 %v2556
        %v2702 = vunpack.c.l.b16 %v2557
        %v2703 = vunpack.c.h.b16 %v2557
        %v2704 = vunpack.c.l.b16 %v2558
        %v2705 = vunpack.c.h.b16 %v2558
        %v2706 = vunpack.c.l.b16 %v2559
        %v2707 = vunpack.c.h.b16 %v2559
        %v2708 = vunpack.c.l.b16 %v2560
        %v2709 = vunpack.c.h.b16 %v2560
        %v2710 = vunpack.c.l.b16 %v2561
        %v2711 = vunpack.c.h.b16 %v2561
        %v2712 = vunpack.c.l.b16 %v2562
        %v2713 = vunpack.c.h.b16 %v2562
        %v2714 = vunpack.c.l.b16 %v2563
        %v2715 = vunpack.c.h.b16 %v2563
        %v2716 = vunpack.c.l.b16 %v2564
        %v2717 = vunpack.c.h.b16 %v2564
        %v2718 = vunpack.c.l.b16 %v2565
        %v2719 = vunpack.c.h.b16 %v2565
        %v2720 = vunpack.c.l.b16 %v2566
        %v2721 = vunpack.c.h.b16 %v2566
        %v2722 = vunpack.c.l.b16 %v2567
        %v2723 = vunpack.c.h.b16 %v2567
        %v2724 = vunpack.c.l.b16 %v2568
        %v2725 = vunpack.c.h.b16 %v2568
        %v2726 = vunpack.c.l.b16 %v2569
        %v2727 = vunpack.c.h.b16 %v2569
        %v2728 = vunpack.c.l.b16 %v2570
        %v2729 = vunpack.c.h.b16 %v2570
        %v2730 = vunpack.c.l.b16 %v2571
        %v2731 = vunpack.c.h.b16 %v2571
        %v2732 = vunpack.c.l.b16 %v2572
        %v2733 = vunpack.c.h.b16 %v2572
        %v2734 = vunpack.c.l.b16 %v2573
        %v2735 = vunpack.c.h.b16 %v2573
        %v2736 = vunpack.c.l.b16 %v2574
        %v2737 = vunpack.c.h.b16 %v2574
        %v2738 = vunpack.c.l.b16 %v2575
        %v2739 = vunpack.c.h.b16 %v2575
        %v2740 = vunpack.c.l.b16 %v2576
        %v2741 = vunpack.c.h.b16 %v2576
        %v2742 = vunpack.c.l.b16 %v2577
        %v2743 = vunpack.c.h.b16 %v2577
        %v2744 = vunpack.c.l.b16 %v2578
        %v2745 = vunpack.c.h.b16 %v2578
        %v2746 = vunpack.c.l.b16 %v2579
        %v2747 = vunpack.c.h.b16 %v2579
        %v2748 = vunpack.c.l.b16 %v2580
        %v2749 = vunpack.c.h.b16 %v2580
        %v2750 = vunpack.c.l.b16 %v2581
        %v2751 = vunpack.c.h.b16 %v2581
        %v2752 = vunpack.c.l.b16 %v2582
        %v2753 = vunpack.c.h.b16 %v2582
        %v2754 = vunpack.c.l.b16 %v2583
        %v2755 = vunpack.c.h.b16 %v2583
        %v2756 = vunpack.c.l.b16 %v2584
        %v2757 = vunpack.c.h.b16 %v2584
        %v2758 = vunpack.c.l.b16 %v2585
        %v2759 = vunpack.c.h.b16 %v2585
        %v2760 = vunpack.c.l.b16 %v2586
        %v2761 = vunpack.c.h.b16 %v2586
        %v2762 = vunpack.c.l.b16 %v2587
        %v2763 = vunpack.c.h.b16 %v2587
        %v2764 = vunpack.c.l.b16 %v2588
        %v2765 = vunpack.c.h.b16 %v2588
        %v2766 = vunpack.c.l.b16 %v2589
        %v2767 = vunpack.c.h.b16 %v2589
        %v2768 = vunpack.c.l.b16 %v2590
        %v2769 = vunpack.c.h.b16 %v2590
        %v2770 = vunpack.c.l.b16 %v2591
        %v2771 = vunpack.c.h.b16 %v2591
        %v2772 = vunpack.c.l.b16 %v2592
        %v2773 = vunpack.c.h.b16 %v2592
        %v2774 = vunpack.c.l.b16 %v2593
        %v2775 = vunpack.c.h.b16 %v2593
        %v2776 = vunpack.c.l.b16 %v2594
        %v2777 = vunpack.c.h.b16 %v2594
        %v2778 = vunpack.c.l.b16 %v2595
        %v2779 = vunpack.c.h.b16 %v2595
        %v2780 = vunpack.c.l.b16 %v2596
        %v2781 = vunpack.c.h.b16 %v2596
        %v2782 = vunpack.c.l.b16 %v2597
        %v2783 = vunpack.c.h.b16 %v2597
        %v2784 = vunpack.c.l.b16 %v2598
        %v2785 = vunpack.c.h.b16 %v2598
        %v2786 = vunpack.c.l.b16 %v2599
        %v2787 = vunpack.c.h.b16 %v2599
        %v2788 = vunpack.c.l.b16 %v2600
        %v2789 = vunpack.c.h.b16 %v2600
        %v2790 = vunpack.c.l.b16 %v2601
        %v2791 = vunpack.c.h.b16 %v2601
        %v2792 = vunpack.c.l.b16 %v2602
        %v2793 = vunpack.c.h.b16 %v2602
        %v2794 = vunpack.c.l.b16 %v2603
        %v2795 = vunpack.c.h.b16 %v2603
        %v2796 = vunpack.c.l.b16 %v2604
        %v2797 = vunpack.c.h.b16 %v2604
        %v2798 = vunpack.c.l.b16 %v2605
        %v2799 = vunpack.c.h.b16 %v2605
        %v2800 = vunpack.c.l.b16 %v2606
        %v2801 = vunpack.c.h.b16 %v2606
        %v2802 = vunpack.c.l.b16 %v2607
        %v2803 = vunpack.c.h.b16 %v2607
        %v2804 = vunpack.c.l.b16 %v2608
        %v2805 = vunpack.c.h.b16 %v2608
        %v2806 = vunpack.c.l.b16 %v2609
        %v2807 = vunpack.c.h.b16 %v2609
        %v2808 = vunpack.c.l.b16 %v2610
        %v2809 = vunpack.c.h.b16 %v2610
        %v2810 = vunpack.c.l.b16 %v2611
        %v2811 = vunpack.c.h.b16 %v2611
        %v2812 = vunpack.c.l.b16 %v2612
        %v2813 = vunpack.c.h.b16 %v2612
        %v2814 = vunpack.c.l.b16 %v2613
        %v2815 = vunpack.c.h.b16 %v2613
        %v2816 = vunpack.c.l.b16 %v2614
        %v2817 = vunpack.c.h.b16 %v2614
        %v2818 = vunpack.c.l.b16 %v2615
        %v2819 = vunpack.c.h.b16 %v2615
        %v2820 = vunpack.c.l.b16 %v2616
        %v2821 = vunpack.c.h.b16 %v2616
        %v2822 = vunpack.c.l.b16 %v2617
        %v2823 = vunpack.c.h.b16 %v2617
        %v2824 = vunpack.c.l.b16 %v2618
        %v2825 = vunpack.c.h.b16 %v2618
        %v2826 = vunpack.c.l.b16 %v2619
        %v2827 = vunpack.c.h.b16 %v2619
        %v2828 = vpack.c.b16 %v2704, %v2700
        %v2829 = vpack.c.b16 %v2705, %v2701
        %v2830 = vpack.c.b16 %v2706, %v2702
        %v2831 = vpack.c.b16 %v2707, %v2703
        %v2832 = vpack.c.b16 %v2712, %v2708
        %v2833 = vpack.c.b16 %v2713, %v2709
        %v2834 = vpack.c.b16 %v2714, %v2710
        %v2835 = vpack.c.b16 %v2715, %v2711
        %v2836 = vpack.c.b16 %v2720, %v2716
        %v2837 = vpack.c.b16 %v2721, %v2717
        %v2838 = vpack.c.b16 %v2722, %v2718
        %v2839 = vpack.c.b16 %v2723, %v2719
        %v2840 = vpack.c.b16 %v2728, %v2724
        %v2841 = vpack.c.b16 %v2729, %v2725
        %v2842 = vpack.c.b16 %v2730, %v2726
        %v2843 = vpack.c.b16 %v2731, %v2727
        %v2844 = vpack.c.b16 %v2736, %v2732
        %v2845 = vpack.c.b16 %v2737, %v2733
        %v2846 = vpack.c.b16 %v2738, %v2734
        %v2847 = vpack.c.b16 %v2739, %v2735
        %v2848 = vpack.c.b16 %v2744, %v2740
        %v2849 = vpack.c.b16 %v2745, %v2741
        %v2850 = vpack.c.b16 %v2746, %v2742
        %v2851 = vpack.c.b16 %v2747, %v2743
        %v2852 = vpack.c.b16 %v2752, %v2748
        %v2853 = vpack.c.b16 %v2753, %v2749
        %v2854 = vpack.c.b16 %v2754, %v2750
        %v2855 = vpack.c.b16 %v2755, %v2751
        %v2856 = vpack.c.b16 %v2760, %v2756
        %v2857 = vpack.c.b16 %v2761, %v2757
        %v2858 = vpack.c.b16 %v2762, %v2758
        %v2859 = vpack.c.b16 %v2763, %v2759
        %v2860 = vpack.c.b16 %v2768, %v2764
        %v2861 = vpack.c.b16 %v2769, %v2765
        %v2862 = vpack.c.b16 %v2770, %v2766
        %v2863 = vpack.c.b16 %v2771, %v2767
        %v2864 = vpack.c.b16 %v2776, %v2772
        %v2865 = vpack.c.b16 %v2777, %v2773
        %v2866 = vpack.c.b16 %v2778, %v2774
        %v2867 = vpack.c.b16 %v2779, %v2775
        %v2868 = vpack.c.b16 %v2784, %v2780
        %v2869 = vpack.c.b16 %v2785, %v2781
        %v2870 = vpack.c.b16 %v2786, %v2782
        %v2871 = vpack.c.b16 %v2787, %v2783
        %v2872 = vpack.c.b16 %v2792, %v2788
        %v2873 = vpack.c.b16 %v2793, %v2789
        %v2874 = vpack.c.b16 %v2794, %v2790
        %v2875 = vpack.c.b16 %v2795, %v2791
        %v2876 = vpack.c.b16 %v2800, %v2796
        %v2877 = vpack.c.b16 %v2801, %v2797
        %v2878 = vpack.c.b16 %v2802, %v2798
        %v2879 = vpack.c.b16 %v2803, %v2799
        %v2880 = vpack.c.b16 %v2808, %v2804
        %v2881 = vpack.c.b16 %v2809, %v2805
        %v2882 = vpack.c.b16 %v2810, %v2806
        %v2883 = vpack.c.b16 %v2811, %v2807
        %v2884 = vpack.c.b16 %v2816, %v2812
        %v2885 = vpack.c.b16 %v2817, %v2813
        %v2886 = vpack.c.b16 %v2818, %v2814
        %v2887 = vpack.c.b16 %v2819, %v2815
        %v2888 = vpack.c.b16 %v2824, %v2820
        %v2889 = vpack.c.b16 %v2825, %v2821
        %v2890 = vpack.c.b16 %v2826, %v2822
        %v2891 = vpack.c.b16 %v2827, %v2823
        %2956 = vmatprep.subr.bf16.mxu0 %v2829
        %2957 = vmatpush1.bf16.msra.mxu0 %v2828
        %2958 = vmatprep.subr.bf16.mxu0 %v2833
        %2959 = vmatpush1.bf16.msra.mxu0 %v2832
        %2960 = vmatprep.subr.bf16.mxu0 %v2837
        %2961 = vmatpush1.bf16.msra.mxu0 %v2836
        %2962 = vmatprep.subr.bf16.mxu0 %v2841
        %2963 = vmatpush1.bf16.msra.mxu0 %v2840
        %2964 = vmatprep.subr.bf16.mxu0 %v2845
        %2965 = vmatpush1.bf16.msra.mxu0 %v2844
        %2966 = vmatprep.subr.bf16.mxu0 %v2849
        %2967 = vmatpush1.bf16.msra.mxu0 %v2848
        %2968 = vmatprep.subr.bf16.mxu0 %v2853
        %2969 = vmatpush1.bf16.msra.mxu0 %v2852
        %2970 = vmatprep.subr.bf16.mxu0 %v2857
        %2971 = vmatpush1.bf16.msra.mxu0 %v2856
        %2972 = vmatprep.subr.bf16.mxu0 %v2861
        %2973 = vmatpush1.bf16.msra.mxu0 %v2860
        %2974 = vmatprep.subr.bf16.mxu0 %v2865
        %2975 = vmatpush1.bf16.msra.mxu0 %v2864
        %2976 = vmatprep.subr.bf16.mxu0 %v2869
        %2977 = vmatpush1.bf16.msra.mxu0 %v2868
        %2978 = vmatprep.subr.bf16.mxu0 %v2873
        %2979 = vmatpush1.bf16.msra.mxu0 %v2872
        %2980 = vmatprep.subr.bf16.mxu0 %v2877
        %2981 = vmatpush1.bf16.msra.mxu0 %v2876
        %2982 = vmatprep.subr.bf16.mxu0 %v2881
        %2983 = vmatpush1.bf16.msra.mxu0 %v2880
        %2984 = vmatprep.subr.bf16.mxu0 %v2885
        %2985 = vmatpush1.bf16.msra.mxu0 %v2884
        %2986 = vmatprep.subr.bf16.mxu0 %v2889
        %2987 = vmatpush1.bf16.msra.mxu0 %v2888
        %2988 = vmatprep.mubr.bf16.mxu0 %v2633
        %2989 = vmatmul.mubr.bf16.gmra.mrb[0].mxu0 %v2626
        %v2990 = vpop.f32.mrb[0].mxu0
        %v2991 = vadd.f32 0.0, %v2990
        %v2992 = vpop.f32.mrb[0].mxu0
        %v2993 = vadd.f32 0.0, %v2992
        %v2994 = vpop.f32.mrb[0].mxu0
        %v2995 = vpop.f32.mrb[0].mxu0
        %2996 = vdwg.mxu0
        %2997 = vmatprep.subr.bf16.mxu0 %v2831
        %2998 = vmatpush1.bf16.msra.mxu0 %v2830
        %2999 = vmatprep.subr.bf16.mxu0 %v2835
        %3000 = vmatpush1.bf16.msra.mxu0 %v2834
        %3001 = vmatprep.subr.bf16.mxu0 %v2839
        %3002 = vmatpush1.bf16.msra.mxu0 %v2838
        %3003 = vmatprep.subr.bf16.mxu0 %v2843
        %3004 = vmatpush1.bf16.msra.mxu0 %v2842
        %3005 = vmatprep.subr.bf16.mxu0 %v2847
        %3006 = vmatpush1.bf16.msra.mxu0 %v2846
        %3007 = vmatprep.subr.bf16.mxu0 %v2851
        %3008 = vmatpush1.bf16.msra.mxu0 %v2850
        %3009 = vmatprep.subr.bf16.mxu0 %v2855
        %3010 = vmatpush1.bf16.msra.mxu0 %v2854
        %3011 = vmatprep.subr.bf16.mxu0 %v2859
        %3012 = vmatpush1.bf16.msra.mxu0 %v2858
        %3013 = vmatprep.subr.bf16.mxu0 %v2863
        %3014 = vmatpush1.bf16.msra.mxu0 %v2862
        %3015 = vmatprep.subr.bf16.mxu0 %v2867
        %3016 = vmatpush1.bf16.msra.mxu0 %v2866
        %3017 = vmatprep.subr.bf16.mxu0 %v2871
        %3018 = vmatpush1.bf16.msra.mxu0 %v2870
        %3019 = vmatprep.subr.bf16.mxu0 %v2875
        %3020 = vmatpush1.bf16.msra.mxu0 %v2874
        %3021 = vmatprep.subr.bf16.mxu0 %v2879
        %3022 = vmatpush1.bf16.msra.mxu0 %v2878
        %3023 = vmatprep.subr.bf16.mxu0 %v2883
        %3024 = vmatpush1.bf16.msra.mxu0 %v2882
        %3025 = vmatprep.subr.bf16.mxu0 %v2887
        %3026 = vmatpush1.bf16.msra.mxu0 %v2886
        %3027 = vmatprep.subr.bf16.mxu0 %v2891
        %3028 = vmatpush1.bf16.msra.mxu0 %v2890
        %3029 = vmatprep.mubr.bf16.mxu0 %v2633
        %3030 = vmatmul.mubr.bf16.gmra.mrb[0].mxu0 %v2626
        %v3031 = vpop.f32.mrb[0].mxu0
        %v3032 = vadd.f32 0.0, %v3031
        %v3033 = vpop.f32.mrb[0].mxu0
        %v3034 = vadd.f32 0.0, %v3033
        %v3035 = vpop.f32.mrb[0].mxu0
        %v3036 = vpop.f32.mrb[0].mxu0
        %3037 = vdwg.mxu0
        %v3102 = vunpack.c.l.b16 %v2487
        %v3103 = vunpack.c.h.b16 %v2487
        %v3104 = vunpack.c.l.b16 %v2488
        %v3105 = vunpack.c.h.b16 %v2488
        %v3106 = vunpack.c.l.b16 %v2489
        %v3107 = vunpack.c.h.b16 %v2489
        %v3108 = vunpack.c.l.b16 %v2490
        %v3109 = vunpack.c.h.b16 %v2490
        %v3110 = vunpack.c.l.b16 %v2491
        %v3111 = vunpack.c.h.b16 %v2491
        %v3112 = vunpack.c.l.b16 %v2492
        %v3113 = vunpack.c.h.b16 %v2492
        %v3114 = vunpack.c.l.b16 %v2493
        %v3115 = vunpack.c.h.b16 %v2493
        %v3116 = vunpack.c.l.b16 %v2494
        %v3117 = vunpack.c.h.b16 %v2494
        %v3118 = vunpack.c.l.b16 %v2495
        %v3119 = vunpack.c.h.b16 %v2495
        %v3120 = vunpack.c.l.b16 %v2496
        %v3121 = vunpack.c.h.b16 %v2496
        %v3122 = vunpack.c.l.b16 %v2497
        %v3123 = vunpack.c.h.b16 %v2497
        %v3124 = vunpack.c.l.b16 %v2498
        %v3125 = vunpack.c.h.b16 %v2498
        %v3126 = vunpack.c.l.b16 %v2499
        %v3127 = vunpack.c.h.b16 %v2499
        %v3128 = vunpack.c.l.b16 %v2500
        %v3129 = vunpack.c.h.b16 %v2500
        %v3130 = vunpack.c.l.b16 %v2501
        %v3131 = vunpack.c.h.b16 %v2501
        %v3132 = vunpack.c.l.b16 %v2502
        %v3133 = vunpack.c.h.b16 %v2502
        %v3134 = vunpack.c.l.b16 %v2503
        %v3135 = vunpack.c.h.b16 %v2503
        %v3136 = vunpack.c.l.b16 %v2504
        %v3137 = vunpack.c.h.b16 %v2504
        %v3138 = vunpack.c.l.b16 %v2505
        %v3139 = vunpack.c.h.b16 %v2505
        %v3140 = vunpack.c.l.b16 %v2506
        %v3141 = vunpack.c.h.b16 %v2506
        %v3142 = vunpack.c.l.b16 %v2507
        %v3143 = vunpack.c.h.b16 %v2507
        %v3144 = vunpack.c.l.b16 %v2508
        %v3145 = vunpack.c.h.b16 %v2508
        %v3146 = vunpack.c.l.b16 %v2509
        %v3147 = vunpack.c.h.b16 %v2509
        %v3148 = vunpack.c.l.b16 %v2510
        %v3149 = vunpack.c.h.b16 %v2510
        %v3150 = vunpack.c.l.b16 %v2511
        %v3151 = vunpack.c.h.b16 %v2511
        %v3152 = vunpack.c.l.b16 %v2512
        %v3153 = vunpack.c.h.b16 %v2512
        %v3154 = vunpack.c.l.b16 %v2513
        %v3155 = vunpack.c.h.b16 %v2513
        %v3156 = vunpack.c.l.b16 %v2514
        %v3157 = vunpack.c.h.b16 %v2514
        %v3158 = vunpack.c.l.b16 %v2515
        %v3159 = vunpack.c.h.b16 %v2515
        %v3160 = vunpack.c.l.b16 %v2516
        %v3161 = vunpack.c.h.b16 %v2516
        %v3162 = vunpack.c.l.b16 %v2517
        %v3163 = vunpack.c.h.b16 %v2517
        %v3164 = vunpack.c.l.b16 %v2518
        %v3165 = vunpack.c.h.b16 %v2518
        %v3166 = vunpack.c.l.b16 %v2519
        %v3167 = vunpack.c.h.b16 %v2519
        %v3168 = vunpack.c.l.b16 %v2520
        %v3169 = vunpack.c.h.b16 %v2520
        %v3170 = vunpack.c.l.b16 %v2521
        %v3171 = vunpack.c.h.b16 %v2521
        %v3172 = vunpack.c.l.b16 %v2522
        %v3173 = vunpack.c.h.b16 %v2522
        %v3174 = vunpack.c.l.b16 %v2523
        %v3175 = vunpack.c.h.b16 %v2523
        %v3176 = vunpack.c.l.b16 %v2524
        %v3177 = vunpack.c.h.b16 %v2524
        %v3178 = vunpack.c.l.b16 %v2525
        %v3179 = vunpack.c.h.b16 %v2525
        %v3180 = vunpack.c.l.b16 %v2526
        %v3181 = vunpack.c.h.b16 %v2526
        %v3182 = vunpack.c.l.b16 %v2527
        %v3183 = vunpack.c.h.b16 %v2527
        %v3184 = vunpack.c.l.b16 %v2528
        %v3185 = vunpack.c.h.b16 %v2528
        %v3186 = vunpack.c.l.b16 %v2529
        %v3187 = vunpack.c.h.b16 %v2529
        %v3188 = vunpack.c.l.b16 %v2530
        %v3189 = vunpack.c.h.b16 %v2530
        %v3190 = vunpack.c.l.b16 %v2531
        %v3191 = vunpack.c.h.b16 %v2531
        %v3192 = vunpack.c.l.b16 %v2532
        %v3193 = vunpack.c.h.b16 %v2532
        %v3194 = vunpack.c.l.b16 %v2533
        %v3195 = vunpack.c.h.b16 %v2533
        %v3196 = vunpack.c.l.b16 %v2534
        %v3197 = vunpack.c.h.b16 %v2534
        %v3198 = vunpack.c.l.b16 %v2535
        %v3199 = vunpack.c.h.b16 %v2535
        %v3200 = vunpack.c.l.b16 %v2536
        %v3201 = vunpack.c.h.b16 %v2536
        %v3202 = vunpack.c.l.b16 %v2537
        %v3203 = vunpack.c.h.b16 %v2537
        %v3204 = vunpack.c.l.b16 %v2538
        %v3205 = vunpack.c.h.b16 %v2538
        %v3206 = vunpack.c.l.b16 %v2539
        %v3207 = vunpack.c.h.b16 %v2539
        %v3208 = vunpack.c.l.b16 %v2540
        %v3209 = vunpack.c.h.b16 %v2540
        %v3210 = vunpack.c.l.b16 %v2541
        %v3211 = vunpack.c.h.b16 %v2541
        %v3212 = vunpack.c.l.b16 %v2542
        %v3213 = vunpack.c.h.b16 %v2542
        %v3214 = vunpack.c.l.b16 %v2543
        %v3215 = vunpack.c.h.b16 %v2543
        %v3216 = vunpack.c.l.b16 %v2544
        %v3217 = vunpack.c.h.b16 %v2544
        %v3218 = vunpack.c.l.b16 %v2545
        %v3219 = vunpack.c.h.b16 %v2545
        %v3220 = vunpack.c.l.b16 %v2546
        %v3221 = vunpack.c.h.b16 %v2546
        %v3222 = vunpack.c.l.b16 %v2547
        %v3223 = vunpack.c.h.b16 %v2547
        %v3224 = vunpack.c.l.b16 %v2548
        %v3225 = vunpack.c.h.b16 %v2548
        %v3226 = vunpack.c.l.b16 %v2549
        %v3227 = vunpack.c.h.b16 %v2549
        %v3228 = vunpack.c.l.b16 %v2550
        %v3229 = vunpack.c.h.b16 %v2550
        %v3230 = vpack.c.b16 %v3106, %v3102
        %v3231 = vpack.c.b16 %v3107, %v3103
        %v3232 = vpack.c.b16 %v3108, %v3104
        %v3233 = vpack.c.b16 %v3109, %v3105
        %v3234 = vpack.c.b16 %v3114, %v3110
        %v3235 = vpack.c.b16 %v3115, %v3111
        %v3236 = vpack.c.b16 %v3116, %v3112
        %v3237 = vpack.c.b16 %v3117, %v3113
        %v3238 = vpack.c.b16 %v3122, %v3118
        %v3239 = vpack.c.b16 %v3123, %v3119
        %v3240 = vpack.c.b16 %v3124, %v3120
        %v3241 = vpack.c.b16 %v3125, %v3121
        %v3242 = vpack.c.b16 %v3130, %v3126
        %v3243 = vpack.c.b16 %v3131, %v3127
        %v3244 = vpack.c.b16 %v3132, %v3128
        %v3245 = vpack.c.b16 %v3133, %v3129
        %v3246 = vpack.c.b16 %v3138, %v3134
        %v3247 = vpack.c.b16 %v3139, %v3135
        %v3248 = vpack.c.b16 %v3140, %v3136
        %v3249 = vpack.c.b16 %v3141, %v3137
        %v3250 = vpack.c.b16 %v3146, %v3142
        %v3251 = vpack.c.b16 %v3147, %v3143
        %v3252 = vpack.c.b16 %v3148, %v3144
        %v3253 = vpack.c.b16 %v3149, %v3145
        %v3254 = vpack.c.b16 %v3154, %v3150
        %v3255 = vpack.c.b16 %v3155, %v3151
        %v3256 = vpack.c.b16 %v3156, %v3152
        %v3257 = vpack.c.b16 %v3157, %v3153
        %v3258 = vpack.c.b16 %v3162, %v3158
        %v3259 = vpack.c.b16 %v3163, %v3159
        %v3260 = vpack.c.b16 %v3164, %v3160
        %v3261 = vpack.c.b16 %v3165, %v3161
        %v3262 = vpack.c.b16 %v3170, %v3166
        %v3263 = vpack.c.b16 %v3171, %v3167
        %v3264 = vpack.c.b16 %v3172, %v3168
        %v3265 = vpack.c.b16 %v3173, %v3169
        %v3266 = vpack.c.b16 %v3178, %v3174
        %v3267 = vpack.c.b16 %v3179, %v3175
        %v3268 = vpack.c.b16 %v3180, %v3176
        %v3269 = vpack.c.b16 %v3181, %v3177
        %v3270 = vpack.c.b16 %v3186, %v3182
        %v3271 = vpack.c.b16 %v3187, %v3183
        %v3272 = vpack.c.b16 %v3188, %v3184
        %v3273 = vpack.c.b16 %v3189, %v3185
        %v3274 = vpack.c.b16 %v3194, %v3190
        %v3275 = vpack.c.b16 %v3195, %v3191
        %v3276 = vpack.c.b16 %v3196, %v3192
        %v3277 = vpack.c.b16 %v3197, %v3193
        %v3278 = vpack.c.b16 %v3202, %v3198
        %v3279 = vpack.c.b16 %v3203, %v3199
        %v3280 = vpack.c.b16 %v3204, %v3200
        %v3281 = vpack.c.b16 %v3205, %v3201
        %v3282 = vpack.c.b16 %v3210, %v3206
        %v3283 = vpack.c.b16 %v3211, %v3207
        %v3284 = vpack.c.b16 %v3212, %v3208
        %v3285 = vpack.c.b16 %v3213, %v3209
        %v3286 = vpack.c.b16 %v3218, %v3214
        %v3287 = vpack.c.b16 %v3219, %v3215
        %v3288 = vpack.c.b16 %v3220, %v3216
        %v3289 = vpack.c.b16 %v3221, %v3217
        %v3290 = vpack.c.b16 %v3226, %v3222
        %v3291 = vpack.c.b16 %v3227, %v3223
        %v3292 = vpack.c.b16 %v3228, %v3224
        %v3293 = vpack.c.b16 %v3229, %v3225
        %3358 = vmatprep.subr.bf16.mxu0 %v3231
        %3359 = vmatpush1.bf16.msra.mxu0 %v3230
        %3360 = vmatprep.subr.bf16.mxu0 %v3235
        %3361 = vmatpush1.bf16.msra.mxu0 %v3234
        %3362 = vmatprep.subr.bf16.mxu0 %v3239
        %3363 = vmatpush1.bf16.msra.mxu0 %v3238
        %3364 = vmatprep.subr.bf16.mxu0 %v3243
        %3365 = vmatpush1.bf16.msra.mxu0 %v3242
        %3366 = vmatprep.subr.bf16.mxu0 %v3247
        %3367 = vmatpush1.bf16.msra.mxu0 %v3246
        %3368 = vmatprep.subr.bf16.mxu0 %v3251
        %3369 = vmatpush1.bf16.msra.mxu0 %v3250
        %3370 = vmatprep.subr.bf16.mxu0 %v3255
        %3371 = vmatpush1.bf16.msra.mxu0 %v3254
        %3372 = vmatprep.subr.bf16.mxu0 %v3259
        %3373 = vmatpush1.bf16.msra.mxu0 %v3258
        %3374 = vmatprep.subr.bf16.mxu0 %v3263
        %3375 = vmatpush1.bf16.msra.mxu0 %v3262
        %3376 = vmatprep.subr.bf16.mxu0 %v3267
        %3377 = vmatpush1.bf16.msra.mxu0 %v3266
        %3378 = vmatprep.subr.bf16.mxu0 %v3271
        %3379 = vmatpush1.bf16.msra.mxu0 %v3270
        %3380 = vmatprep.subr.bf16.mxu0 %v3275
        %3381 = vmatpush1.bf16.msra.mxu0 %v3274
        %3382 = vmatprep.subr.bf16.mxu0 %v3279
        %3383 = vmatpush1.bf16.msra.mxu0 %v3278
        %3384 = vmatprep.subr.bf16.mxu0 %v3283
        %3385 = vmatpush1.bf16.msra.mxu0 %v3282
        %3386 = vmatprep.subr.bf16.mxu0 %v3287
        %3387 = vmatpush1.bf16.msra.mxu0 %v3286
        %3388 = vmatprep.subr.bf16.mxu0 %v3291
        %3389 = vmatpush1.bf16.msra.mxu0 %v3290
        %3390 = vmatprep.mubr.bf16.mxu0 %v2486
        %3391 = vmatmul.mubr.bf16.gmra.mrb[0].mxu0 %v2485
        %v3392 = vpop.f32.mrb[0].mxu0
        %v3393 = vadd.f32 %v2991, %v3392
        %v3394 = vpop.f32.mrb[0].mxu0
        %v3395 = vadd.f32 %v2993, %v3394
        %v3396 = vpop.f32.mrb[0].mxu0
        %v3397 = vpop.f32.mrb[0].mxu0
        %3398 = vdwg.mxu0
        %3399 = vmatprep.subr.bf16.mxu0 %v3233
        %3400 = vmatpush1.bf16.msra.mxu0 %v3232
        %3401 = vmatprep.subr.bf16.mxu0 %v3237
        %3402 = vmatpush1.bf16.msra.mxu0 %v3236
        %3403 = vmatprep.subr.bf16.mxu0 %v3241
        %3404 = vmatpush1.bf16.msra.mxu0 %v3240
        %3405 = vmatprep.subr.bf16.mxu0 %v3245
        %3406 = vmatpush1.bf16.msra.mxu0 %v3244
        %3407 = vmatprep.subr.bf16.mxu0 %v3249
        %3408 = vmatpush1.bf16.msra.mxu0 %v3248
        %3409 = vmatprep.subr.bf16.mxu0 %v3253
        %3410 = vmatpush1.bf16.msra.mxu0 %v3252
        %3411 = vmatprep.subr.bf16.mxu0 %v3257
        %3412 = vmatpush1.bf16.msra.mxu0 %v3256
        %3413 = vmatprep.subr.bf16.mxu0 %v3261
        %3414 = vmatpush1.bf16.msra.mxu0 %v3260
        %3415 = vmatprep.subr.bf16.mxu0 %v3265
        %3416 = vmatpush1.bf16.msra.mxu0 %v3264
        %3417 = vmatprep.subr.bf16.mxu0 %v3269
        %3418 = vmatpush1.bf16.msra.mxu0 %v3268
        %3419 = vmatprep.subr.bf16.mxu0 %v3273
        %3420 = vmatpush1.bf16.msra.mxu0 %v3272
        %3421 = vmatprep.subr.bf16.mxu0 %v3277
        %3422 = vmatpush1.bf16.msra.mxu0 %v3276
        %3423 = vmatprep.subr.bf16.mxu0 %v3281
        %3424 = vmatpush1.bf16.msra.mxu0 %v3280
        %3425 = vmatprep.subr.bf16.mxu0 %v3285
        %3426 = vmatpush1.bf16.msra.mxu0 %v3284
        %3427 = vmatprep.subr.bf16.mxu0 %v3289
        %3428 = vmatpush1.bf16.msra.mxu0 %v3288
        %3429 = vmatprep.subr.bf16.mxu0 %v3293
        %3430 = vmatpush1.bf16.msra.mxu0 %v3292
        %3431 = vmatprep.mubr.bf16.mxu0 %v2486
        %3432 = vmatmul.mubr.bf16.gmra.mrb[0].mxu0 %v2485
        %v3433 = vpop.f32.mrb[0].mxu0
        %v3434 = vadd.f32 %v3032, %v3433
        %v3435 = vpop.f32.mrb[0].mxu0
        %v3436 = vadd.f32 %v3034, %v3435
        %v3437 = vpop.f32.mrb[0].mxu0
        %v3438 = vpop.f32.mrb[0].mxu0
        %3439 = vdwg.mxu0
        %v3440 = vld [vmem:[#allocation3] sm:$0x3c]
        %v3441 = vld [vmem:[#allocation3 + $0x8] sm:$0x3c]
        %v3442 = vpack.c.bf16 %v3440, %v3440
        %v3443 = vpack.c.bf16 %v3441, %v3441
        %s3444 = scalar_lea.vmem [#allocation8], 1024
        %v3445 = vld [vmem:[%s3444] sm:$0xff]
        %v3446 = vld [vmem:[%s3444 + $0x8] sm:$0xff]
        %v3447 = vld [vmem:[%s3444 + $0x10] sm:$0xff]
        %v3448 = vld [vmem:[%s3444 + $0x18] sm:$0xff]
        %v3449 = vld [vmem:[%s3444 + $0x20] sm:$0xff]
        %v3450 = vld [vmem:[%s3444 + $0x28] sm:$0xff]
        %v3451 = vld [vmem:[%s3444 + $0x30] sm:$0xff]
        %v3452 = vld [vmem:[%s3444 + $0x38] sm:$0xff]
        %v3453 = vld [vmem:[%s3444 + $0x40] sm:$0xff]
        %v3454 = vld [vmem:[%s3444 + $0x48] sm:$0xff]
        %v3455 = vld [vmem:[%s3444 + $0x50] sm:$0xff]
        %v3456 = vld [vmem:[%s3444 + $0x58] sm:$0xff]
        %v3457 = vld [vmem:[%s3444 + $0x60] sm:$0xff]
        %v3458 = vld [vmem:[%s3444 + $0x68] sm:$0xff]
        %v3459 = vld [vmem:[%s3444 + $0x70] sm:$0xff]
        %v3460 = vld [vmem:[%s3444 + $0x78] sm:$0xff]
        %v3461 = vld [vmem:[%s3444 + $0x80] sm:$0xff]
        %v3462 = vld [vmem:[%s3444 + $0x88] sm:$0xff]
        %v3463 = vld [vmem:[%s3444 + $0x90] sm:$0xff]
        %v3464 = vld [vmem:[%s3444 + $0x98] sm:$0xff]
        %v3465 = vld [vmem:[%s3444 + $0xa0] sm:$0xff]
        %v3466 = vld [vmem:[%s3444 + $0xa8] sm:$0xff]
        %v3467 = vld [vmem:[%s3444 + $0xb0] sm:$0xff]
        %v3468 = vld [vmem:[%s3444 + $0xb8] sm:$0xff]
        %v3469 = vld [vmem:[%s3444 + $0xc0] sm:$0xff]
        %v3470 = vld [vmem:[%s3444 + $0xc8] sm:$0xff]
        %v3471 = vld [vmem:[%s3444 + $0xd0] sm:$0xff]
        %v3472 = vld [vmem:[%s3444 + $0xd8] sm:$0xff]
        %v3473 = vld [vmem:[%s3444 + $0xe0] sm:$0xff]
        %v3474 = vld [vmem:[%s3444 + $0xe8] sm:$0xff]
        %v3475 = vld [vmem:[%s3444 + $0xf0] sm:$0xff]
        %v3476 = vld [vmem:[%s3444 + $0xf8] sm:$0xff]
        %v3477 = vld [vmem:[%s3444 + $0x100] sm:$0xff]
        %v3478 = vld [vmem:[%s3444 + $0x108] sm:$0xff]
        %v3479 = vld [vmem:[%s3444 + $0x110] sm:$0xff]
        %v3480 = vld [vmem:[%s3444 + $0x118] sm:$0xff]
        %v3481 = vld [vmem:[%s3444 + $0x120] sm:$0xff]
        %v3482 = vld [vmem:[%s3444 + $0x128] sm:$0xff]
        %v3483 = vld [vmem:[%s3444 + $0x130] sm:$0xff]
        %v3484 = vld [vmem:[%s3444 + $0x138] sm:$0xff]
        %v3485 = vld [vmem:[%s3444 + $0x140] sm:$0xff]
        %v3486 = vld [vmem:[%s3444 + $0x148] sm:$0xff]
        %v3487 = vld [vmem:[%s3444 + $0x150] sm:$0xff]
        %v3488 = vld [vmem:[%s3444 + $0x158] sm:$0xff]
        %v3489 = vld [vmem:[%s3444 + $0x160] sm:$0xff]
        %v3490 = vld [vmem:[%s3444 + $0x168] sm:$0xff]
        %v3491 = vld [vmem:[%s3444 + $0x170] sm:$0xff]
        %v3492 = vld [vmem:[%s3444 + $0x178] sm:$0xff]
        %v3493 = vld [vmem:[%s3444 + $0x180] sm:$0xff]
        %v3494 = vld [vmem:[%s3444 + $0x188] sm:$0xff]
        %v3495 = vld [vmem:[%s3444 + $0x190] sm:$0xff]
        %v3496 = vld [vmem:[%s3444 + $0x198] sm:$0xff]
        %v3497 = vld [vmem:[%s3444 + $0x1a0] sm:$0xff]
        %v3498 = vld [vmem:[%s3444 + $0x1a8] sm:$0xff]
        %v3499 = vld [vmem:[%s3444 + $0x1b0] sm:$0xff]
        %v3500 = vld [vmem:[%s3444 + $0x1b8] sm:$0xff]
        %v3501 = vld [vmem:[%s3444 + $0x1c0] sm:$0xff]
        %v3502 = vld [vmem:[%s3444 + $0x1c8] sm:$0xff]
        %v3503 = vld [vmem:[%s3444 + $0x1d0] sm:$0xff]
        %v3504 = vld [vmem:[%s3444 + $0x1d8] sm:$0xff]
        %v3505 = vld [vmem:[%s3444 + $0x1e0] sm:$0xff]
        %v3506 = vld [vmem:[%s3444 + $0x1e8] sm:$0xff]
        %v3507 = vld [vmem:[%s3444 + $0x1f0] sm:$0xff]
        %v3508 = vld [vmem:[%s3444 + $0x1f8] sm:$0xff]
        %v3511 = vrot.slane %v3442, 1
        %v3512 = vrot.slane %v3443, 1
        %v3579 = vunpack.c.l.b16 %v3445
        %v3580 = vunpack.c.h.b16 %v3445
        %v3581 = vunpack.c.l.b16 %v3446
        %v3582 = vunpack.c.h.b16 %v3446
        %v3583 = vunpack.c.l.b16 %v3447
        %v3584 = vunpack.c.h.b16 %v3447
        %v3585 = vunpack.c.l.b16 %v3448
        %v3586 = vunpack.c.h.b16 %v3448
        %v3587 = vunpack.c.l.b16 %v3449
        %v3588 = vunpack.c.h.b16 %v3449
        %v3589 = vunpack.c.l.b16 %v3450
        %v3590 = vunpack.c.h.b16 %v3450
        %v3591 = vunpack.c.l.b16 %v3451
        %v3592 = vunpack.c.h.b16 %v3451
        %v3593 = vunpack.c.l.b16 %v3452
        %v3594 = vunpack.c.h.b16 %v3452
        %v3595 = vunpack.c.l.b16 %v3453
        %v3596 = vunpack.c.h.b16 %v3453
        %v3597 = vunpack.c.l.b16 %v3454
        %v3598 = vunpack.c.h.b16 %v3454
        %v3599 = vunpack.c.l.b16 %v3455
        %v3600 = vunpack.c.h.b16 %v3455
        %v3601 = vunpack.c.l.b16 %v3456
        %v3602 = vunpack.c.h.b16 %v3456
        %v3603 = vunpack.c.l.b16 %v3457
        %v3604 = vunpack.c.h.b16 %v3457
        %v3605 = vunpack.c.l.b16 %v3458
        %v3606 = vunpack.c.h.b16 %v3458
        %v3607 = vunpack.c.l.b16 %v3459
        %v3608 = vunpack.c.h.b16 %v3459
        %v3609 = vunpack.c.l.b16 %v3460
        %v3610 = vunpack.c.h.b16 %v3460
        %v3611 = vunpack.c.l.b16 %v3461
        %v3612 = vunpack.c.h.b16 %v3461
        %v3613 = vunpack.c.l.b16 %v3462
        %v3614 = vunpack.c.h.b16 %v3462
        %v3615 = vunpack.c.l.b16 %v3463
        %v3616 = vunpack.c.h.b16 %v3463
        %v3617 = vunpack.c.l.b16 %v3464
        %v3618 = vunpack.c.h.b16 %v3464
        %v3619 = vunpack.c.l.b16 %v3465
        %v3620 = vunpack.c.h.b16 %v3465
        %v3621 = vunpack.c.l.b16 %v3466
        %v3622 = vunpack.c.h.b16 %v3466
        %v3623 = vunpack.c.l.b16 %v3467
        %v3624 = vunpack.c.h.b16 %v3467
        %v3625 = vunpack.c.l.b16 %v3468
        %v3626 = vunpack.c.h.b16 %v3468
        %v3627 = vunpack.c.l.b16 %v3469
        %v3628 = vunpack.c.h.b16 %v3469
        %v3629 = vunpack.c.l.b16 %v3470
        %v3630 = vunpack.c.h.b16 %v3470
        %v3631 = vunpack.c.l.b16 %v3471
        %v3632 = vunpack.c.h.b16 %v3471
        %v3633 = vunpack.c.l.b16 %v3472
        %v3634 = vunpack.c.h.b16 %v3472
        %v3635 = vunpack.c.l.b16 %v3473
        %v3636 = vunpack.c.h.b16 %v3473
        %v3637 = vunpack.c.l.b16 %v3474
        %v3638 = vunpack.c.h.b16 %v3474
        %v3639 = vunpack.c.l.b16 %v3475
        %v3640 = vunpack.c.h.b16 %v3475
        %v3641 = vunpack.c.l.b16 %v3476
        %v3642 = vunpack.c.h.b16 %v3476
        %v3643 = vunpack.c.l.b16 %v3477
        %v3644 = vunpack.c.h.b16 %v3477
        %v3645 = vunpack.c.l.b16 %v3478
        %v3646 = vunpack.c.h.b16 %v3478
        %v3647 = vunpack.c.l.b16 %v3479
        %v3648 = vunpack.c.h.b16 %v3479
        %v3649 = vunpack.c.l.b16 %v3480
        %v3650 = vunpack.c.h.b16 %v3480
        %v3651 = vunpack.c.l.b16 %v3481
        %v3652 = vunpack.c.h.b16 %v3481
        %v3653 = vunpack.c.l.b16 %v3482
        %v3654 = vunpack.c.h.b16 %v3482
        %v3655 = vunpack.c.l.b16 %v3483
        %v3656 = vunpack.c.h.b16 %v3483
        %v3657 = vunpack.c.l.b16 %v3484
        %v3658 = vunpack.c.h.b16 %v3484
        %v3659 = vunpack.c.l.b16 %v3485
        %v3660 = vunpack.c.h.b16 %v3485
        %v3661 = vunpack.c.l.b16 %v3486
        %v3662 = vunpack.c.h.b16 %v3486
        %v3663 = vunpack.c.l.b16 %v3487
        %v3664 = vunpack.c.h.b16 %v3487
        %v3665 = vunpack.c.l.b16 %v3488
        %v3666 = vunpack.c.h.b16 %v3488
        %v3667 = vunpack.c.l.b16 %v3489
        %v3668 = vunpack.c.h.b16 %v3489
        %v3669 = vunpack.c.l.b16 %v3490
        %v3670 = vunpack.c.h.b16 %v3490
        %v3671 = vunpack.c.l.b16 %v3491
        %v3672 = vunpack.c.h.b16 %v3491
        %v3673 = vunpack.c.l.b16 %v3492
        %v3674 = vunpack.c.h.b16 %v3492
        %v3675 = vunpack.c.l.b16 %v3493
        %v3676 = vunpack.c.h.b16 %v3493
        %v3677 = vunpack.c.l.b16 %v3494
        %v3678 = vunpack.c.h.b16 %v3494
        %v3679 = vunpack.c.l.b16 %v3495
        %v3680 = vunpack.c.h.b16 %v3495
        %v3681 = vunpack.c.l.b16 %v3496
        %v3682 = vunpack.c.h.b16 %v3496
        %v3683 = vunpack.c.l.b16 %v3497
        %v3684 = vunpack.c.h.b16 %v3497
        %v3685 = vunpack.c.l.b16 %v3498
        %v3686 = vunpack.c.h.b16 %v3498
        %v3687 = vunpack.c.l.b16 %v3499
        %v3688 = vunpack.c.h.b16 %v3499
        %v3689 = vunpack.c.l.b16 %v3500
        %v3690 = vunpack.c.h.b16 %v3500
        %v3691 = vunpack.c.l.b16 %v3501
        %v3692 = vunpack.c.h.b16 %v3501
        %v3693 = vunpack.c.l.b16 %v3502
        %v3694 = vunpack.c.h.b16 %v3502
        %v3695 = vunpack.c.l.b16 %v3503
        %v3696 = vunpack.c.h.b16 %v3503
        %v3697 = vunpack.c.l.b16 %v3504
        %v3698 = vunpack.c.h.b16 %v3504
        %v3699 = vunpack.c.l.b16 %v3505
        %v3700 = vunpack.c.h.b16 %v3505
        %v3701 = vunpack.c.l.b16 %v3506
        %v3702 = vunpack.c.h.b16 %v3506
        %v3703 = vunpack.c.l.b16 %v3507
        %v3704 = vunpack.c.h.b16 %v3507
        %v3705 = vunpack.c.l.b16 %v3508
        %v3706 = vunpack.c.h.b16 %v3508
        %v3707 = vpack.c.b16 %v3583, %v3579
        %v3708 = vpack.c.b16 %v3584, %v3580
        %v3709 = vpack.c.b16 %v3585, %v3581
        %v3710 = vpack.c.b16 %v3586, %v3582
        %v3711 = vpack.c.b16 %v3591, %v3587
        %v3712 = vpack.c.b16 %v3592, %v3588
        %v3713 = vpack.c.b16 %v3593, %v3589
        %v3714 = vpack.c.b16 %v3594, %v3590
        %v3715 = vpack.c.b16 %v3599, %v3595
        %v3716 = vpack.c.b16 %v3600, %v3596
        %v3717 = vpack.c.b16 %v3601, %v3597
        %v3718 = vpack.c.b16 %v3602, %v3598
        %v3719 = vpack.c.b16 %v3607, %v3603
        %v3720 = vpack.c.b16 %v3608, %v3604
        %v3721 = vpack.c.b16 %v3609, %v3605
        %v3722 = vpack.c.b16 %v3610, %v3606
        %v3723 = vpack.c.b16 %v3615, %v3611
        %v3724 = vpack.c.b16 %v3616, %v3612
        %v3725 = vpack.c.b16 %v3617, %v3613
        %v3726 = vpack.c.b16 %v3618, %v3614
        %v3727 = vpack.c.b16 %v3623, %v3619
        %v3728 = vpack.c.b16 %v3624, %v3620
        %v3729 = vpack.c.b16 %v3625, %v3621
        %v3730 = vpack.c.b16 %v3626, %v3622
        %v3731 = vpack.c.b16 %v3631, %v3627
        %v3732 = vpack.c.b16 %v3632, %v3628
        %v3733 = vpack.c.b16 %v3633, %v3629
        %v3734 = vpack.c.b16 %v3634, %v3630
        %v3735 = vpack.c.b16 %v3639, %v3635
        %v3736 = vpack.c.b16 %v3640, %v3636
        %v3737 = vpack.c.b16 %v3641, %v3637
        %v3738 = vpack.c.b16 %v3642, %v3638
        %v3739 = vpack.c.b16 %v3647, %v3643
        %v3740 = vpack.c.b16 %v3648, %v3644
        %v3741 = vpack.c.b16 %v3649, %v3645
        %v3742 = vpack.c.b16 %v3650, %v3646
        %v3743 = vpack.c.b16 %v3655, %v3651
        %v3744 = vpack.c.b16 %v3656, %v3652
        %v3745 = vpack.c.b16 %v3657, %v3653
        %v3746 = vpack.c.b16 %v3658, %v3654
        %v3747 = vpack.c.b16 %v3663, %v3659
        %v3748 = vpack.c.b16 %v3664, %v3660
        %v3749 = vpack.c.b16 %v3665, %v3661
        %v3750 = vpack.c.b16 %v3666, %v3662
        %v3751 = vpack.c.b16 %v3671, %v3667
        %v3752 = vpack.c.b16 %v3672, %v3668
        %v3753 = vpack.c.b16 %v3673, %v3669
        %v3754 = vpack.c.b16 %v3674, %v3670
        %v3755 = vpack.c.b16 %v3679, %v3675
        %v3756 = vpack.c.b16 %v3680, %v3676
        %v3757 = vpack.c.b16 %v3681, %v3677
        %v3758 = vpack.c.b16 %v3682, %v3678
        %v3759 = vpack.c.b16 %v3687, %v3683
        %v3760 = vpack.c.b16 %v3688, %v3684
        %v3761 = vpack.c.b16 %v3689, %v3685
        %v3762 = vpack.c.b16 %v3690, %v3686
        %v3763 = vpack.c.b16 %v3695, %v3691
        %v3764 = vpack.c.b16 %v3696, %v3692
        %v3765 = vpack.c.b16 %v3697, %v3693
        %v3766 = vpack.c.b16 %v3698, %v3694
        %v3767 = vpack.c.b16 %v3703, %v3699
        %v3768 = vpack.c.b16 %v3704, %v3700
        %v3769 = vpack.c.b16 %v3705, %v3701
        %v3770 = vpack.c.b16 %v3706, %v3702
        %3835 = vmatprep.subr.bf16.mxu0 %v3708
        %3836 = vmatpush1.bf16.msra.mxu0 %v3707
        %3837 = vmatprep.subr.bf16.mxu0 %v3712
        %3838 = vmatpush1.bf16.msra.mxu0 %v3711
        %3839 = vmatprep.subr.bf16.mxu0 %v3716
        %3840 = vmatpush1.bf16.msra.mxu0 %v3715
        %3841 = vmatprep.subr.bf16.mxu0 %v3720
        %3842 = vmatpush1.bf16.msra.mxu0 %v3719
        %3843 = vmatprep.subr.bf16.mxu0 %v3724
        %3844 = vmatpush1.bf16.msra.mxu0 %v3723
        %3845 = vmatprep.subr.bf16.mxu0 %v3728
        %3846 = vmatpush1.bf16.msra.mxu0 %v3727
        %3847 = vmatprep.subr.bf16.mxu0 %v3732
        %3848 = vmatpush1.bf16.msra.mxu0 %v3731
        %3849 = vmatprep.subr.bf16.mxu0 %v3736
        %3850 = vmatpush1.bf16.msra.mxu0 %v3735
        %3851 = vmatprep.subr.bf16.mxu0 %v3740
        %3852 = vmatpush1.bf16.msra.mxu0 %v3739
        %3853 = vmatprep.subr.bf16.mxu0 %v3744
        %3854 = vmatpush1.bf16.msra.mxu0 %v3743
        %3855 = vmatprep.subr.bf16.mxu0 %v3748
        %3856 = vmatpush1.bf16.msra.mxu0 %v3747
        %3857 = vmatprep.subr.bf16.mxu0 %v3752
        %3858 = vmatpush1.bf16.msra.mxu0 %v3751
        %3859 = vmatprep.subr.bf16.mxu0 %v3756
        %3860 = vmatpush1.bf16.msra.mxu0 %v3755
        %3861 = vmatprep.subr.bf16.mxu0 %v3760
        %3862 = vmatpush1.bf16.msra.mxu0 %v3759
        %3863 = vmatprep.subr.bf16.mxu0 %v3764
        %3864 = vmatpush1.bf16.msra.mxu0 %v3763
        %3865 = vmatprep.subr.bf16.mxu0 %v3768
        %3866 = vmatpush1.bf16.msra.mxu0 %v3767
        %3867 = vmatprep.mubr.bf16.mxu0 %v3512
        %3868 = vmatmul.mubr.bf16.gmra.mrb[0].mxu0 %v3511
        %v3869 = vpop.f32.mrb[0].mxu0
        %v3870 = vadd.f32 0.0, %v3869
        %v3871 = vpop.f32.mrb[0].mxu0
        %v3872 = vadd.f32 0.0, %v3871
        %v3873 = vpop.f32.mrb[0].mxu0
        %v3874 = vpop.f32.mrb[0].mxu0
        %3875 = vdwg.mxu0
        %3876 = vmatprep.subr.bf16.mxu0 %v3710
        %3877 = vmatpush1.bf16.msra.mxu0 %v3709
        %3878 = vmatprep.subr.bf16.mxu0 %v3714
        %3879 = vmatpush1.bf16.msra.mxu0 %v3713
        %3880 = vmatprep.subr.bf16.mxu0 %v3718
        %3881 = vmatpush1.bf16.msra.mxu0 %v3717
        %3882 = vmatprep.subr.bf16.mxu0 %v3722
        %3883 = vmatpush1.bf16.msra.mxu0 %v3721
        %3884 = vmatprep.subr.bf16.mxu0 %v3726
        %3885 = vmatpush1.bf16.msra.mxu0 %v3725
        %3886 = vmatprep.subr.bf16.mxu0 %v3730
        %3887 = vmatpush1.bf16.msra.mxu0 %v3729
        %3888 = vmatprep.subr.bf16.mxu0 %v3734
        %3889 = vmatpush1.bf16.msra.mxu0 %v3733
        %3890 = vmatprep.subr.bf16.mxu0 %v3738
        %3891 = vmatpush1.bf16.msra.mxu0 %v3737
        %3892 = vmatprep.subr.bf16.mxu0 %v3742
        %3893 = vmatpush1.bf16.msra.mxu0 %v3741
        %3894 = vmatprep.subr.bf16.mxu0 %v3746
        %3895 = vmatpush1.bf16.msra.mxu0 %v3745
        %3896 = vmatprep.subr.bf16.mxu0 %v3750
        %3897 = vmatpush1.bf16.msra.mxu0 %v3749
        %3898 = vmatprep.subr.bf16.mxu0 %v3754
        %3899 = vmatpush1.bf16.msra.mxu0 %v3753
        %3900 = vmatprep.subr.bf16.mxu0 %v3758
        %3901 = vmatpush1.bf16.msra.mxu0 %v3757
        %3902 = vmatprep.subr.bf16.mxu0 %v3762
        %3903 = vmatpush1.bf16.msra.mxu0 %v3761
        %3904 = vmatprep.subr.bf16.mxu0 %v3766
        %3905 = vmatpush1.bf16.msra.mxu0 %v3765
        %3906 = vmatprep.subr.bf16.mxu0 %v3770
        %3907 = vmatpush1.bf16.msra.mxu0 %v3769
        %3908 = vmatprep.mubr.bf16.mxu0 %v3512
        %3909 = vmatmul.mubr.bf16.gmra.mrb[0].mxu0 %v3511
        %v3910 = vpop.f32.mrb[0].mxu0
        %v3911 = vadd.f32 0.0, %v3910
        %v3912 = vpop.f32.mrb[0].mxu0
        %v3913 = vadd.f32 0.0, %v3912
        %v3914 = vpop.f32.mrb[0].mxu0
        %v3915 = vpop.f32.mrb[0].mxu0
        %3916 = vdwg.mxu0
        %v3917 = vadd.f32 %v3393, %v3870
        %v3918 = vadd.f32 %v3395, %v3872
        %v3919 = vadd.f32 %v3434, %v3911
        %v3920 = vadd.f32 %v3436, %v3913
        %v3921 = vld [vmem:[%s6] sm:$0xf]
        %v3923 = vlaneseq
        %v3924 = vshrl.u32 %v3923, 7
        %v3925 = vsub.s32 0, %v3924
        %v3926 = vrot.slane %v3921, %v3925
        %v3927 = vlaneseq
        %v3928 = vshrl.u32 %v3927, 7
        %v3929 = vsub.s32 1, %v3928
        %v3930 = vrot.slane %v3921, %v3929
        %v3931 = vlaneseq
        %v3932 = vshrl.u32 %v3931, 7
        %v3933 = vsub.s32 2, %v3932
        %v3934 = vrot.slane %v3921, %v3933
        %v3935 = vlaneseq
        %v3936 = vshrl.u32 %v3935, 7
        %v3937 = vsub.s32 3, %v3936
        %v3938 = vrot.slane %v3921, %v3937
        %v3943 = vadd.f32 %v3917, %v3926
        %v3944 = vadd.f32 %v3918, %v3930
        %v3945 = vadd.f32 %v3919, %v3934
        %v3946 = vadd.f32 %v3920, %v3938
        %v3947 = vmax.f32 %v3943, 0.0
        %v3948 = vmax.f32 %v3944, 0.0
        %v3949 = vmax.f32 %v3945, 0.0
        %v3950 = vmax.f32 %v3946, 0.0
        %v3951 = vmax.f32 %v3947, %v3949
        %v3952 = vmax.f32 %v3948, %v3950
        %3953 = vst [vmem:[#allocation4] sm:$0xf] %v3951
        %3954 = vst [vmem:[#allocation4 + $0x8] sm:$0xf] %v3952
        %v3955 = vld [vmem:[#allocation4] ss:$8 sm:$0x3]
        %v3956 = vld [vmem:[%s917] ss:$8 sm:$0x3]
        %v3957 = vmax.f32 %v3955, %v3956
        %v3958 = vld [vmem:[%s920] ss:$8 sm:$0x3]
        %v3959 = vld [vmem:[%s922] ss:$8 sm:$0x3]
        %v3960 = vmax.f32 %v3958, %v3959
        %v3962 = vrot.slane %v3957, 1
        %v3964 = vadd.f32 %v3957, %v3962
        %v3965 = vadd.f32 %v3964, %v3960
        %v3967 = vrot.slane %v3960, 1
        %v3969 = vadd.f32 %v3965, %v3967
        %v3970 = vmul.f32 %v3969, 0.25
        %v3971 = vld [vmem:[%s7] sm:$0xff]
        %v3972 = vld [vmem:[%s7 + $0x8] sm:$0xff]
        %v3973 = vld [vmem:[%s7 + $0x10] sm:$0xff]
        %v3974 = vld [vmem:[%s7 + $0x18] sm:$0xff]
        %v3975 = vld [vmem:[%s7 + $0x20] sm:$0xff]
        %v3976 = vld [vmem:[%s7 + $0x28] sm:$0xff]
        %v3977 = vld [vmem:[%s7 + $0x30] sm:$0xff]
        %v3978 = vld [vmem:[%s7 + $0x38] sm:$0xff]
        %v3979 = vld [vmem:[%s7 + $0x40] sm:$0xff]
        %v3980 = vld [vmem:[%s7 + $0x48] sm:$0xff]
        %v3981 = vld [vmem:[%s7 + $0x50] sm:$0xff]
        %v3982 = vld [vmem:[%s7 + $0x58] sm:$0xff]
        %v3983 = vld [vmem:[%s7 + $0x60] sm:$0xff]
        %v3984 = vld [vmem:[%s7 + $0x68] sm:$0xff]
        %v3985 = vld [vmem:[%s7 + $0x70] sm:$0xff]
        %v3986 = vld [vmem:[%s7 + $0x78] sm:$0xff]
        %v3987 = vld [vmem:[%s8] sm:$0x1]
        %3988 = vmatprep.subr.mxu0 0.0
        %3989 = vmatpush1.msra.mxu0 %v3971
        %3990 = vmatprep.subr.mxu0 0.0
        %3991 = vmatpush1.msra.mxu0 %v3972
        %3992 = vmatprep.subr.mxu0 0.0
        %3993 = vmatpush1.msra.mxu0 %v3973
        %3994 = vmatprep.subr.mxu0 0.0
        %3995 = vmatpush1.msra.mxu0 %v3974
        %3996 = vmatprep.subr.mxu0 0.0
        %3997 = vmatpush1.msra.mxu0 %v3975
        %3998 = vmatprep.subr.mxu0 0.0
        %3999 = vmatpush1.msra.mxu0 %v3976
        %4000 = vmatprep.subr.mxu0 0.0
        %4001 = vmatpush1.msra.mxu0 %v3977
        %4002 = vmatprep.subr.mxu0 0.0
        %4003 = vmatpush1.msra.mxu0 %v3978
        %4004 = vmatprep.subr.mxu0 0.0
        %4005 = vmatpush1.msra.mxu0 %v3979
        %4006 = vmatprep.subr.mxu0 0.0
        %4007 = vmatpush1.msra.mxu0 %v3980
        %4008 = vmatprep.subr.mxu0 0.0
        %4009 = vmatpush1.msra.mxu0 %v3981
        %4010 = vmatprep.subr.mxu0 0.0
        %4011 = vmatpush1.msra.mxu0 %v3982
        %4012 = vmatprep.subr.mxu0 0.0
        %4013 = vmatpush1.msra.mxu0 %v3983
        %4014 = vmatprep.subr.mxu0 0.0
        %4015 = vmatpush1.msra.mxu0 %v3984
        %4016 = vmatprep.subr.mxu0 0.0
        %4017 = vmatpush1.msra.mxu0 %v3985
        %4018 = vmatprep.subr.mxu0 0.0
        %4019 = vmatpush1.msra.mxu0 %v3986
        %4020 = vmatprep.subr.mxu0 0.0
        %4021 = vmatpush1.msra.mxu0 0.0
        %4022 = vmatprep.subr.mxu0 0.0
        %4023 = vmatpush1.msra.mxu0 0.0
        %4024 = vmatprep.subr.mxu0 0.0
        %4025 = vmatpush1.msra.mxu0 0.0
        %4026 = vmatprep.subr.mxu0 0.0
        %4027 = vmatpush1.msra.mxu0 0.0
        %4028 = vmatprep.subr.mxu0 0.0
        %4029 = vmatpush1.msra.mxu0 0.0
        %4030 = vmatprep.subr.mxu0 0.0
        %4031 = vmatpush1.msra.mxu0 0.0
        %4032 = vmatprep.subr.mxu0 0.0
        %4033 = vmatpush1.msra.mxu0 0.0
        %4034 = vmatprep.subr.mxu0 0.0
        %4035 = vmatpush1.msra.mxu0 0.0
        %4036 = vmatprep.subr.mxu0 0.0
        %4037 = vmatpush1.msra.mxu0 0.0
        %4038 = vmatprep.subr.mxu0 0.0
        %4039 = vmatpush1.msra.mxu0 0.0
        %4040 = vmatprep.subr.mxu0 0.0
        %4041 = vmatpush1.msra.mxu0 0.0
        %4042 = vmatprep.subr.mxu0 0.0
        %4043 = vmatpush1.msra.mxu0 0.0
        %4044 = vmatprep.subr.mxu0 0.0
        %4045 = vmatpush1.msra.mxu0 0.0
        %4046 = vmatprep.subr.mxu0 0.0
        %4047 = vmatpush1.msra.mxu0 0.0
        %4048 = vmatprep.subr.mxu0 0.0
        %4049 = vmatpush1.msra.mxu0 0.0
        %4050 = vmatprep.subr.mxu0 0.0
        %4051 = vmatpush1.msra.mxu0 0.0
        %4052 = vmatprep.mubr.f32.mxu0 0.0
        %4053 = vmatmul.mubr.f32.gmra.mrb[0].mxu0 %v3970
        %v4054 = vpop.f32.mrb[0].mxu0
        %v4055 = vadd.f32 %v3987, %v4054
        %v4056 = vpop.f32.mrb[0].mxu0
        %4057 = vdwg.mxu0
        %vm4058 = vcmask 8192
        %4059 = vst.msk [vmem:[%s354] sm:$0x1] %vm4058, %v4055
        %s4060 = sand.u32 %s227, 1
        %s4061 = scalar_lea.sflag [#allocation7], %s4060
        %s4062 = sand.u32 %s227, 1
        %s4063 = scalar_lea.vmem [#allocation10], %s4062
        // Predicated region
        $region65: #{simple_cnn_color.1} parent=55 // pred_check
          %p4064 = pneg %p237
        $region66: #{simple_cnn_color.1} parent=55 // pred_check_branch
          %4066 = sbr.rel (%p4064) target = $region68
        $region67: #{simple_cnn_color.1} parent=55 // pred_region
          %s4068 = ssub.s32 16, 16
          %4069 = vsyncadd %s4061, %s4068
          %s4070 = smul.addr %s25, 16
          %s4071 = scalar_lea.hbm %s9, %s4070
          %s4073 = sshll.u32 %s4063, 4
          %s4074 = int_to_ptr.vmem [resolvable:$true] %s4073
          %4076 = dma.vmem_to_hbm [thread:$0]  %s4074, 16, %s4071, %s4061
        $region68: #{simple_cnn_color.1} parent=55 // pred_fallthru
          _
      $region56: #{simple_cnn_color.1} parent=5 // pred_fallthru
        _
      %p4077 = scmp.le.s32.totalorder 2, %s20
      // Predicated region
      $region69: #{simple_cnn_color.1} parent=5 // pred_check
        %p4078 = pneg %p4077
      $region70: #{simple_cnn_color.1} parent=5 // pred_check_branch
        %4080 = sbr.rel (%p4078) target = $region72
      $region71: #{simple_cnn_color.1} parent=5 // pred_region
        %s4081 = ssub.s32 %s20, 2
        // Predicated region
        $region73: #{simple_cnn_color.1} parent=71 // pred_check
          %p4082 = pneg %p243
        $region74: #{simple_cnn_color.1} parent=71 // pred_check_branch
          %4084 = sbr.rel (%p4082) target = $region76
        $region75: #{simple_cnn_color.1} parent=71 // pred_region
          %s4085 = sand.u32 %s228, 1
          %s4086 = scalar_lea.sflag [#allocation7], %s4085
          %s4087 = sand.u32 %s228, 1
          %s4088 = scalar_lea.vmem [#allocation10], %s4087
          %4089 = dma.done %s4086, 16
        $region76: #{simple_cnn_color.1} parent=71 // pred_fallthru
          _
      $region72: #{simple_cnn_color.1} parent=5 // pred_fallthru
        _
    $region6: #{simple_cnn_color.1} parent=1 // loop_footer
      %s24 = sadd.s32 1, %s20
    $region7: #{simple_cnn_color.1} parent=1 // loop_footer_branch
      %19 = sbr.rel target = $region3
    $region8: #{simple_cnn_color.1} parent=1 // loop_exit
      _
    %4090 = vsyncpa [#allocation6], 1
    %s4091 = scalar_lea.sflag [#allocation6], 1
    %4092 = vsyncpa %s4091, 1
    %4093 = vsyncpa [#allocation9], 1
    %4094 = vsyncpa [#allocation7], 1
    %s4095 = scalar_lea.sflag [#allocation7], 1
    %4096 = vsyncpa %s4095, 1

</llo_original>
